<compile_context>
chip_gen: v5e
topology: v5e:2x2
jax: 0.10.0
libtpu: 0.0.40
codegen_flags: <defaults>
</compile_context>

<pallas_src>
import functools

import jax
import jax.numpy as jnp
from jax.experimental import pallas as pl
from jax.experimental.pallas import tpu as pltpu


def _round_up(x, m):
    return ((x + m - 1) // m) * m


def _vmem_limit_bytes():
    # Per-generation scoped-VMEM limit with headroom (v5e/v6e: 128 MiB phys,
    # v7x: 64 MiB per TensorCore).
    try:
        cap = pltpu.get_tpu_info().vmem_capacity_bytes
    except Exception:
        cap = 128 << 20
    return min(int(cap) * 3 // 4, 100 << 20)


# ============================== fused layer kernel ===========================

def _gin_layer_kernel(eps_ref, h_prev_ref, pmT_ref, vn_ref,
                      ea_ref, ew_ref, eb_ref, srcT_ref, adj_ref,
                      w1_ref, t1_ref, w2_ref, t2_ref,
                      *rest, relu_out, compute_vn):
    """One full GIN+virtualnode layer.

    Grid axis 0 is a reduction over edge tiles ("arbitrary").  h_in and agg
    live in VMEM scratch for the whole grid; outputs are written once at the
    last step.
    """
    if compute_vn:
        (pool_ref, vw1_ref, vt1_ref, vw2_ref, vt2_ref,
         h_out_ref, vn_out_ref, h_in_sc, agg_sc) = rest
    else:
        (h_out_ref, h_in_sc, agg_sc) = rest
        pool_ref = vw1_ref = vt1_ref = vw2_ref = vt2_ref = vn_out_ref = None

    k = pl.program_id(0)

    @pl.when(k == 0)
    def _init():
        # virtual-node broadcast add: h_in = h_prev + vn_emb[batch]
        vn_bcast = jnp.dot(pmT_ref[...], vn_ref[...],
                           preferred_element_type=jnp.float32)
        h_in_sc[...] = h_prev_ref[...] + vn_bcast
        agg_sc[...] = jnp.zeros_like(agg_sc)

    # --- GIN message + scatter-add for this edge tile -----------------------
    # edge_emb = edge_attr @ W_e + b_e                     (E_tile, D)
    edge_emb = jnp.dot(ea_ref[...], ew_ref[...],
                       preferred_element_type=jnp.float32) + eb_ref[...]
    # h_src = one_hot(src) @ h_in                          (E_tile, D)
    h_src = jnp.dot(srcT_ref[...], h_in_sc[...],
                    preferred_element_type=jnp.float32)
    msg = jnp.maximum(h_src + edge_emb, 0.0)
    # scatter-add over destinations: adj (N, E_tile) @ msg (E_tile, D)
    agg_sc[...] += jnp.dot(adj_ref[...], msg, preferred_element_type=jnp.float32)

    @pl.when(k == pl.num_programs(0) - 1)
    def _finish():
        # GIN MLP + outer BatchNorm (all folded into w/t) + optional ReLU.
        one_plus_eps = eps_ref[0, 0]
        z = one_plus_eps * h_in_sc[...] + agg_sc[...]
        hmid = jnp.maximum(
            jnp.dot(z, w1_ref[...], preferred_element_type=jnp.float32)
            + t1_ref[...], 0.0)
        h = jnp.dot(hmid, w2_ref[...],
                    preferred_element_type=jnp.float32) + t2_ref[...]
        if relu_out:
            h = jnp.maximum(h, 0.0)
        h_out_ref[...] = h.astype(h_out_ref.dtype)

        if compute_vn:
            # global_add_pool on the VMEM-resident h_in + 2-layer vn MLP.
            pooled = jnp.dot(pool_ref[...], h_in_sc[...],
                             preferred_element_type=jnp.float32)
            vn_tmp = vn_ref[...] + pooled
            v1 = jnp.maximum(
                jnp.dot(vn_tmp, vw1_ref[...], preferred_element_type=jnp.float32)
                + vt1_ref[...], 0.0)
            vn_new = jnp.maximum(
                jnp.dot(v1, vw2_ref[...], preferred_element_type=jnp.float32)
                + vt2_ref[...], 0.0)
            vn_out_ref[...] = vn_new.astype(vn_out_ref.dtype)


def gin_layer(one_plus_eps, h_prev, pmT, vn_emb, ea, edge_w, edge_b, srcT, adj,
              w1, t1, w2, t2, vn_args=None, *, relu_out, edge_tile):
    compute_vn = vn_args is not None
    NP, DP = h_prev.shape
    GP = pmT.shape[1]
    EP, KE = ea.shape
    D2P = w1.shape[1]
    const = lambda k: (0, 0)

    # TODO(synk): constant-index inputs could use pipeline_mode=pl.Buffered(1)
    # to drop their second VMEM buffer (matters most under v7x's 64 MiB VMEM).
    in_specs = [
        pl.BlockSpec(memory_space=pltpu.MemorySpace.SMEM),    # (1 + eps) scalar
        pl.BlockSpec((NP, DP), const),                        # h_prev
        pl.BlockSpec((NP, GP), const),                        # node->graph one-hot
        pl.BlockSpec((GP, DP), const),                        # vn_emb
        pl.BlockSpec((edge_tile, KE), lambda k: (k, 0)),      # edge_attr tile
        pl.BlockSpec((KE, DP), const),                        # edge encoder W
        pl.BlockSpec((1, DP), const),                         # edge encoder b
        pl.BlockSpec((edge_tile, NP), lambda k: (k, 0)),      # src one-hot tile
        pl.BlockSpec((NP, edge_tile), lambda k: (0, k)),      # dst one-hot tile
        pl.BlockSpec((DP, D2P), const),                       # mlp W1 (BN folded)
        pl.BlockSpec((1, D2P), const),                        # mlp t1
        pl.BlockSpec((D2P, DP), const),                       # mlp W2 (BN folded)
        pl.BlockSpec((1, DP), const),                         # mlp t2
    ]
    args = [one_plus_eps, h_prev, pmT, vn_emb, ea, edge_w, edge_b, srcT, adj,
            w1, t1, w2, t2]
    out_specs = [pl.BlockSpec((NP, DP), const)]
    out_shape = [jax.ShapeDtypeStruct((NP, DP), jnp.float32)]
    if compute_vn:
        pool_mask, vw1, vt1, vw2, vt2 = vn_args
        in_specs += [
            pl.BlockSpec((GP, NP), const),                    # graph->node one-hot
            pl.BlockSpec((DP, D2P), const),                   # vn W1 (BN folded)
            pl.BlockSpec((1, D2P), const),
            pl.BlockSpec((D2P, DP), const),                   # vn W2 (BN folded)
            pl.BlockSpec((1, DP), const),
        ]
        args += [pool_mask, vw1, vt1, vw2, vt2]
        out_specs.append(pl.BlockSpec((GP, DP), const))
        out_shape.append(jax.ShapeDtypeStruct((GP, DP), jnp.float32))

    kern = functools.partial(_gin_layer_kernel, relu_out=relu_out,
                             compute_vn=compute_vn)
    # TODO(synk): for v7x megacore, add a leading "parallel" node-row grid axis
    # (tile adj / agg / h_out by node rows) so both TensorCores are used.
    outs = pl.pallas_call(
        kern,
        grid_spec=pltpu.PrefetchScalarGridSpec(
            num_scalar_prefetch=0,
            grid=(EP // edge_tile,),
            in_specs=in_specs,
            out_specs=out_specs,
            scratch_shapes=[pltpu.VMEM((NP, DP), jnp.float32),   # h_in
                            pltpu.VMEM((NP, DP), jnp.float32)],  # agg
        ),
        out_shape=out_shape,
        compiler_params=pltpu.CompilerParams(
            dimension_semantics=("arbitrary",),
            vmem_limit_bytes=_vmem_limit_bytes()),
    )(*args)
    if compute_vn:
        return outs[0], outs[1]
    return outs[0], None


# ============================ parameter handling =============================

def _bn_fold(gamma, beta, mean, var, eps=1e-5):
    s = gamma / jnp.sqrt(var + eps)
    t = beta - mean * s
    return s, t


def init_params(key, num_layer, emb_dim):
    kit = iter(jax.random.split(key, 256))

    def nrm(shape, scale=0.1):
        return scale * jax.random.normal(next(kit), shape, jnp.float32)

    def bn(dim):
        gamma = 1.0 + nrm((dim,), 0.05)
        beta = nrm((dim,), 0.05)
        mean = nrm((dim,), 0.05)
        var = 1.0 + jnp.abs(nrm((dim,), 0.05))
        return _bn_fold(gamma, beta, mean, var)

    params = {
        "node_encoder": nrm((300, emb_dim)),          # Embedding(300, emb_dim)
        "virtualnode_emb": jnp.zeros((1, emb_dim)),   # init.constant_(0)
        "layers": [],
        "vn_mlps": [],
    }
    for _ in range(num_layer):
        bn1_s, bn1_t = bn(2 * emb_dim)
        bn_s, bn_t = bn(emb_dim)
        params["layers"].append({
            "edge_w": nrm((7, emb_dim)), "edge_b": nrm((emb_dim,)),
            "eps": jnp.float32(0.0),
            "mlp_w1": nrm((emb_dim, 2 * emb_dim)), "mlp_b1": nrm((2 * emb_dim,)),
            "mlp_bn1_s": bn1_s, "mlp_bn1_t": bn1_t,
            "mlp_w2": nrm((2 * emb_dim, emb_dim)), "mlp_b2": nrm((emb_dim,)),
            "bn_s": bn_s, "bn_t": bn_t,
        })
    for _ in range(num_layer - 1):
        bn1_s, bn1_t = bn(2 * emb_dim)
        bn2_s, bn2_t = bn(emb_dim)
        params["vn_mlps"].append({
            "w1": nrm((emb_dim, 2 * emb_dim)), "b1": nrm((2 * emb_dim,)),
            "bn1_s": bn1_s, "bn1_t": bn1_t,
            "w2": nrm((2 * emb_dim, emb_dim)), "b2": nrm((emb_dim,)),
            "bn2_s": bn2_s, "bn2_t": bn2_t,
        })
    return params


def _pad_to(a, rows, cols):
    out = jnp.zeros((rows, cols), jnp.float32)
    return out.at[:a.shape[0], :a.shape[1]].set(a.astype(jnp.float32))


def prepare_params(params, emb_dim, d_pad, ke_pad):
    """Fold BatchNorm (eval) + biases into the linears, pad to lane-dense dims."""
    D, D2 = emb_dim, 2 * emb_dim
    DP, D2P = d_pad, 2 * d_pad
    prep = {
        "node_encoder": _pad_to(params["node_encoder"], 300, DP),
        "virtualnode_emb": _pad_to(params["virtualnode_emb"], 1, DP),
        "layers": [],
        "vn_mlps": [],
    }
    for p in params["layers"]:
        w1p = p["mlp_w1"] * p["mlp_bn1_s"][None, :]
        t1p = p["mlp_b1"] * p["mlp_bn1_s"] + p["mlp_bn1_t"]
        w2p = p["mlp_w2"] * p["bn_s"][None, :]
        t2p = p["mlp_b2"] * p["bn_s"] + p["bn_t"]
        prep["layers"].append({
            "edge_w": _pad_to(p["edge_w"], ke_pad, DP),
            "edge_b": _pad_to(p["edge_b"].reshape(1, D), 1, DP),
            "one_plus_eps": (1.0 + p["eps"]).reshape(1, 1).astype(jnp.float32),
            "w1": _pad_to(w1p, DP, D2P),
            "t1": _pad_to(t1p.reshape(1, D2), 1, D2P),
            "w2": _pad_to(w2p, D2P, DP),
            "t2": _pad_to(t2p.reshape(1, D), 1, DP),
        })
    for p in params["vn_mlps"]:
        w1p = p["w1"] * p["bn1_s"][None, :]
        t1p = p["b1"] * p["bn1_s"] + p["bn1_t"]
        w2p = p["w2"] * p["bn2_s"][None, :]
        t2p = p["b2"] * p["bn2_s"] + p["bn2_t"]
        prep["vn_mlps"].append({
            "w1": _pad_to(w1p, DP, D2P),
            "t1": _pad_to(t1p.reshape(1, D2), 1, D2P),
            "w2": _pad_to(w2p, D2P, DP),
            "t2": _pad_to(t2p.reshape(1, D), 1, DP),
        })
    return prep


# ================================ forward ====================================

def gnn_node_virtualnode_forward(prep, x_ids, edge_index, edge_attr, batch, *,
                                 num_layer, emb_dim, num_graphs, edge_tile=256):
    DP = prep["layers"][0]["w1"].shape[0]
    KE = prep["layers"][0]["edge_w"].shape[0]
    N = x_ids.shape[0]
    E = edge_attr.shape[0]
    G = num_graphs

    NP = _round_up(max(N, 128), 128)
    EP = _round_up(max(E, edge_tile), edge_tile)
    GP = _round_up(max(G, 8), 8)

    src = edge_index[0].astype(jnp.int32)
    dst = edge_index[1].astype(jnp.int32)

    # Padded index arrays: out-of-range sentinel => all-zero one-hot row/col,
    # so padded edges/nodes are inert.
    src_pad = jnp.full((EP,), NP, jnp.int32).at[:E].set(src)
    dst_pad = jnp.full((EP,), NP, jnp.int32).at[:E].set(dst)
    batch_pad = jnp.full((NP,), GP, jnp.int32).at[:N].set(batch.astype(jnp.int32))

    node_ids = jnp.arange(NP, dtype=jnp.int32)
    graph_ids = jnp.arange(GP, dtype=jnp.int32)
    # TODO(synk): dense one-hot gather/scatter is O(N*E); for production-scale
    # graphs replace with scalar-prefetched index gather over segment-sorted edges.
    srcT = (src_pad[:, None] == node_ids[None, :]).astype(jnp.float32)    # (EP, NP)
    adj = (node_ids[:, None] == dst_pad[None, :]).astype(jnp.float32)     # (NP, EP)
    pmT = (batch_pad[:, None] == graph_ids[None, :]).astype(jnp.float32)  # (NP, GP)
    pool_mask = pmT.T                                                     # (GP, NP)

    ea = jnp.zeros((EP, KE), jnp.float32).at[:E, :edge_attr.shape[1]].set(
        edge_attr.astype(jnp.float32))

    # node embedding lookup (glue gather in XLA) + row padding
    h0 = prep["node_encoder"][x_ids]                                       # (N, DP)
    h_prev = jnp.zeros((NP, DP), jnp.float32).at[:N].set(h0)

    vn_emb = jnp.zeros((GP, DP), jnp.float32).at[:G].set(
        jnp.broadcast_to(prep["virtualnode_emb"], (G, DP)))

    h = h_prev
    for layer in range(num_layer):
        lp = prep["layers"][layer]
        is_last = layer == num_layer - 1
        if is_last:
            vn_args = None
        else:
            vp = prep["vn_mlps"][layer]
            vn_args = (pool_mask, vp["w1"], vp["t1"], vp["w2"], vp["t2"])
        h, vn_new = gin_layer(lp["one_plus_eps"], h_prev, pmT, vn_emb, ea,
                              lp["edge_w"], lp["edge_b"], srcT, adj,
                              lp["w1"], lp["t1"], lp["w2"], lp["t2"],
                              vn_args, relu_out=not is_last, edge_tile=edge_tile)
        if vn_new is not None:
            vn_emb = vn_new
        h_prev = h

    # JK == 'last'; dropout == identity (eval); strip row/feature padding.
    return h[:N, :emb_dim]


# ============================ pure-JAX reference =============================

def reference_forward(params, x_ids, edge_index, edge_attr, batch, *,
                      num_layer, emb_dim, num_graphs):
    h = params["node_encoder"][x_ids]
    vn = jnp.broadcast_to(params["virtualnode_emb"], (num_graphs, emb_dim))
    src, dst = edge_index[0], edge_index[1]
    for layer in range(num_layer):
        p = params["layers"][layer]
        h_in = h + vn[batch]
        edge_emb = edge_attr @ p["edge_w"] + p["edge_b"]
        msg = jax.nn.relu(h_in[src] + edge_emb)
        agg = jnp.zeros_like(h_in).at[dst].add(msg)
        z = (1.0 + p["eps"]) * h_in + agg
        hmid = jax.nn.relu((z @ p["mlp_w1"] + p["mlp_b1"]) * p["mlp_bn1_s"]
                           + p["mlp_bn1_t"])
        hout = (hmid @ p["mlp_w2"] + p["mlp_b2"]) * p["bn_s"] + p["bn_t"]
        if layer != num_layer - 1:
            hout = jax.nn.relu(hout)
        if layer < num_layer - 1:
            vp = params["vn_mlps"][layer]
            pooled = jnp.zeros((num_graphs, emb_dim)).at[batch].add(h_in)
            vn_tmp = vn + pooled
            v1 = jax.nn.relu((vn_tmp @ vp["w1"] + vp["b1"]) * vp["bn1_s"]
                             + vp["bn1_t"])
            vn = jax.nn.relu((v1 @ vp["w2"] + vp["b2"]) * vp["bn2_s"]
                             + vp["bn2_t"])
        h = hout
    return h


# ================================== main =====================================

if __name__ == "__main__":
    num_layer = 3
    emb_dim = 32
    N = 16          # nodes
    E = 40          # edges
    G = 2           # graphs

    key = jax.random.PRNGKey(0)
    k_param, k_x, k_src, k_dst, k_ea = jax.random.split(key, 5)

    params = init_params(k_param, num_layer, emb_dim)
    DP = _round_up(max(emb_dim, 128), 128)   # lane-dense padded feature dim
    KE = _round_up(7, 8)
    prep = prepare_params(params, emb_dim, DP, KE)

    x_ids = jax.random.randint(k_x, (N,), 0, 300)                  # data.x.squeeze(-1)
    # edges stay inside each graph (nodes 0..7 -> graph 0, 8..15 -> graph 1)
    src0 = jax.random.randint(k_src, (E // 2,), 0, N // 2)
    dst0 = jax.random.randint(k_dst, (E // 2,), 0, N // 2)
    src = jnp.concatenate([src0, src0 + N // 2])
    dst = jnp.concatenate([dst0, dst0 + N // 2])
    edge_index = jnp.stack([src, dst], axis=0)                     # (2, E)
    edge_attr = jax.random.normal(k_ea, (E, 7), jnp.float32)       # (E, 7)
    batch = jnp.concatenate([jnp.zeros((N // 2,), jnp.int32),
                             jnp.ones((N // 2,), jnp.int32)])      # (N,)

    fwd = jax.jit(functools.partial(
        gnn_node_virtualnode_forward,
        num_layer=num_layer, emb_dim=emb_dim, num_graphs=G, edge_tile=256))

    out = jax.block_until_ready(fwd(prep, x_ids, edge_index, edge_attr, batch))
    assert out.shape == (N, emb_dim)
    assert bool(jnp.all(jnp.isfinite(out)))

    ref = reference_forward(params, x_ids, edge_index, edge_attr, batch,
                            num_layer=num_layer, emb_dim=emb_dim, num_graphs=G)
    err = float(jnp.max(jnp.abs(out - ref)))
    scale = float(jnp.max(jnp.abs(ref))) + 1e-6
    assert err / scale < 2e-2, f"mismatch vs reference: max|diff|={err}, scale={scale}"
    # TODO(synk): dropout modeled as identity (eval mode); BatchNorm uses running stats.
    print("KERNEL_OK")
</pallas_src>

<mosaic_0001>
module attributes {stable_mosaic.version = 11 : i64} {
  func.func @_gin_layer_kernel(%arg0: i32, %arg1: memref<1x1xf32, #tpu.memory_space<smem>>, %arg2: memref<128x128xf32, #tpu.memory_space<vmem>>, %arg3: memref<128x8xf32, #tpu.memory_space<vmem>>, %arg4: memref<8x128xf32, #tpu.memory_space<vmem>>, %arg5: memref<256x8xf32, #tpu.memory_space<vmem>>, %arg6: memref<8x128xf32, #tpu.memory_space<vmem>>, %arg7: memref<1x128xf32, #tpu.memory_space<vmem>>, %arg8: memref<256x128xf32, #tpu.memory_space<vmem>>, %arg9: memref<128x256xf32, #tpu.memory_space<vmem>>, %arg10: memref<128x256xf32, #tpu.memory_space<vmem>>, %arg11: memref<1x256xf32, #tpu.memory_space<vmem>>, %arg12: memref<256x128xf32, #tpu.memory_space<vmem>>, %arg13: memref<1x128xf32, #tpu.memory_space<vmem>>, %arg14: memref<8x128xf32, #tpu.memory_space<vmem>>, %arg15: memref<128x256xf32, #tpu.memory_space<vmem>>, %arg16: memref<1x256xf32, #tpu.memory_space<vmem>>, %arg17: memref<256x128xf32, #tpu.memory_space<vmem>>, %arg18: memref<1x128xf32, #tpu.memory_space<vmem>>, %arg19: memref<128x128xf32, #tpu.memory_space<vmem>>, %arg20: memref<8x128xf32, #tpu.memory_space<vmem>>, %arg21: memref<128x128xf32, #tpu.memory_space<vmem>>, %arg22: memref<128x128xf32, #tpu.memory_space<vmem>>) attributes {dimension_semantics = [#tpu.dimension_semantics<arbitrary>], iteration_bounds = array<i64: 1>, scalar_prefetch = 0 : i64, scratch_operands = 2 : i64, tpu.core_type = #tpu.core_type<tc>, window_params = [{transform_indices = @transform_0, window_bounds = array<i64: 1, 1>}, {pipeline_mode = #tpu.pipeline_mode<synchronous>, transform_indices = @transform_1, window_bounds = array<i64: 128, 128>}, {pipeline_mode = #tpu.pipeline_mode<synchronous>, transform_indices = @transform_2, window_bounds = array<i64: 128, 8>}, {pipeline_mode = #tpu.pipeline_mode<synchronous>, transform_indices = @transform_3, window_bounds = array<i64: 8, 128>}, {transform_indices = @transform_4, window_bounds = array<i64: 256, 8>}, {pipeline_mode = #tpu.pipeline_mode<synchronous>, transform_indices = @transform_5, window_bounds = array<i64: 8, 128>}, {pipeline_mode = #tpu.pipeline_mode<synchronous>, transform_indices = @transform_6, window_bounds = array<i64: 1, 128>}, {transform_indices = @transform_7, window_bounds = array<i64: 256, 128>}, {transform_indices = @transform_8, window_bounds = array<i64: 128, 256>}, {pipeline_mode = #tpu.pipeline_mode<synchronous>, transform_indices = @transform_9, window_bounds = array<i64: 128, 256>}, {pipeline_mode = #tpu.pipeline_mode<synchronous>, transform_indices = @transform_10, window_bounds = array<i64: 1, 256>}, {pipeline_mode = #tpu.pipeline_mode<synchronous>, transform_indices = @transform_11, window_bounds = array<i64: 256, 128>}, {pipeline_mode = #tpu.pipeline_mode<synchronous>, transform_indices = @transform_12, window_bounds = array<i64: 1, 128>}, {pipeline_mode = #tpu.pipeline_mode<synchronous>, transform_indices = @transform_13, window_bounds = array<i64: 8, 128>}, {pipeline_mode = #tpu.pipeline_mode<synchronous>, transform_indices = @transform_14, window_bounds = array<i64: 128, 256>}, {pipeline_mode = #tpu.pipeline_mode<synchronous>, transform_indices = @transform_15, window_bounds = array<i64: 1, 256>}, {pipeline_mode = #tpu.pipeline_mode<synchronous>, transform_indices = @transform_16, window_bounds = array<i64: 256, 128>}, {pipeline_mode = #tpu.pipeline_mode<synchronous>, transform_indices = @transform_17, window_bounds = array<i64: 1, 128>}, {pipeline_mode = #tpu.pipeline_mode<synchronous>, transform_indices = @transform_18, window_bounds = array<i64: 128, 128>}, {pipeline_mode = #tpu.pipeline_mode<synchronous>, transform_indices = @transform_19, window_bounds = array<i64: 8, 128>}]} {
    %c0_i32 = arith.constant 0 : i32
    %0 = arith.cmpi eq, %arg0, %c0_i32 : i32
    %1 = arith.extui %0 : i1 to i32
    %c0_i32_0 = arith.constant 0 : i32
    %2 = arith.cmpi ne, %1, %c0_i32_0 : i32
    scf.if %2 {
      %c0_21 = arith.constant 0 : index
      %c0_22 = arith.constant 0 : index
      %23 = vector.load %arg3[%c0_21, %c0_22] : memref<128x8xf32, #tpu.memory_space<vmem>>, vector<128x8xf32>
      %c0_23 = arith.constant 0 : index
      %c0_24 = arith.constant 0 : index
      %24 = vector.load %arg4[%c0_23, %c0_24] : memref<8x128xf32, #tpu.memory_space<vmem>>, vector<8x128xf32>
      %cst_25 = arith.constant dense<0.000000e+00> : vector<128x128xf32>
      %25 = tpu.matmul %23, %24, %cst_25 {dimension_numbers = #tpu.dot_dimension_numbers<[1], [0], [0], [1], [0, 0, 1, 1], [], []>} : vector<128x8xf32>, vector<8x128xf32>, vector<128x128xf32> -> vector<128x128xf32>
      %c0_26 = arith.constant 0 : index
      %c0_27 = arith.constant 0 : index
      %26 = vector.load %arg2[%c0_26, %c0_27] : memref<128x128xf32, #tpu.memory_space<vmem>>, vector<128x128xf32>
      %27 = arith.addf %26, %25 : vector<128x128xf32>
      %c0_28 = arith.constant 0 : index
      %c0_29 = arith.constant 0 : index
      %28 = vector.load %arg21[%c0_28, %c0_29] : memref<128x128xf32, #tpu.memory_space<vmem>>, vector<128x128xf32>
      tpu.vector_store %arg21[%c0_28, %c0_29], %27 {strides = array<i32>} : memref<128x128xf32, #tpu.memory_space<vmem>>, vector<128x128xf32>,
      %cst_30 = arith.constant 0.000000e+00 : f32
      %29 = vector.broadcast %cst_30 : f32 to vector<128x128xf32>
      %c0_31 = arith.constant 0 : index
      %c0_32 = arith.constant 0 : index
      %30 = vector.load %arg22[%c0_31, %c0_32] : memref<128x128xf32, #tpu.memory_space<vmem>>, vector<128x128xf32>
      tpu.vector_store %arg22[%c0_31, %c0_32], %29 {strides = array<i32>} : memref<128x128xf32, #tpu.memory_space<vmem>>, vector<128x128xf32>,
    } else {
    }
    %c0 = arith.constant 0 : index
    %c0_1 = arith.constant 0 : index
    %3 = vector.load %arg5[%c0, %c0_1] : memref<256x8xf32, #tpu.memory_space<vmem>>, vector<256x8xf32>
    %c0_2 = arith.constant 0 : index
    %c0_3 = arith.constant 0 : index
    %4 = vector.load %arg6[%c0_2, %c0_3] : memref<8x128xf32, #tpu.memory_space<vmem>>, vector<8x128xf32>
    %cst = arith.constant dense<0.000000e+00> : vector<256x128xf32>
    %5 = tpu.matmul %3, %4, %cst {dimension_numbers = #tpu.dot_dimension_numbers<[1], [0], [0], [1], [0, 0, 1, 1], [], []>} : vector<256x8xf32>, vector<8x128xf32>, vector<256x128xf32> -> vector<256x128xf32>
    %c0_4 = arith.constant 0 : index
    %c0_5 = arith.constant 0 : index
    %6 = vector.load %arg7[%c0_4, %c0_5] : memref<1x128xf32, #tpu.memory_space<vmem>>, vector<1x128xf32>
    %7 = vector.broadcast %6 : vector<1x128xf32> to vector<256x128xf32>
    %8 = arith.addf %5, %7 : vector<256x128xf32>
    %c0_6 = arith.constant 0 : index
    %c0_7 = arith.constant 0 : index
    %9 = vector.load %arg8[%c0_6, %c0_7] : memref<256x128xf32, #tpu.memory_space<vmem>>, vector<256x128xf32>
    %c0_8 = arith.constant 0 : index
    %c0_9 = arith.constant 0 : index
    %10 = vector.load %arg21[%c0_8, %c0_9] : memref<128x128xf32, #tpu.memory_space<vmem>>, vector<128x128xf32>
    %cst_10 = arith.constant dense<0.000000e+00> : vector<256x128xf32>
    %11 = tpu.matmul %9, %10, %cst_10 {dimension_numbers = #tpu.dot_dimension_numbers<[1], [0], [0], [1], [0, 0, 1, 1], [], []>} : vector<256x128xf32>, vector<128x128xf32>, vector<256x128xf32> -> vector<256x128xf32>
    %12 = arith.addf %11, %8 : vector<256x128xf32>
    %cst_11 = arith.constant 0.000000e+00 : f32
    %13 = vector.broadcast %cst_11 : f32 to vector<256x128xf32>
    %14 = arith.maximumf %12, %13 : vector<256x128xf32>
    %c0_12 = arith.constant 0 : index
    %c0_13 = arith.constant 0 : index
    %15 = vector.load %arg22[%c0_12, %c0_13] : memref<128x128xf32, #tpu.memory_space<vmem>>, vector<128x128xf32>
    %c0_14 = arith.constant 0 : index
    %c0_15 = arith.constant 0 : index
    %16 = vector.load %arg9[%c0_14, %c0_15] : memref<128x256xf32, #tpu.memory_space<vmem>>, vector<128x256xf32>
    %cst_16 = arith.constant dense<0.000000e+00> : vector<128x128xf32>
    %17 = tpu.matmul %16, %14, %cst_16 {dimension_numbers = #tpu.dot_dimension_numbers<[1], [0], [0], [1], [0, 0, 1, 1], [], []>} : vector<128x256xf32>, vector<256x128xf32>, vector<128x128xf32> -> vector<128x128xf32>
    %18 = arith.addf %15, %17 : vector<128x128xf32>
    %c0_17 = arith.constant 0 : index
    %c0_18 = arith.constant 0 : index
    %19 = vector.load %arg22[%c0_17, %c0_18] : memref<128x128xf32, #tpu.memory_space<vmem>>, vector<128x128xf32>
    tpu.vector_store %arg22[%c0_17, %c0_18], %18 {strides = array<i32>} : memref<128x128xf32, #tpu.memory_space<vmem>>, vector<128x128xf32>,
    %c0_i32_19 = arith.constant 0 : i32
    %20 = arith.cmpi eq, %arg0, %c0_i32_19 : i32
    %21 = arith.extui %20 : i1 to i32
    %c0_i32_20 = arith.constant 0 : i32
    %22 = arith.cmpi ne, %21, %c0_i32_20 : i32
    scf.if %22 {
      %c0_21 = arith.constant 0 : index
      %c0_22 = arith.constant 0 : index
      %23 = memref.load %arg1[%c0_21, %c0_22] : memref<1x1xf32, #tpu.memory_space<smem>>
      %c0_23 = arith.constant 0 : index
      %c0_24 = arith.constant 0 : index
      %24 = vector.load %arg21[%c0_23, %c0_24] : memref<128x128xf32, #tpu.memory_space<vmem>>, vector<128x128xf32>
      %25 = vector.broadcast %23 : f32 to vector<128x128xf32>
      %26 = arith.mulf %25, %24 : vector<128x128xf32>
      %c0_25 = arith.constant 0 : index
      %c0_26 = arith.constant 0 : index
      %27 = vector.load %arg22[%c0_25, %c0_26] : memref<128x128xf32, #tpu.memory_space<vmem>>, vector<128x128xf32>
      %28 = arith.addf %26, %27 : vector<128x128xf32>
      %c0_27 = arith.constant 0 : index
      %c0_28 = arith.constant 0 : index
      %29 = vector.load %arg10[%c0_27, %c0_28] : memref<128x256xf32, #tpu.memory_space<vmem>>, vector<128x256xf32>
      %cst_29 = arith.constant dense<0.000000e+00> : vector<128x256xf32>
      %30 = tpu.matmul %28, %29, %cst_29 {dimension_numbers = #tpu.dot_dimension_numbers<[1], [0], [0], [1], [0, 0, 1, 1], [], []>} : vector<128x128xf32>, vector<128x256xf32>, vector<128x256xf32> -> vector<128x256xf32>
      %c0_30 = arith.constant 0 : index
      %c0_31 = arith.constant 0 : index
      %31 = vector.load %arg11[%c0_30, %c0_31] : memref<1x256xf32, #tpu.memory_space<vmem>>, vector<1x256xf32>
      %32 = vector.broadcast %31 : vector<1x256xf32> to vector<128x256xf32>
      %33 = arith.addf %30, %32 : vector<128x256xf32>
      %cst_32 = arith.constant 0.000000e+00 : f32
      %34 = vector.broadcast %cst_32 : f32 to vector<128x256xf32>
      %35 = arith.maximumf %33, %34 : vector<128x256xf32>
      %c0_33 = arith.constant 0 : index
      %c0_34 = arith.constant 0 : index
      %36 = vector.load %arg12[%c0_33, %c0_34] : memref<256x128xf32, #tpu.memory_space<vmem>>, vector<256x128xf32>
      %cst_35 = arith.constant dense<0.000000e+00> : vector<128x128xf32>
      %37 = tpu.matmul %35, %36, %cst_35 {dimension_numbers = #tpu.dot_dimension_numbers<[1], [0], [0], [1], [0, 0, 1, 1], [], []>} : vector<128x256xf32>, vector<256x128xf32>, vector<128x128xf32> -> vector<128x128xf32>
      %c0_36 = arith.constant 0 : index
      %c0_37 = arith.constant 0 : index
      %38 = vector.load %arg13[%c0_36, %c0_37] : memref<1x128xf32, #tpu.memory_space<vmem>>, vector<1x128xf32>
      %39 = vector.broadcast %38 : vector<1x128xf32> to vector<128x128xf32>
      %40 = arith.addf %37, %39 : vector<128x128xf32>
      %cst_38 = arith.constant 0.000000e+00 : f32
      %41 = vector.broadcast %cst_38 : f32 to vector<128x128xf32>
      %42 = arith.maximumf %40, %41 : vector<128x128xf32>
      %c0_39 = arith.constant 0 : index
      %c0_40 = arith.constant 0 : index
      %43 = vector.load %arg19[%c0_39, %c0_40] : memref<128x128xf32, #tpu.memory_space<vmem>>, vector<128x128xf32>
      tpu.vector_store %arg19[%c0_39, %c0_40], %42 {strides = array<i32>} : memref<128x128xf32, #tpu.memory_space<vmem>>, vector<128x128xf32>,
      %c0_41 = arith.constant 0 : index
      %c0_42 = arith.constant 0 : index
      %44 = vector.load %arg14[%c0_41, %c0_42] : memref<8x128xf32, #tpu.memory_space<vmem>>, vector<8x128xf32>
      %c0_43 = arith.constant 0 : index
      %c0_44 = arith.constant 0 : index
      %45 = vector.load %arg21[%c0_43, %c0_44] : memref<128x128xf32, #tpu.memory_space<vmem>>, vector<128x128xf32>
      %cst_45 = arith.constant dense<0.000000e+00> : vector<8x128xf32>
      %46 = tpu.matmul %44, %45, %cst_45 {dimension_numbers = #tpu.dot_dimension_numbers<[1], [0], [0], [1], [0, 0, 1, 1], [], []>} : vector<8x128xf32>, vector<128x128xf32>, vector<8x128xf32> -> vector<8x128xf32>
      %c0_46 = arith.constant 0 : index
      %c0_47 = arith.constant 0 : index
      %47 = vector.load %arg4[%c0_46, %c0_47] : memref<8x128xf32, #tpu.memory_space<vmem>>, vector<8x128xf32>
      %48 = arith.addf %47, %46 : vector<8x128xf32>
      %c0_48 = arith.constant 0 : index
      %c0_49 = arith.constant 0 : index
      %49 = vector.load %arg15[%c0_48, %c0_49] : memref<128x256xf32, #tpu.memory_space<vmem>>, vector<128x256xf32>
      %cst_50 = arith.constant dense<0.000000e+00> : vector<8x256xf32>
      %50 = tpu.matmul %48, %49, %cst_50 {dimension_numbers = #tpu.dot_dimension_numbers<[1], [0], [0], [1], [0, 0, 1, 1], [], []>} : vector<8x128xf32>, vector<128x256xf32>, vector<8x256xf32> -> vector<8x256xf32>
      %c0_51 = arith.constant 0 : index
      %c0_52 = arith.constant 0 : index
      %51 = vector.load %arg16[%c0_51, %c0_52] : memref<1x256xf32, #tpu.memory_space<vmem>>, vector<1x256xf32>
      %52 = vector.broadcast %51 : vector<1x256xf32> to vector<8x256xf32>
      %53 = arith.addf %50, %52 : vector<8x256xf32>
      %cst_53 = arith.constant 0.000000e+00 : f32
      %54 = vector.broadcast %cst_53 : f32 to vector<8x256xf32>
      %55 = arith.maximumf %53, %54 : vector<8x256xf32>
      %c0_54 = arith.constant 0 : index
      %c0_55 = arith.constant 0 : index
      %56 = vector.load %arg17[%c0_54, %c0_55] : memref<256x128xf32, #tpu.memory_space<vmem>>, vector<256x128xf32>
      %cst_56 = arith.constant dense<0.000000e+00> : vector<8x128xf32>
      %57 = tpu.matmul %55, %56, %cst_56 {dimension_numbers = #tpu.dot_dimension_numbers<[1], [0], [0], [1], [0, 0, 1, 1], [], []>} : vector<8x256xf32>, vector<256x128xf32>, vector<8x128xf32> -> vector<8x128xf32>
      %c0_57 = arith.constant 0 : index
      %c0_58 = arith.constant 0 : index
      %58 = vector.load %arg18[%c0_57, %c0_58] : memref<1x128xf32, #tpu.memory_space<vmem>>, vector<1x128xf32>
      %59 = vector.broadcast %58 : vector<1x128xf32> to vector<8x128xf32>
      %60 = arith.addf %57, %59 : vector<8x128xf32>
      %cst_59 = arith.constant 0.000000e+00 : f32
      %61 = vector.broadcast %cst_59 : f32 to vector<8x128xf32>
      %62 = arith.maximumf %60, %61 : vector<8x128xf32>
      %c0_60 = arith.constant 0 : index
      %c0_61 = arith.constant 0 : index
      %63 = vector.load %arg20[%c0_60, %c0_61] : memref<8x128xf32, #tpu.memory_space<vmem>>, vector<8x128xf32>
      tpu.vector_store %arg20[%c0_60, %c0_61], %62 {strides = array<i32>} : memref<8x128xf32, #tpu.memory_space<vmem>>, vector<8x128xf32>,
    } else {
    }
    return
  }
  func.func @transform_0(%arg0: i32) -> (i32, i32) {
    %c0_i32 = arith.constant 0 : i32
    %c0_i32_0 = arith.constant 0 : i32
    %c0_i32_1 = arith.constant 0 : i32
    return %c0_i32, %c0_i32_0 : i32, i32
  }
  func.func @transform_1(%arg0: i32) -> (i32, i32) {
    %c0_i32 = arith.constant 0 : i32
    %c0_i32_0 = arith.constant 0 : i32
    %c0_i32_1 = arith.constant 0 : i32
    return %c0_i32, %c0_i32_0 : i32, i32
  }
  func.func @transform_2(%arg0: i32) -> (i32, i32) {
    %c0_i32 = arith.constant 0 : i32
    %c0_i32_0 = arith.constant 0 : i32
    %c0_i32_1 = arith.constant 0 : i32
    return %c0_i32, %c0_i32_0 : i32, i32
  }
  func.func @transform_3(%arg0: i32) -> (i32, i32) {
    %c0_i32 = arith.constant 0 : i32
    %c0_i32_0 = arith.constant 0 : i32
    %c0_i32_1 = arith.constant 0 : i32
    return %c0_i32, %c0_i32_0 : i32, i32
  }
  func.func @transform_4(%arg0: i32) -> (i32, i32) {
    %c0_i32 = arith.constant 0 : i32
    %c0_i32_0 = arith.constant 0 : i32
    return %arg0, %c0_i32 : i32, i32
  }
  func.func @transform_5(%arg0: i32) -> (i32, i32) {
    %c0_i32 = arith.constant 0 : i32
    %c0_i32_0 = arith.constant 0 : i32
    %c0_i32_1 = arith.constant 0 : i32
    return %c0_i32, %c0_i32_0 : i32, i32
  }
  func.func @transform_6(%arg0: i32) -> (i32, i32) {
    %c0_i32 = arith.constant 0 : i32
    %c0_i32_0 = arith.constant 0 : i32
    %c0_i32_1 = arith.constant 0 : i32
    return %c0_i32, %c0_i32_0 : i32, i32
  }
  func.func @transform_7(%arg0: i32) -> (i32, i32) {
    %c0_i32 = arith.constant 0 : i32
    %c0_i32_0 = arith.constant 0 : i32
    return %arg0, %c0_i32 : i32, i32
  }
  func.func @transform_8(%arg0: i32) -> (i32, i32) {
    %c0_i32 = arith.constant 0 : i32
    %c0_i32_0 = arith.constant 0 : i32
    return %c0_i32, %arg0 : i32, i32
  }
  func.func @transform_9(%arg0: i32) -> (i32, i32) {
    %c0_i32 = arith.constant 0 : i32
    %c0_i32_0 = arith.constant 0 : i32
    %c0_i32_1 = arith.constant 0 : i32
    return %c0_i32, %c0_i32_0 : i32, i32
  }
  func.func @transform_10(%arg0: i32) -> (i32, i32) {
    %c0_i32 = arith.constant 0 : i32
    %c0_i32_0 = arith.constant 0 : i32
    %c0_i32_1 = arith.constant 0 : i32
    return %c0_i32, %c0_i32_0 : i32, i32
  }
  func.func @transform_11(%arg0: i32) -> (i32, i32) {
    %c0_i32 = arith.constant 0 : i32
    %c0_i32_0 = arith.constant 0 : i32
    %c0_i32_1 = arith.constant 0 : i32
    return %c0_i32, %c0_i32_0 : i32, i32
  }
  func.func @transform_12(%arg0: i32) -> (i32, i32) {
    %c0_i32 = arith.constant 0 : i32
    %c0_i32_0 = arith.constant 0 : i32
    %c0_i32_1 = arith.constant 0 : i32
    return %c0_i32, %c0_i32_0 : i32, i32
  }
  func.func @transform_13(%arg0: i32) -> (i32, i32) {
    %c0_i32 = arith.constant 0 : i32
    %c0_i32_0 = arith.constant 0 : i32
    %c0_i32_1 = arith.constant 0 : i32
    return %c0_i32, %c0_i32_0 : i32, i32
  }
  func.func @transform_14(%arg0: i32) -> (i32, i32) {
    %c0_i32 = arith.constant 0 : i32
    %c0_i32_0 = arith.constant 0 : i32
    %c0_i32_1 = arith.constant 0 : i32
    return %c0_i32, %c0_i32_0 : i32, i32
  }
  func.func @transform_15(%arg0: i32) -> (i32, i32) {
    %c0_i32 = arith.constant 0 : i32
    %c0_i32_0 = arith.constant 0 : i32
    %c0_i32_1 = arith.constant 0 : i32
    return %c0_i32, %c0_i32_0 : i32, i32
  }
  func.func @transform_16(%arg0: i32) -> (i32, i32) {
    %c0_i32 = arith.constant 0 : i32
    %c0_i32_0 = arith.constant 0 : i32
    %c0_i32_1 = arith.constant 0 : i32
    return %c0_i32, %c0_i32_0 : i32, i32
  }
  func.func @transform_17(%arg0: i32) -> (i32, i32) {
    %c0_i32 = arith.constant 0 : i32
    %c0_i32_0 = arith.constant 0 : i32
    %c0_i32_1 = arith.constant 0 : i32
    return %c0_i32, %c0_i32_0 : i32, i32
  }
  func.func @transform_18(%arg0: i32) -> (i32, i32) {
    %c0_i32 = arith.constant 0 : i32
    %c0_i32_0 = arith.constant 0 : i32
    %c0_i32_1 = arith.constant 0 : i32
    return %c0_i32, %c0_i32_0 : i32, i32
  }
  func.func @transform_19(%arg0: i32) -> (i32, i32) {
    %c0_i32 = arith.constant 0 : i32
    %c0_i32_0 = arith.constant 0 : i32
    %c0_i32_1 = arith.constant 0 : i32
    return %c0_i32, %c0_i32_0 : i32, i32
  }
}

module attributes {stable_mosaic.version = 11 : i64} {
  func.func @_gin_layer_kernel(%arg0: i32, %arg1: memref<1x1xf32, #tpu.memory_space<smem>>, %arg2: memref<128x128xf32, #tpu.memory_space<vmem>>, %arg3: memref<128x8xf32, #tpu.memory_space<vmem>>, %arg4: memref<8x128xf32, #tpu.memory_space<vmem>>, %arg5: memref<256x8xf32, #tpu.memory_space<vmem>>, %arg6: memref<8x128xf32, #tpu.memory_space<vmem>>, %arg7: memref<1x128xf32, #tpu.memory_space<vmem>>, %arg8: memref<256x128xf32, #tpu.memory_space<vmem>>, %arg9: memref<128x256xf32, #tpu.memory_space<vmem>>, %arg10: memref<128x256xf32, #tpu.memory_space<vmem>>, %arg11: memref<1x256xf32, #tpu.memory_space<vmem>>, %arg12: memref<256x128xf32, #tpu.memory_space<vmem>>, %arg13: memref<1x128xf32, #tpu.memory_space<vmem>>, %arg14: memref<8x128xf32, #tpu.memory_space<vmem>>, %arg15: memref<128x256xf32, #tpu.memory_space<vmem>>, %arg16: memref<1x256xf32, #tpu.memory_space<vmem>>, %arg17: memref<256x128xf32, #tpu.memory_space<vmem>>, %arg18: memref<1x128xf32, #tpu.memory_space<vmem>>, %arg19: memref<128x128xf32, #tpu.memory_space<vmem>>, %arg20: memref<8x128xf32, #tpu.memory_space<vmem>>, %arg21: memref<128x128xf32, #tpu.memory_space<vmem>>, %arg22: memref<128x128xf32, #tpu.memory_space<vmem>>) attributes {dimension_semantics = [#tpu.dimension_semantics<arbitrary>], iteration_bounds = array<i64: 1>, scalar_prefetch = 0 : i64, scratch_operands = 2 : i64, tpu.core_type = #tpu.core_type<tc>, window_params = [{transform_indices = @transform_0, window_bounds = array<i64: 1, 1>}, {pipeline_mode = #tpu.pipeline_mode<synchronous>, transform_indices = @transform_1, window_bounds = array<i64: 128, 128>}, {pipeline_mode = #tpu.pipeline_mode<synchronous>, transform_indices = @transform_2, window_bounds = array<i64: 128, 8>}, {pipeline_mode = #tpu.pipeline_mode<synchronous>, transform_indices = @transform_3, window_bounds = array<i64: 8, 128>}, {transform_indices = @transform_4, window_bounds = array<i64: 256, 8>}, {pipeline_mode = #tpu.pipeline_mode<synchronous>, transform_indices = @transform_5, window_bounds = array<i64: 8, 128>}, {pipeline_mode = #tpu.pipeline_mode<synchronous>, transform_indices = @transform_6, window_bounds = array<i64: 1, 128>}, {transform_indices = @transform_7, window_bounds = array<i64: 256, 128>}, {transform_indices = @transform_8, window_bounds = array<i64: 128, 256>}, {pipeline_mode = #tpu.pipeline_mode<synchronous>, transform_indices = @transform_9, window_bounds = array<i64: 128, 256>}, {pipeline_mode = #tpu.pipeline_mode<synchronous>, transform_indices = @transform_10, window_bounds = array<i64: 1, 256>}, {pipeline_mode = #tpu.pipeline_mode<synchronous>, transform_indices = @transform_11, window_bounds = array<i64: 256, 128>}, {pipeline_mode = #tpu.pipeline_mode<synchronous>, transform_indices = @transform_12, window_bounds = array<i64: 1, 128>}, {pipeline_mode = #tpu.pipeline_mode<synchronous>, transform_indices = @transform_13, window_bounds = array<i64: 8, 128>}, {pipeline_mode = #tpu.pipeline_mode<synchronous>, transform_indices = @transform_14, window_bounds = array<i64: 128, 256>}, {pipeline_mode = #tpu.pipeline_mode<synchronous>, transform_indices = @transform_15, window_bounds = array<i64: 1, 256>}, {pipeline_mode = #tpu.pipeline_mode<synchronous>, transform_indices = @transform_16, window_bounds = array<i64: 256, 128>}, {pipeline_mode = #tpu.pipeline_mode<synchronous>, transform_indices = @transform_17, window_bounds = array<i64: 1, 128>}, {pipeline_mode = #tpu.pipeline_mode<synchronous>, transform_indices = @transform_18, window_bounds = array<i64: 128, 128>}, {pipeline_mode = #tpu.pipeline_mode<synchronous>, transform_indices = @transform_19, window_bounds = array<i64: 8, 128>}]} {
    %c0_i32 = arith.constant 0 : i32
    %0 = arith.cmpi eq, %arg0, %c0_i32 : i32
    %1 = arith.extui %0 : i1 to i32
    %c0_i32_0 = arith.constant 0 : i32
    %2 = arith.cmpi ne, %1, %c0_i32_0 : i32
    scf.if %2 {
      %c0_21 = arith.constant 0 : index
      %c0_22 = arith.constant 0 : index
      %23 = vector.load %arg3[%c0_21, %c0_22] : memref<128x8xf32, #tpu.memory_space<vmem>>, vector<128x8xf32>
      %c0_23 = arith.constant 0 : index
      %c0_24 = arith.constant 0 : index
      %24 = vector.load %arg4[%c0_23, %c0_24] : memref<8x128xf32, #tpu.memory_space<vmem>>, vector<8x128xf32>
      %cst_25 = arith.constant dense<0.000000e+00> : vector<128x128xf32>
      %25 = tpu.matmul %23, %24, %cst_25 {dimension_numbers = #tpu.dot_dimension_numbers<[1], [0], [0], [1], [0, 0, 1, 1], [], []>} : vector<128x8xf32>, vector<8x128xf32>, vector<128x128xf32> -> vector<128x128xf32>
      %c0_26 = arith.constant 0 : index
      %c0_27 = arith.constant 0 : index
      %26 = vector.load %arg2[%c0_26, %c0_27] : memref<128x128xf32, #tpu.memory_space<vmem>>, vector<128x128xf32>
      %27 = arith.addf %26, %25 : vector<128x128xf32>
      %c0_28 = arith.constant 0 : index
      %c0_29 = arith.constant 0 : index
      %28 = vector.load %arg21[%c0_28, %c0_29] : memref<128x128xf32, #tpu.memory_space<vmem>>, vector<128x128xf32>
      tpu.vector_store %arg21[%c0_28, %c0_29], %27 {strides = array<i32>} : memref<128x128xf32, #tpu.memory_space<vmem>>, vector<128x128xf32>,
      %cst_30 = arith.constant 0.000000e+00 : f32
      %29 = vector.broadcast %cst_30 : f32 to vector<128x128xf32>
      %c0_31 = arith.constant 0 : index
      %c0_32 = arith.constant 0 : index
      %30 = vector.load %arg22[%c0_31, %c0_32] : memref<128x128xf32, #tpu.memory_space<vmem>>, vector<128x128xf32>
      tpu.vector_store %arg22[%c0_31, %c0_32], %29 {strides = array<i32>} : memref<128x128xf32, #tpu.memory_space<vmem>>, vector<128x128xf32>,
    } else {
    }
    %c0 = arith.constant 0 : index
    %c0_1 = arith.constant 0 : index
    %3 = vector.load %arg5[%c0, %c0_1] : memref<256x8xf32, #tpu.memory_space<vmem>>, vector<256x8xf32>
    %c0_2 = arith.constant 0 : index
    %c0_3 = arith.constant 0 : index
    %4 = vector.load %arg6[%c0_2, %c0_3] : memref<8x128xf32, #tpu.memory_space<vmem>>, vector<8x128xf32>
    %cst = arith.constant dense<0.000000e+00> : vector<256x128xf32>
    %5 = tpu.matmul %3, %4, %cst {dimension_numbers = #tpu.dot_dimension_numbers<[1], [0], [0], [1], [0, 0, 1, 1], [], []>} : vector<256x8xf32>, vector<8x128xf32>, vector<256x128xf32> -> vector<256x128xf32>
    %c0_4 = arith.constant 0 : index
    %c0_5 = arith.constant 0 : index
    %6 = vector.load %arg7[%c0_4, %c0_5] : memref<1x128xf32, #tpu.memory_space<vmem>>, vector<1x128xf32>
    %7 = vector.broadcast %6 : vector<1x128xf32> to vector<256x128xf32>
    %8 = arith.addf %5, %7 : vector<256x128xf32>
    %c0_6 = arith.constant 0 : index
    %c0_7 = arith.constant 0 : index
    %9 = vector.load %arg8[%c0_6, %c0_7] : memref<256x128xf32, #tpu.memory_space<vmem>>, vector<256x128xf32>
    %c0_8 = arith.constant 0 : index
    %c0_9 = arith.constant 0 : index
    %10 = vector.load %arg21[%c0_8, %c0_9] : memref<128x128xf32, #tpu.memory_space<vmem>>, vector<128x128xf32>
    %cst_10 = arith.constant dense<0.000000e+00> : vector<256x128xf32>
    %11 = tpu.matmul %9, %10, %cst_10 {dimension_numbers = #tpu.dot_dimension_numbers<[1], [0], [0], [1], [0, 0, 1, 1], [], []>} : vector<256x128xf32>, vector<128x128xf32>, vector<256x128xf32> -> vector<256x128xf32>
    %12 = arith.addf %11, %8 : vector<256x128xf32>
    %cst_11 = arith.constant 0.000000e+00 : f32
    %13 = vector.broadcast %cst_11 : f32 to vector<256x128xf32>
    %14 = arith.maximumf %12, %13 : vector<256x128xf32>
    %c0_12 = arith.constant 0 : index
    %c0_13 = arith.constant 0 : index
    %15 = vector.load %arg22[%c0_12, %c0_13] : memref<128x128xf32, #tpu.memory_space<vmem>>, vector<128x128xf32>
    %c0_14 = arith.constant 0 : index
    %c0_15 = arith.constant 0 : index
    %16 = vector.load %arg9[%c0_14, %c0_15] : memref<128x256xf32, #tpu.memory_space<vmem>>, vector<128x256xf32>
    %cst_16 = arith.constant dense<0.000000e+00> : vector<128x128xf32>
    %17 = tpu.matmul %16, %14, %cst_16 {dimension_numbers = #tpu.dot_dimension_numbers<[1], [0], [0], [1], [0, 0, 1, 1], [], []>} : vector<128x256xf32>, vector<256x128xf32>, vector<128x128xf32> -> vector<128x128xf32>
    %18 = arith.addf %15, %17 : vector<128x128xf32>
    %c0_17 = arith.constant 0 : index
    %c0_18 = arith.constant 0 : index
    %19 = vector.load %arg22[%c0_17, %c0_18] : memref<128x128xf32, #tpu.memory_space<vmem>>, vector<128x128xf32>
    tpu.vector_store %arg22[%c0_17, %c0_18], %18 {strides = array<i32>} : memref<128x128xf32, #tpu.memory_space<vmem>>, vector<128x128xf32>,
    %c0_i32_19 = arith.constant 0 : i32
    %20 = arith.cmpi eq, %arg0, %c0_i32_19 : i32
    %21 = arith.extui %20 : i1 to i32
    %c0_i32_20 = arith.constant 0 : i32
    %22 = arith.cmpi ne, %21, %c0_i32_20 : i32
    scf.if %22 {
      %c0_21 = arith.constant 0 : index
      %c0_22 = arith.constant 0 : index
      %23 = memref.load %arg1[%c0_21, %c0_22] : memref<1x1xf32, #tpu.memory_space<smem>>
      %c0_23 = arith.constant 0 : index
      %c0_24 = arith.constant 0 : index
      %24 = vector.load %arg21[%c0_23, %c0_24] : memref<128x128xf32, #tpu.memory_space<vmem>>, vector<128x128xf32>
      %25 = vector.broadcast %23 : f32 to vector<128x128xf32>
      %26 = arith.mulf %25, %24 : vector<128x128xf32>
      %c0_25 = arith.constant 0 : index
      %c0_26 = arith.constant 0 : index
      %27 = vector.load %arg22[%c0_25, %c0_26] : memref<128x128xf32, #tpu.memory_space<vmem>>, vector<128x128xf32>
      %28 = arith.addf %26, %27 : vector<128x128xf32>
      %c0_27 = arith.constant 0 : index
      %c0_28 = arith.constant 0 : index
      %29 = vector.load %arg10[%c0_27, %c0_28] : memref<128x256xf32, #tpu.memory_space<vmem>>, vector<128x256xf32>
      %cst_29 = arith.constant dense<0.000000e+00> : vector<128x256xf32>
      %30 = tpu.matmul %28, %29, %cst_29 {dimension_numbers = #tpu.dot_dimension_numbers<[1], [0], [0], [1], [0, 0, 1, 1], [], []>} : vector<128x128xf32>, vector<128x256xf32>, vector<128x256xf32> -> vector<128x256xf32>
      %c0_30 = arith.constant 0 : index
      %c0_31 = arith.constant 0 : index
      %31 = vector.load %arg11[%c0_30, %c0_31] : memref<1x256xf32, #tpu.memory_space<vmem>>, vector<1x256xf32>
      %32 = vector.broadcast %31 : vector<1x256xf32> to vector<128x256xf32>
      %33 = arith.addf %30, %32 : vector<128x256xf32>
      %cst_32 = arith.constant 0.000000e+00 : f32
      %34 = vector.broadcast %cst_32 : f32 to vector<128x256xf32>
      %35 = arith.maximumf %33, %34 : vector<128x256xf32>
      %c0_33 = arith.constant 0 : index
      %c0_34 = arith.constant 0 : index
      %36 = vector.load %arg12[%c0_33, %c0_34] : memref<256x128xf32, #tpu.memory_space<vmem>>, vector<256x128xf32>
      %cst_35 = arith.constant dense<0.000000e+00> : vector<128x128xf32>
      %37 = tpu.matmul %35, %36, %cst_35 {dimension_numbers = #tpu.dot_dimension_numbers<[1], [0], [0], [1], [0, 0, 1, 1], [], []>} : vector<128x256xf32>, vector<256x128xf32>, vector<128x128xf32> -> vector<128x128xf32>
      %c0_36 = arith.constant 0 : index
      %c0_37 = arith.constant 0 : index
      %38 = vector.load %arg13[%c0_36, %c0_37] : memref<1x128xf32, #tpu.memory_space<vmem>>, vector<1x128xf32>
      %39 = vector.broadcast %38 : vector<1x128xf32> to vector<128x128xf32>
      %40 = arith.addf %37, %39 : vector<128x128xf32>
      %cst_38 = arith.constant 0.000000e+00 : f32
      %41 = vector.broadcast %cst_38 : f32 to vector<128x128xf32>
      %42 = arith.maximumf %40, %41 : vector<128x128xf32>
      %c0_39 = arith.constant 0 : index
      %c0_40 = arith.constant 0 : index
      %43 = vector.load %arg19[%c0_39, %c0_40] : memref<128x128xf32, #tpu.memory_space<vmem>>, vector<128x128xf32>
      tpu.vector_store %arg19[%c0_39, %c0_40], %42 {strides = array<i32>} : memref<128x128xf32, #tpu.memory_space<vmem>>, vector<128x128xf32>,
      %c0_41 = arith.constant 0 : index
      %c0_42 = arith.constant 0 : index
      %44 = vector.load %arg14[%c0_41, %c0_42] : memref<8x128xf32, #tpu.memory_space<vmem>>, vector<8x128xf32>
      %c0_43 = arith.constant 0 : index
      %c0_44 = arith.constant 0 : index
      %45 = vector.load %arg21[%c0_43, %c0_44] : memref<128x128xf32, #tpu.memory_space<vmem>>, vector<128x128xf32>
      %cst_45 = arith.constant dense<0.000000e+00> : vector<8x128xf32>
      %46 = tpu.matmul %44, %45, %cst_45 {dimension_numbers = #tpu.dot_dimension_numbers<[1], [0], [0], [1], [0, 0, 1, 1], [], []>} : vector<8x128xf32>, vector<128x128xf32>, vector<8x128xf32> -> vector<8x128xf32>
      %c0_46 = arith.constant 0 : index
      %c0_47 = arith.constant 0 : index
      %47 = vector.load %arg4[%c0_46, %c0_47] : memref<8x128xf32, #tpu.memory_space<vmem>>, vector<8x128xf32>
      %48 = arith.addf %47, %46 : vector<8x128xf32>
      %c0_48 = arith.constant 0 : index
      %c0_49 = arith.constant 0 : index
      %49 = vector.load %arg15[%c0_48, %c0_49] : memref<128x256xf32, #tpu.memory_space<vmem>>, vector<128x256xf32>
      %cst_50 = arith.constant dense<0.000000e+00> : vector<8x256xf32>
      %50 = tpu.matmul %48, %49, %cst_50 {dimension_numbers = #tpu.dot_dimension_numbers<[1], [0], [0], [1], [0, 0, 1, 1], [], []>} : vector<8x128xf32>, vector<128x256xf32>, vector<8x256xf32> -> vector<8x256xf32>
      %c0_51 = arith.constant 0 : index
      %c0_52 = arith.constant 0 : index
      %51 = vector.load %arg16[%c0_51, %c0_52] : memref<1x256xf32, #tpu.memory_space<vmem>>, vector<1x256xf32>
      %52 = vector.broadcast %51 : vector<1x256xf32> to vector<8x256xf32>
      %53 = arith.addf %50, %52 : vector<8x256xf32>
      %cst_53 = arith.constant 0.000000e+00 : f32
      %54 = vector.broadcast %cst_53 : f32 to vector<8x256xf32>
      %55 = arith.maximumf %53, %54 : vector<8x256xf32>
      %c0_54 = arith.constant 0 : index
      %c0_55 = arith.constant 0 : index
      %56 = vector.load %arg17[%c0_54, %c0_55] : memref<256x128xf32, #tpu.memory_space<vmem>>, vector<256x128xf32>
      %cst_56 = arith.constant dense<0.000000e+00> : vector<8x128xf32>
      %57 = tpu.matmul %55, %56, %cst_56 {dimension_numbers = #tpu.dot_dimension_numbers<[1], [0], [0], [1], [0, 0, 1, 1], [], []>} : vector<8x256xf32>, vector<256x128xf32>, vector<8x128xf32> -> vector<8x128xf32>
      %c0_57 = arith.constant 0 : index
      %c0_58 = arith.constant 0 : index
      %58 = vector.load %arg18[%c0_57, %c0_58] : memref<1x128xf32, #tpu.memory_space<vmem>>, vector<1x128xf32>
      %59 = vector.broadcast %58 : vector<1x128xf32> to vector<8x128xf32>
      %60 = arith.addf %57, %59 : vector<8x128xf32>
      %cst_59 = arith.constant 0.000000e+00 : f32
      %61 = vector.broadcast %cst_59 : f32 to vector<8x128xf32>
      %62 = arith.maximumf %60, %61 : vector<8x128xf32>
      %c0_60 = arith.constant 0 : index
      %c0_61 = arith.constant 0 : index
      %63 = vector.load %arg20[%c0_60, %c0_61] : memref<8x128xf32, #tpu.memory_space<vmem>>, vector<8x128xf32>
      tpu.vector_store %arg20[%c0_60, %c0_61], %62 {strides = array<i32>} : memref<8x128xf32, #tpu.memory_space<vmem>>, vector<8x128xf32>,
    } else {
    }
    return
  }
  func.func @transform_0(%arg0: i32) -> (i32, i32) {
    %c0_i32 = arith.constant 0 : i32
    %c0_i32_0 = arith.constant 0 : i32
    %c0_i32_1 = arith.constant 0 : i32
    return %c0_i32, %c0_i32_0 : i32, i32
  }
  func.func @transform_1(%arg0: i32) -> (i32, i32) {
    %c0_i32 = arith.constant 0 : i32
    %c0_i32_0 = arith.constant 0 : i32
    %c0_i32_1 = arith.constant 0 : i32
    return %c0_i32, %c0_i32_0 : i32, i32
  }
  func.func @transform_2(%arg0: i32) -> (i32, i32) {
    %c0_i32 = arith.constant 0 : i32
    %c0_i32_0 = arith.constant 0 : i32
    %c0_i32_1 = arith.constant 0 : i32
    return %c0_i32, %c0_i32_0 : i32, i32
  }
  func.func @transform_3(%arg0: i32) -> (i32, i32) {
    %c0_i32 = arith.constant 0 : i32
    %c0_i32_0 = arith.constant 0 : i32
    %c0_i32_1 = arith.constant 0 : i32
    return %c0_i32, %c0_i32_0 : i32, i32
  }
  func.func @transform_4(%arg0: i32) -> (i32, i32) {
    %c0_i32 = arith.constant 0 : i32
    %c0_i32_0 = arith.constant 0 : i32
    return %arg0, %c0_i32 : i32, i32
  }
  func.func @transform_5(%arg0: i32) -> (i32, i32) {
    %c0_i32 = arith.constant 0 : i32
    %c0_i32_0 = arith.constant 0 : i32
    %c0_i32_1 = arith.constant 0 : i32
    return %c0_i32, %c0_i32_0 : i32, i32
  }
  func.func @transform_6(%arg0: i32) -> (i32, i32) {
    %c0_i32 = arith.constant 0 : i32
    %c0_i32_0 = arith.constant 0 : i32
    %c0_i32_1 = arith.constant 0 : i32
    return %c0_i32, %c0_i32_0 : i32, i32
  }
  func.func @transform_7(%arg0: i32) -> (i32, i32) {
    %c0_i32 = arith.constant 0 : i32
    %c0_i32_0 = arith.constant 0 : i32
    return %arg0, %c0_i32 : i32, i32
  }
  func.func @transform_8(%arg0: i32) -> (i32, i32) {
    %c0_i32 = arith.constant 0 : i32
    %c0_i32_0 = arith.constant 0 : i32
    return %c0_i32, %arg0 : i32, i32
  }
  func.func @transform_9(%arg0: i32) -> (i32, i32) {
    %c0_i32 = arith.constant 0 : i32
    %c0_i32_0 = arith.constant 0 : i32
    %c0_i32_1 = arith.constant 0 : i32
    return %c0_i32, %c0_i32_0 : i32, i32
  }
  func.func @transform_10(%arg0: i32) -> (i32, i32) {
    %c0_i32 = arith.constant 0 : i32
    %c0_i32_0 = arith.constant 0 : i32
    %c0_i32_1 = arith.constant 0 : i32
    return %c0_i32, %c0_i32_0 : i32, i32
  }
  func.func @transform_11(%arg0: i32) -> (i32, i32) {
    %c0_i32 = arith.constant 0 : i32
    %c0_i32_0 = arith.constant 0 : i32
    %c0_i32_1 = arith.constant 0 : i32
    return %c0_i32, %c0_i32_0 : i32, i32
  }
  func.func @transform_12(%arg0: i32) -> (i32, i32) {
    %c0_i32 = arith.constant 0 : i32
    %c0_i32_0 = arith.constant 0 : i32
    %c0_i32_1 = arith.constant 0 : i32
    return %c0_i32, %c0_i32_0 : i32, i32
  }
  func.func @transform_13(%arg0: i32) -> (i32, i32) {
    %c0_i32 = arith.constant 0 : i32
    %c0_i32_0 = arith.constant 0 : i32
    %c0_i32_1 = arith.constant 0 : i32
    return %c0_i32, %c0_i32_0 : i32, i32
  }
  func.func @transform_14(%arg0: i32) -> (i32, i32) {
    %c0_i32 = arith.constant 0 : i32
    %c0_i32_0 = arith.constant 0 : i32
    %c0_i32_1 = arith.constant 0 : i32
    return %c0_i32, %c0_i32_0 : i32, i32
  }
  func.func @transform_15(%arg0: i32) -> (i32, i32) {
    %c0_i32 = arith.constant 0 : i32
    %c0_i32_0 = arith.constant 0 : i32
    %c0_i32_1 = arith.constant 0 : i32
    return %c0_i32, %c0_i32_0 : i32, i32
  }
  func.func @transform_16(%arg0: i32) -> (i32, i32) {
    %c0_i32 = arith.constant 0 : i32
    %c0_i32_0 = arith.constant 0 : i32
    %c0_i32_1 = arith.constant 0 : i32
    return %c0_i32, %c0_i32_0 : i32, i32
  }
  func.func @transform_17(%arg0: i32) -> (i32, i32) {
    %c0_i32 = arith.constant 0 : i32
    %c0_i32_0 = arith.constant 0 : i32
    %c0_i32_1 = arith.constant 0 : i32
    return %c0_i32, %c0_i32_0 : i32, i32
  }
  func.func @transform_18(%arg0: i32) -> (i32, i32) {
    %c0_i32 = arith.constant 0 : i32
    %c0_i32_0 = arith.constant 0 : i32
    %c0_i32_1 = arith.constant 0 : i32
    return %c0_i32, %c0_i32_0 : i32, i32
  }
  func.func @transform_19(%arg0: i32) -> (i32, i32) {
    %c0_i32 = arith.constant 0 : i32
    %c0_i32_0 = arith.constant 0 : i32
    %c0_i32_1 = arith.constant 0 : i32
    return %c0_i32, %c0_i32_0 : i32, i32
  }
}

module attributes {stable_mosaic.version = 11 : i64} {
  func.func @_gin_layer_kernel(%arg0: i32, %arg1: memref<1x1xf32, #tpu.memory_space<smem>>, %arg2: memref<128x128xf32, #tpu.memory_space<vmem>>, %arg3: memref<128x8xf32, #tpu.memory_space<vmem>>, %arg4: memref<8x128xf32, #tpu.memory_space<vmem>>, %arg5: memref<256x8xf32, #tpu.memory_space<vmem>>, %arg6: memref<8x128xf32, #tpu.memory_space<vmem>>, %arg7: memref<1x128xf32, #tpu.memory_space<vmem>>, %arg8: memref<256x128xf32, #tpu.memory_space<vmem>>, %arg9: memref<128x256xf32, #tpu.memory_space<vmem>>, %arg10: memref<128x256xf32, #tpu.memory_space<vmem>>, %arg11: memref<1x256xf32, #tpu.memory_space<vmem>>, %arg12: memref<256x128xf32, #tpu.memory_space<vmem>>, %arg13: memref<1x128xf32, #tpu.memory_space<vmem>>, %arg14: memref<128x128xf32, #tpu.memory_space<vmem>>, %arg15: memref<128x128xf32, #tpu.memory_space<vmem>>, %arg16: memref<128x128xf32, #tpu.memory_space<vmem>>) attributes {dimension_semantics = [#tpu.dimension_semantics<arbitrary>], iteration_bounds = array<i64: 1>, scalar_prefetch = 0 : i64, scratch_operands = 2 : i64, tpu.core_type = #tpu.core_type<tc>, window_params = [{transform_indices = @transform_0, window_bounds = array<i64: 1, 1>}, {pipeline_mode = #tpu.pipeline_mode<synchronous>, transform_indices = @transform_1, window_bounds = array<i64: 128, 128>}, {pipeline_mode = #tpu.pipeline_mode<synchronous>, transform_indices = @transform_2, window_bounds = array<i64: 128, 8>}, {pipeline_mode = #tpu.pipeline_mode<synchronous>, transform_indices = @transform_3, window_bounds = array<i64: 8, 128>}, {transform_indices = @transform_4, window_bounds = array<i64: 256, 8>}, {pipeline_mode = #tpu.pipeline_mode<synchronous>, transform_indices = @transform_5, window_bounds = array<i64: 8, 128>}, {pipeline_mode = #tpu.pipeline_mode<synchronous>, transform_indices = @transform_6, window_bounds = array<i64: 1, 128>}, {transform_indices = @transform_7, window_bounds = array<i64: 256, 128>}, {transform_indices = @transform_8, window_bounds = array<i64: 128, 256>}, {pipeline_mode = #tpu.pipeline_mode<synchronous>, transform_indices = @transform_9, window_bounds = array<i64: 128, 256>}, {pipeline_mode = #tpu.pipeline_mode<synchronous>, transform_indices = @transform_10, window_bounds = array<i64: 1, 256>}, {pipeline_mode = #tpu.pipeline_mode<synchronous>, transform_indices = @transform_11, window_bounds = array<i64: 256, 128>}, {pipeline_mode = #tpu.pipeline_mode<synchronous>, transform_indices = @transform_12, window_bounds = array<i64: 1, 128>}, {pipeline_mode = #tpu.pipeline_mode<synchronous>, transform_indices = @transform_13, window_bounds = array<i64: 128, 128>}]} {
    %c0_i32 = arith.constant 0 : i32
    %0 = arith.cmpi eq, %arg0, %c0_i32 : i32
    %1 = arith.extui %0 : i1 to i32
    %c0_i32_0 = arith.constant 0 : i32
    %2 = arith.cmpi ne, %1, %c0_i32_0 : i32
    scf.if %2 {
      %c0_21 = arith.constant 0 : index
      %c0_22 = arith.constant 0 : index
      %23 = vector.load %arg3[%c0_21, %c0_22] : memref<128x8xf32, #tpu.memory_space<vmem>>, vector<128x8xf32>
      %c0_23 = arith.constant 0 : index
      %c0_24 = arith.constant 0 : index
      %24 = vector.load %arg4[%c0_23, %c0_24] : memref<8x128xf32, #tpu.memory_space<vmem>>, vector<8x128xf32>
      %cst_25 = arith.constant dense<0.000000e+00> : vector<128x128xf32>
      %25 = tpu.matmul %23, %24, %cst_25 {dimension_numbers = #tpu.dot_dimension_numbers<[1], [0], [0], [1], [0, 0, 1, 1], [], []>} : vector<128x8xf32>, vector<8x128xf32>, vector<128x128xf32> -> vector<128x128xf32>
      %c0_26 = arith.constant 0 : index
      %c0_27 = arith.constant 0 : index
      %26 = vector.load %arg2[%c0_26, %c0_27] : memref<128x128xf32, #tpu.memory_space<vmem>>, vector<128x128xf32>
      %27 = arith.addf %26, %25 : vector<128x128xf32>
      %c0_28 = arith.constant 0 : index
      %c0_29 = arith.constant 0 : index
      %28 = vector.load %arg15[%c0_28, %c0_29] : memref<128x128xf32, #tpu.memory_space<vmem>>, vector<128x128xf32>
      tpu.vector_store %arg15[%c0_28, %c0_29], %27 {strides = array<i32>} : memref<128x128xf32, #tpu.memory_space<vmem>>, vector<128x128xf32>,
      %cst_30 = arith.constant 0.000000e+00 : f32
      %29 = vector.broadcast %cst_30 : f32 to vector<128x128xf32>
      %c0_31 = arith.constant 0 : index
      %c0_32 = arith.constant 0 : index
      %30 = vector.load %arg16[%c0_31, %c0_32] : memref<128x128xf32, #tpu.memory_space<vmem>>, vector<128x128xf32>
      tpu.vector_store %arg16[%c0_31, %c0_32], %29 {strides = array<i32>} : memref<128x128xf32, #tpu.memory_space<vmem>>, vector<128x128xf32>,
    } else {
    }
    %c0 = arith.constant 0 : index
    %c0_1 = arith.constant 0 : index
    %3 = vector.load %arg5[%c0, %c0_1] : memref<256x8xf32, #tpu.memory_space<vmem>>, vector<256x8xf32>
    %c0_2 = arith.constant 0 : index
    %c0_3 = arith.constant 0 : index
    %4 = vector.load %arg6[%c0_2, %c0_3] : memref<8x128xf32, #tpu.memory_space<vmem>>, vector<8x128xf32>
    %cst = arith.constant dense<0.000000e+00> : vector<256x128xf32>
    %5 = tpu.matmul %3, %4, %cst {dimension_numbers = #tpu.dot_dimension_numbers<[1], [0], [0], [1], [0, 0, 1, 1], [], []>} : vector<256x8xf32>, vector<8x128xf32>, vector<256x128xf32> -> vector<256x128xf32>
    %c0_4 = arith.constant 0 : index
    %c0_5 = arith.constant 0 : index
    %6 = vector.load %arg7[%c0_4, %c0_5] : memref<1x128xf32, #tpu.memory_space<vmem>>, vector<1x128xf32>
    %7 = vector.broadcast %6 : vector<1x128xf32> to vector<256x128xf32>
    %8 = arith.addf %5, %7 : vector<256x128xf32>
    %c0_6 = arith.constant 0 : index
    %c0_7 = arith.constant 0 : index
    %9 = vector.load %arg8[%c0_6, %c0_7] : memref<256x128xf32, #tpu.memory_space<vmem>>, vector<256x128xf32>
    %c0_8 = arith.constant 0 : index
    %c0_9 = arith.constant 0 : index
    %10 = vector.load %arg15[%c0_8, %c0_9] : memref<128x128xf32, #tpu.memory_space<vmem>>, vector<128x128xf32>
    %cst_10 = arith.constant dense<0.000000e+00> : vector<256x128xf32>
    %11 = tpu.matmul %9, %10, %cst_10 {dimension_numbers = #tpu.dot_dimension_numbers<[1], [0], [0], [1], [0, 0, 1, 1], [], []>} : vector<256x128xf32>, vector<128x128xf32>, vector<256x128xf32> -> vector<256x128xf32>
    %12 = arith.addf %11, %8 : vector<256x128xf32>
    %cst_11 = arith.constant 0.000000e+00 : f32
    %13 = vector.broadcast %cst_11 : f32 to vector<256x128xf32>
    %14 = arith.maximumf %12, %13 : vector<256x128xf32>
    %c0_12 = arith.constant 0 : index
    %c0_13 = arith.constant 0 : index
    %15 = vector.load %arg16[%c0_12, %c0_13] : memref<128x128xf32, #tpu.memory_space<vmem>>, vector<128x128xf32>
    %c0_14 = arith.constant 0 : index
    %c0_15 = arith.constant 0 : index
    %16 = vector.load %arg9[%c0_14, %c0_15] : memref<128x256xf32, #tpu.memory_space<vmem>>, vector<128x256xf32>
    %cst_16 = arith.constant dense<0.000000e+00> : vector<128x128xf32>
    %17 = tpu.matmul %16, %14, %cst_16 {dimension_numbers = #tpu.dot_dimension_numbers<[1], [0], [0], [1], [0, 0, 1, 1], [], []>} : vector<128x256xf32>, vector<256x128xf32>, vector<128x128xf32> -> vector<128x128xf32>
    %18 = arith.addf %15, %17 : vector<128x128xf32>
    %c0_17 = arith.constant 0 : index
    %c0_18 = arith.constant 0 : index
    %19 = vector.load %arg16[%c0_17, %c0_18] : memref<128x128xf32, #tpu.memory_space<vmem>>, vector<128x128xf32>
    tpu.vector_store %arg16[%c0_17, %c0_18], %18 {strides = array<i32>} : memref<128x128xf32, #tpu.memory_space<vmem>>, vector<128x128xf32>,
    %c0_i32_19 = arith.constant 0 : i32
    %20 = arith.cmpi eq, %arg0, %c0_i32_19 : i32
    %21 = arith.extui %20 : i1 to i32
    %c0_i32_20 = arith.constant 0 : i32
    %22 = arith.cmpi ne, %21, %c0_i32_20 : i32
    scf.if %22 {
      %c0_21 = arith.constant 0 : index
      %c0_22 = arith.constant 0 : index
      %23 = memref.load %arg1[%c0_21, %c0_22] : memref<1x1xf32, #tpu.memory_space<smem>>
      %c0_23 = arith.constant 0 : index
      %c0_24 = arith.constant 0 : index
      %24 = vector.load %arg15[%c0_23, %c0_24] : memref<128x128xf32, #tpu.memory_space<vmem>>, vector<128x128xf32>
      %25 = vector.broadcast %23 : f32 to vector<128x128xf32>
      %26 = arith.mulf %25, %24 : vector<128x128xf32>
      %c0_25 = arith.constant 0 : index
      %c0_26 = arith.constant 0 : index
      %27 = vector.load %arg16[%c0_25, %c0_26] : memref<128x128xf32, #tpu.memory_space<vmem>>, vector<128x128xf32>
      %28 = arith.addf %26, %27 : vector<128x128xf32>
      %c0_27 = arith.constant 0 : index
      %c0_28 = arith.constant 0 : index
      %29 = vector.load %arg10[%c0_27, %c0_28] : memref<128x256xf32, #tpu.memory_space<vmem>>, vector<128x256xf32>
      %cst_29 = arith.constant dense<0.000000e+00> : vector<128x256xf32>
      %30 = tpu.matmul %28, %29, %cst_29 {dimension_numbers = #tpu.dot_dimension_numbers<[1], [0], [0], [1], [0, 0, 1, 1], [], []>} : vector<128x128xf32>, vector<128x256xf32>, vector<128x256xf32> -> vector<128x256xf32>
      %c0_30 = arith.constant 0 : index
      %c0_31 = arith.constant 0 : index
      %31 = vector.load %arg11[%c0_30, %c0_31] : memref<1x256xf32, #tpu.memory_space<vmem>>, vector<1x256xf32>
      %32 = vector.broadcast %31 : vector<1x256xf32> to vector<128x256xf32>
      %33 = arith.addf %30, %32 : vector<128x256xf32>
      %cst_32 = arith.constant 0.000000e+00 : f32
      %34 = vector.broadcast %cst_32 : f32 to vector<128x256xf32>
      %35 = arith.maximumf %33, %34 : vector<128x256xf32>
      %c0_33 = arith.constant 0 : index
      %c0_34 = arith.constant 0 : index
      %36 = vector.load %arg12[%c0_33, %c0_34] : memref<256x128xf32, #tpu.memory_space<vmem>>, vector<256x128xf32>
      %cst_35 = arith.constant dense<0.000000e+00> : vector<128x128xf32>
      %37 = tpu.matmul %35, %36, %cst_35 {dimension_numbers = #tpu.dot_dimension_numbers<[1], [0], [0], [1], [0, 0, 1, 1], [], []>} : vector<128x256xf32>, vector<256x128xf32>, vector<128x128xf32> -> vector<128x128xf32>
      %c0_36 = arith.constant 0 : index
      %c0_37 = arith.constant 0 : index
      %38 = vector.load %arg13[%c0_36, %c0_37] : memref<1x128xf32, #tpu.memory_space<vmem>>, vector<1x128xf32>
      %39 = vector.broadcast %38 : vector<1x128xf32> to vector<128x128xf32>
      %40 = arith.addf %37, %39 : vector<128x128xf32>
      %c0_38 = arith.constant 0 : index
      %c0_39 = arith.constant 0 : index
      %41 = vector.load %arg14[%c0_38, %c0_39] : memref<128x128xf32, #tpu.memory_space<vmem>>, vector<128x128xf32>
      tpu.vector_store %arg14[%c0_38, %c0_39], %40 {strides = array<i32>} : memref<128x128xf32, #tpu.memory_space<vmem>>, vector<128x128xf32>,
    } else {
    }
    return
  }
  func.func @transform_0(%arg0: i32) -> (i32, i32) {
    %c0_i32 = arith.constant 0 : i32
    %c0_i32_0 = arith.constant 0 : i32
    %c0_i32_1 = arith.constant 0 : i32
    return %c0_i32, %c0_i32_0 : i32, i32
  }
  func.func @transform_1(%arg0: i32) -> (i32, i32) {
    %c0_i32 = arith.constant 0 : i32
    %c0_i32_0 = arith.constant 0 : i32
    %c0_i32_1 = arith.constant 0 : i32
    return %c0_i32, %c0_i32_0 : i32, i32
  }
  func.func @transform_2(%arg0: i32) -> (i32, i32) {
    %c0_i32 = arith.constant 0 : i32
    %c0_i32_0 = arith.constant 0 : i32
    %c0_i32_1 = arith.constant 0 : i32
    return %c0_i32, %c0_i32_0 : i32, i32
  }
  func.func @transform_3(%arg0: i32) -> (i32, i32) {
    %c0_i32 = arith.constant 0 : i32
    %c0_i32_0 = arith.constant 0 : i32
    %c0_i32_1 = arith.constant 0 : i32
    return %c0_i32, %c0_i32_0 : i32, i32
  }
  func.func @transform_4(%arg0: i32) -> (i32, i32) {
    %c0_i32 = arith.constant 0 : i32
    %c0_i32_0 = arith.constant 0 : i32
    return %arg0, %c0_i32 : i32, i32
  }
  func.func @transform_5(%arg0: i32) -> (i32, i32) {
    %c0_i32 = arith.constant 0 : i32
    %c0_i32_0 = arith.constant 0 : i32
    %c0_i32_1 = arith.constant 0 : i32
    return %c0_i32, %c0_i32_0 : i32, i32
  }
  func.func @transform_6(%arg0: i32) -> (i32, i32) {
    %c0_i32 = arith.constant 0 : i32
    %c0_i32_0 = arith.constant 0 : i32
    %c0_i32_1 = arith.constant 0 : i32
    return %c0_i32, %c0_i32_0 : i32, i32
  }
  func.func @transform_7(%arg0: i32) -> (i32, i32) {
    %c0_i32 = arith.constant 0 : i32
    %c0_i32_0 = arith.constant 0 : i32
    return %arg0, %c0_i32 : i32, i32
  }
  func.func @transform_8(%arg0: i32) -> (i32, i32) {
    %c0_i32 = arith.constant 0 : i32
    %c0_i32_0 = arith.constant 0 : i32
    return %c0_i32, %arg0 : i32, i32
  }
  func.func @transform_9(%arg0: i32) -> (i32, i32) {
    %c0_i32 = arith.constant 0 : i32
    %c0_i32_0 = arith.constant 0 : i32
    %c0_i32_1 = arith.constant 0 : i32
    return %c0_i32, %c0_i32_0 : i32, i32
  }
  func.func @transform_10(%arg0: i32) -> (i32, i32) {
    %c0_i32 = arith.constant 0 : i32
    %c0_i32_0 = arith.constant 0 : i32
    %c0_i32_1 = arith.constant 0 : i32
    return %c0_i32, %c0_i32_0 : i32, i32
  }
  func.func @transform_11(%arg0: i32) -> (i32, i32) {
    %c0_i32 = arith.constant 0 : i32
    %c0_i32_0 = arith.constant 0 : i32
    %c0_i32_1 = arith.constant 0 : i32
    return %c0_i32, %c0_i32_0 : i32, i32
  }
  func.func @transform_12(%arg0: i32) -> (i32, i32) {
    %c0_i32 = arith.constant 0 : i32
    %c0_i32_0 = arith.constant 0 : i32
    %c0_i32_1 = arith.constant 0 : i32
    return %c0_i32, %c0_i32_0 : i32, i32
  }
  func.func @transform_13(%arg0: i32) -> (i32, i32) {
    %c0_i32 = arith.constant 0 : i32
    %c0_i32_0 = arith.constant 0 : i32
    %c0_i32_1 = arith.constant 0 : i32
    return %c0_i32, %c0_i32_0 : i32, i32
  }
}

</mosaic_0001>

<llo_original>
// kernel: gnn_node_virtualnode_forward.4
$region0: #{gnn_node_virtualnode_forward.4}
  #allocation0 [shape = 'u32[]', space=smem, size = 0x4, offset = 0x4, fixed_abs, tag = 'smem constant byte address 0x4 - core index']
  #allocation1 [shape = 'u32[72,128]{1,0:T(1,128)}', space=vmem, size = 0x9000, scoped, tag = 'internal scratch']
  #allocation2 [shape = 'f32[128,128]{1,0:T(8,128)}', space=vmem, size = 0x10000, scoped, tag = 'scratch operand']
  #allocation3 [shape = 'f32[128,128]{1,0:T(8,128)}', space=vmem, size = 0x10000, scoped, tag = 'scratch operand']
  #allocation4 [shape = 'f32[1,1]{1,0:T(1,128)S(6)}', space=smem, size = 0x200, scoped, tag = 'scoped memory for gnn_node_virtualnode_forward.4']
  %s0 = inlined_call_operand.<no memory space> [shape: f32[1,1], index: 0, kind: input, shape index: {}]
  %s1 = inlined_call_operand.vmem [shape: f32[128,128], index: 1, kind: input, shape index: {}]
  %s2 = inlined_call_operand.vmem [shape: f32[128,8], index: 2, kind: input, shape index: {}]
  %s3 = inlined_call_operand.vmem [shape: f32[8,128], index: 3, kind: input, shape index: {}]
  %s4 = inlined_call_operand.vmem [shape: f32[256,8], index: 4, kind: input, shape index: {}]
  %s5 = inlined_call_operand.vmem [shape: f32[8,128], index: 5, kind: input, shape index: {}]
  %s6 = inlined_call_operand.vmem [shape: f32[1,128], index: 6, kind: input, shape index: {}]
  %s7 = inlined_call_operand.vmem [shape: f32[256,128], index: 7, kind: input, shape index: {}]
  %s8 = inlined_call_operand.vmem [shape: f32[128,256], index: 8, kind: input, shape index: {}]
  %s9 = inlined_call_operand.hbm [shape: f32[128,256], index: 9, kind: input, shape index: {}]
  %s10 = inlined_call_operand.vmem [shape: f32[1,256], index: 10, kind: input, shape index: {}]
  %s11 = inlined_call_operand.hbm [shape: f32[256,128], index: 11, kind: input, shape index: {}]
  %s12 = inlined_call_operand.vmem [shape: f32[1,128], index: 12, kind: input, shape index: {}]
  %s13 = inlined_call_operand.vmem [shape: f32[8,128], index: 13, kind: input, shape index: {}]
  %s14 = inlined_call_operand.hbm [shape: f32[128,256], index: 14, kind: input, shape index: {}]
  %s15 = inlined_call_operand.vmem [shape: f32[1,256], index: 15, kind: input, shape index: {}]
  %s16 = inlined_call_operand.hbm [shape: f32[256,128], index: 16, kind: input, shape index: {}]
  %s17 = inlined_call_operand.vmem [shape: f32[1,128], index: 17, kind: input, shape index: {}]
  %s18 = inlined_call_operand.vmem [shape: f32[128,128], index: 18, kind: output, shape index: {0}]
  %s19 = inlined_call_operand.vmem [shape: f32[8,128], index: 19, kind: output, shape index: {1}]
  %20 = xla_tuple %s18, %s19
  %s21 = sld [smem:[#allocation0]]
  $region114: #{gnn_node_virtualnode_forward.4} parent=0
    _
  %s23 = ssub.s32 1, %s21
  %s24 = scalar_select 0, %s23, %s21
  %25 = sst [smem:[#allocation4]] %s0
  $region1: #{gnn_node_virtualnode_forward.4} parent=0
    #allocation5 [shape = 'u8[131072]{0}', space=vmem, size = 0x20000, scoped, tag = 'input window, operand 9, single buffered']
    #allocation6 [shape = 's32[1]{0}', space=sflag, size = 0x4, scoped, tag = 'scoped memory for gnn_node_virtualnode_forward.4']
    #allocation7 [shape = 'u8[131072]{0}', space=vmem, size = 0x20000, scoped, tag = 'input window, operand 11, single buffered']
    #allocation8 [shape = 's32[1]{0}', space=sflag, size = 0x4, scoped, tag = 'scoped memory for gnn_node_virtualnode_forward.4']
    #allocation9 [shape = 'u8[131072]{0}', space=vmem, size = 0x20000, scoped, tag = 'input window, operand 14, single buffered']
    #allocation10 [shape = 'u8[131072]{0}', space=vmem, size = 0x20000, scoped, tag = 'input window, operand 16, single buffered']
    #allocation11 [shape = 's32[1]{0}', space=sflag, size = 0x4, scoped, tag = 'scoped memory for gnn_node_virtualnode_forward.4']
    %26 = vsyncpa [#allocation6], 0
    %27 = vsyncpa [#allocation8], 0
    %28 = vsyncpa [#allocation11], 0
    // Predicated region
    $region2: #{gnn_node_virtualnode_forward.4} parent=1 // pred_check
      _
    $region3: #{gnn_node_virtualnode_forward.4} parent=1 // pred_check_branch
      %30 = sbr.rel (0) target = $region5
    $region4: #{gnn_node_virtualnode_forward.4} parent=1 // pred_region
      _
    $region5: #{gnn_node_virtualnode_forward.4} parent=1 // pred_fallthru
      _
    // Predicated region
    $region6: #{gnn_node_virtualnode_forward.4} parent=1 // pred_check
      _
    $region7: #{gnn_node_virtualnode_forward.4} parent=1 // pred_check_branch
      %32 = sbr.rel (0) target = $region9
    $region8: #{gnn_node_virtualnode_forward.4} parent=1 // pred_region
      _
    $region9: #{gnn_node_virtualnode_forward.4} parent=1 // pred_fallthru
      _
    // Predicated region
    $region10: #{gnn_node_virtualnode_forward.4} parent=1 // pred_check
      _
    $region11: #{gnn_node_virtualnode_forward.4} parent=1 // pred_check_branch
      %34 = sbr.rel (0) target = $region13
    $region12: #{gnn_node_virtualnode_forward.4} parent=1 // pred_region
      _
    $region13: #{gnn_node_virtualnode_forward.4} parent=1 // pred_fallthru
      _
    // Predicated region
    $region14: #{gnn_node_virtualnode_forward.4} parent=1 // pred_check
      _
    $region15: #{gnn_node_virtualnode_forward.4} parent=1 // pred_check_branch
      %36 = sbr.rel (0) target = $region17
    $region16: #{gnn_node_virtualnode_forward.4} parent=1 // pred_region
      _
    $region17: #{gnn_node_virtualnode_forward.4} parent=1 // pred_fallthru
      _
    // Predicated region
    $region18: #{gnn_node_virtualnode_forward.4} parent=1 // pred_check
      _
    $region19: #{gnn_node_virtualnode_forward.4} parent=1 // pred_check_branch
      %38 = sbr.rel (0) target = $region21
    $region20: #{gnn_node_virtualnode_forward.4} parent=1 // pred_region
      _
    $region21: #{gnn_node_virtualnode_forward.4} parent=1 // pred_fallthru
      _
    // Predicated region
    $region22: #{gnn_node_virtualnode_forward.4} parent=1 // pred_check
      _
    $region23: #{gnn_node_virtualnode_forward.4} parent=1 // pred_check_branch
      %40 = sbr.rel (0) target = $region25
    $region24: #{gnn_node_virtualnode_forward.4} parent=1 // pred_region
      _
    $region25: #{gnn_node_virtualnode_forward.4} parent=1 // pred_fallthru
      _
    // Predicated region
    $region26: #{gnn_node_virtualnode_forward.4} parent=1 // pred_check
      _
    $region27: #{gnn_node_virtualnode_forward.4} parent=1 // pred_check_branch
      %42 = sbr.rel (0) target = $region29
    $region28: #{gnn_node_virtualnode_forward.4} parent=1 // pred_region
      _
    $region29: #{gnn_node_virtualnode_forward.4} parent=1 // pred_fallthru
      _
    // Predicated region
    $region30: #{gnn_node_virtualnode_forward.4} parent=1 // pred_check
      _
    $region31: #{gnn_node_virtualnode_forward.4} parent=1 // pred_check_branch
      %44 = sbr.rel (0) target = $region33
    $region32: #{gnn_node_virtualnode_forward.4} parent=1 // pred_region
      _
    $region33: #{gnn_node_virtualnode_forward.4} parent=1 // pred_fallthru
      _
    // Predicated region
    $region34: #{gnn_node_virtualnode_forward.4} parent=1 // pred_check
      _
    $region35: #{gnn_node_virtualnode_forward.4} parent=1 // pred_check_branch
      %46 = sbr.rel (0) target = $region37
    $region36: #{gnn_node_virtualnode_forward.4} parent=1 // pred_region
      _
    $region37: #{gnn_node_virtualnode_forward.4} parent=1 // pred_fallthru
      _
    // Predicated region
    $region38: #{gnn_node_virtualnode_forward.4} parent=1 // pred_check
      _
    $region39: #{gnn_node_virtualnode_forward.4} parent=1 // pred_check_branch
      %48 = sbr.rel (0) target = $region41
    $region40: #{gnn_node_virtualnode_forward.4} parent=1 // pred_region
      %50 = vsyncadd [#allocation6], 0
      %s51 = sshll.u32 %s9, 4
      %s52 = int_to_ptr.hbm [resolvable:$true] %s51
      %s53 = sshll.u32 [#allocation5], 4
      %s54 = int_to_ptr.vmem [resolvable:$true] %s53
      %59 = dma.hbm_to_vmem [thread:$0]  %s52, 4096, %s54, [#allocation6], 256, 256, 16
    $region41: #{gnn_node_virtualnode_forward.4} parent=1 // pred_fallthru
      _
    // Predicated region
    $region42: #{gnn_node_virtualnode_forward.4} parent=1 // pred_check
      _
    $region43: #{gnn_node_virtualnode_forward.4} parent=1 // pred_check_branch
      %61 = sbr.rel (0) target = $region45
    $region44: #{gnn_node_virtualnode_forward.4} parent=1 // pred_region
      _
    $region45: #{gnn_node_virtualnode_forward.4} parent=1 // pred_fallthru
      _
    // Predicated region
    $region46: #{gnn_node_virtualnode_forward.4} parent=1 // pred_check
      _
    $region47: #{gnn_node_virtualnode_forward.4} parent=1 // pred_check_branch
      %63 = sbr.rel (0) target = $region49
    $region48: #{gnn_node_virtualnode_forward.4} parent=1 // pred_region
      %65 = vsyncadd [#allocation8], 0
      %s66 = sshll.u32 %s11, 4
      %s67 = int_to_ptr.hbm [resolvable:$true] %s66
      %s68 = sshll.u32 [#allocation7], 4
      %s69 = int_to_ptr.vmem [resolvable:$true] %s68
      %74 = dma.hbm_to_vmem [thread:$0]  %s67, 4096, %s69, [#allocation8], 128, 128, 8
    $region49: #{gnn_node_virtualnode_forward.4} parent=1 // pred_fallthru
      _
    // Predicated region
    $region50: #{gnn_node_virtualnode_forward.4} parent=1 // pred_check
      _
    $region51: #{gnn_node_virtualnode_forward.4} parent=1 // pred_check_branch
      %76 = sbr.rel (0) target = $region53
    $region52: #{gnn_node_virtualnode_forward.4} parent=1 // pred_region
      _
    $region53: #{gnn_node_virtualnode_forward.4} parent=1 // pred_fallthru
      _
    // Predicated region
    $region54: #{gnn_node_virtualnode_forward.4} parent=1 // pred_check
      _
    $region55: #{gnn_node_virtualnode_forward.4} parent=1 // pred_check_branch
      %78 = sbr.rel (0) target = $region57
    $region56: #{gnn_node_virtualnode_forward.4} parent=1 // pred_region
      _
    $region57: #{gnn_node_virtualnode_forward.4} parent=1 // pred_fallthru
      _
    // Predicated region
    $region58: #{gnn_node_virtualnode_forward.4} parent=1 // pred_check
      _
    $region59: #{gnn_node_virtualnode_forward.4} parent=1 // pred_check_branch
      %80 = sbr.rel (0) target = $region61
    $region60: #{gnn_node_virtualnode_forward.4} parent=1 // pred_region
      %82 = vsyncadd [#allocation8], 0
      %s83 = sshll.u32 %s14, 4
      %s84 = int_to_ptr.hbm [resolvable:$true] %s83
      %s85 = sshll.u32 [#allocation9], 4
      %s86 = int_to_ptr.vmem [resolvable:$true] %s85
      %91 = dma.hbm_to_vmem [thread:$0]  %s84, 4096, %s86, [#allocation8], 256, 256, 16
    $region61: #{gnn_node_virtualnode_forward.4} parent=1 // pred_fallthru
      _
    // Predicated region
    $region62: #{gnn_node_virtualnode_forward.4} parent=1 // pred_check
      _
    $region63: #{gnn_node_virtualnode_forward.4} parent=1 // pred_check_branch
      %93 = sbr.rel (0) target = $region65
    $region64: #{gnn_node_virtualnode_forward.4} parent=1 // pred_region
      _
    $region65: #{gnn_node_virtualnode_forward.4} parent=1 // pred_fallthru
      _
    // Predicated region
    $region66: #{gnn_node_virtualnode_forward.4} parent=1 // pred_check
      _
    $region67: #{gnn_node_virtualnode_forward.4} parent=1 // pred_check_branch
      %95 = sbr.rel (0) target = $region69
    $region68: #{gnn_node_virtualnode_forward.4} parent=1 // pred_region
      %97 = vsyncadd [#allocation11], 0
      %s98 = sshll.u32 %s16, 4
      %s99 = int_to_ptr.hbm [resolvable:$true] %s98
      %s100 = sshll.u32 [#allocation10], 4
      %s101 = int_to_ptr.vmem [resolvable:$true] %s100
      %106 = dma.hbm_to_vmem [thread:$0]  %s99, 4096, %s101, [#allocation11], 128, 128, 8
    $region69: #{gnn_node_virtualnode_forward.4} parent=1 // pred_fallthru
      _
    // Predicated region
    $region70: #{gnn_node_virtualnode_forward.4} parent=1 // pred_check
      _
    $region71: #{gnn_node_virtualnode_forward.4} parent=1 // pred_check_branch
      %108 = sbr.rel (0) target = $region73
    $region72: #{gnn_node_virtualnode_forward.4} parent=1 // pred_region
      _
    $region73: #{gnn_node_virtualnode_forward.4} parent=1 // pred_fallthru
      _
    // Predicated region
    $region74: #{gnn_node_virtualnode_forward.4} parent=1 // pred_check
      _
    $region75: #{gnn_node_virtualnode_forward.4} parent=1 // pred_check_branch
      %110 = sbr.rel (0) target = $region77
    $region76: #{gnn_node_virtualnode_forward.4} parent=1 // pred_region
      %112 = dma.done [#allocation6], 4096
    $region77: #{gnn_node_virtualnode_forward.4} parent=1 // pred_fallthru
      _
    // Predicated region
    $region78: #{gnn_node_virtualnode_forward.4} parent=1 // pred_check
      _
    $region79: #{gnn_node_virtualnode_forward.4} parent=1 // pred_check_branch
      %114 = sbr.rel (0) target = $region81
    $region80: #{gnn_node_virtualnode_forward.4} parent=1 // pred_region
      %116 = dma.done [#allocation8], 4096
    $region81: #{gnn_node_virtualnode_forward.4} parent=1 // pred_fallthru
      _
    // Predicated region
    $region82: #{gnn_node_virtualnode_forward.4} parent=1 // pred_check
      _
    $region83: #{gnn_node_virtualnode_forward.4} parent=1 // pred_check_branch
      %118 = sbr.rel (0) target = $region85
    $region84: #{gnn_node_virtualnode_forward.4} parent=1 // pred_region
      %120 = dma.done [#allocation8], 4096
    $region85: #{gnn_node_virtualnode_forward.4} parent=1 // pred_fallthru
      _
    // Predicated region
    $region86: #{gnn_node_virtualnode_forward.4} parent=1 // pred_check
      _
    $region87: #{gnn_node_virtualnode_forward.4} parent=1 // pred_check_branch
      %122 = sbr.rel (0) target = $region89
    $region88: #{gnn_node_virtualnode_forward.4} parent=1 // pred_region
      %124 = dma.done [#allocation11], 4096
    $region89: #{gnn_node_virtualnode_forward.4} parent=1 // pred_fallthru
      _
    %p125 = scmp.eq.s32.totalorder 0, 0
    // Predicated region
    $region90: #{gnn_node_virtualnode_forward.4} parent=1 // pred_check
      %p126 = pneg %p125
    $region91: #{gnn_node_virtualnode_forward.4} parent=1 // pred_check_branch
      %128 = sbr.rel (%p126) target = $region93
    $region92: #{gnn_node_virtualnode_forward.4} parent=1 // pred_region
      %v129 = vld [vmem:[%s2] sm:$0xff]
      %v130 = vld [vmem:[%s2 + $0x8] sm:$0xff]
      %v131 = vld [vmem:[%s2 + $0x10] sm:$0xff]
      %v132 = vld [vmem:[%s2 + $0x18] sm:$0xff]
      %v133 = vld [vmem:[%s2 + $0x20] sm:$0xff]
      %v134 = vld [vmem:[%s2 + $0x28] sm:$0xff]
      %v135 = vld [vmem:[%s2 + $0x30] sm:$0xff]
      %v136 = vld [vmem:[%s2 + $0x38] sm:$0xff]
      %v137 = vld [vmem:[%s2 + $0x40] sm:$0xff]
      %v138 = vld [vmem:[%s2 + $0x48] sm:$0xff]
      %v139 = vld [vmem:[%s2 + $0x50] sm:$0xff]
      %v140 = vld [vmem:[%s2 + $0x58] sm:$0xff]
      %v141 = vld [vmem:[%s2 + $0x60] sm:$0xff]
      %v142 = vld [vmem:[%s2 + $0x68] sm:$0xff]
      %v143 = vld [vmem:[%s2 + $0x70] sm:$0xff]
      %v144 = vld [vmem:[%s2 + $0x78] sm:$0xff]
      %v145 = vld [vmem:[%s3] sm:$0xff]
      %vm146 = vcmask 64512
      %v148 = vsel %vm146, %v129, 0
      %v151 = vsel %vm146, %v130, 0
      %v154 = vsel %vm146, %v131, 0
      %v157 = vsel %vm146, %v132, 0
      %v160 = vsel %vm146, %v133, 0
      %v163 = vsel %vm146, %v134, 0
      %v166 = vsel %vm146, %v135, 0
      %v169 = vsel %vm146, %v136, 0
      %v172 = vsel %vm146, %v137, 0
      %v175 = vsel %vm146, %v138, 0
      %v178 = vsel %vm146, %v139, 0
      %v181 = vsel %vm146, %v140, 0
      %v184 = vsel %vm146, %v141, 0
      %v187 = vsel %vm146, %v142, 0
      %v190 = vsel %vm146, %v143, 0
      %v193 = vsel %vm146, %v144, 0
      %195 = vmatpush.msra.mxu0 0.0
      %196 = vmatpush.msra.mxu0 0.0
      %197 = vmatpush.msra.mxu0 0.0
      %198 = vmatpush.msra.mxu0 0.0
      %199 = vmatpush.msra.mxu0 0.0
      %200 = vmatpush.msra.mxu0 0.0
      %201 = vmatpush.msra.mxu0 0.0
      %202 = vmatpush.msra.mxu0 0.0
      %203 = vmatpush.msra.mxu0 0.0
      %204 = vmatpush.msra.mxu0 0.0
      %205 = vmatpush.msra.mxu0 0.0
      %206 = vmatpush.msra.mxu0 0.0
      %207 = vmatpush.msra.mxu0 0.0
      %208 = vmatpush.msra.mxu0 0.0
      %209 = vmatpush.msra.mxu0 0.0
      %210 = vmatpush.msra.mxu0 %v145
      %211 = vmatmul.f32.gmra.mxu0 %v148
      %v212 = vpop.f32.mrf.mxu0
      %v213 = vadd.f32 0.0, %v212
      %214 = vmatmul.f32.gmra.mxu0 %v151
      %v215 = vpop.f32.mrf.mxu0
      %v216 = vadd.f32 0.0, %v215
      %217 = vmatmul.f32.gmra.mxu0 %v154
      %v218 = vpop.f32.mrf.mxu0
      %v219 = vadd.f32 0.0, %v218
      %220 = vmatmul.f32.gmra.mxu0 %v157
      %v221 = vpop.f32.mrf.mxu0
      %v222 = vadd.f32 0.0, %v221
      %223 = vmatmul.f32.gmra.mxu0 %v160
      %v224 = vpop.f32.mrf.mxu0
      %v225 = vadd.f32 0.0, %v224
      %226 = vmatmul.f32.gmra.mxu0 %v163
      %v227 = vpop.f32.mrf.mxu0
      %v228 = vadd.f32 0.0, %v227
      %229 = vmatmul.f32.gmra.mxu0 %v166
      %v230 = vpop.f32.mrf.mxu0
      %v231 = vadd.f32 0.0, %v230
      %232 = vmatmul.f32.gmra.mxu0 %v169
      %v233 = vpop.f32.mrf.mxu0
      %v234 = vadd.f32 0.0, %v233
      %235 = vmatmul.f32.gmra.mxu0 %v172
      %v236 = vpop.f32.mrf.mxu0
      %v237 = vadd.f32 0.0, %v236
      %238 = vmatmul.f32.gmra.mxu0 %v175
      %v239 = vpop.f32.mrf.mxu0
      %v240 = vadd.f32 0.0, %v239
      %241 = vmatmul.f32.gmra.mxu0 %v178
      %v242 = vpop.f32.mrf.mxu0
      %v243 = vadd.f32 0.0, %v242
      %244 = vmatmul.f32.gmra.mxu0 %v181
      %v245 = vpop.f32.mrf.mxu0
      %v246 = vadd.f32 0.0, %v245
      %247 = vmatmul.f32.gmra.mxu0 %v184
      %v248 = vpop.f32.mrf.mxu0
      %v249 = vadd.f32 0.0, %v248
      %250 = vmatmul.f32.gmra.mxu0 %v187
      %v251 = vpop.f32.mrf.mxu0
      %v252 = vadd.f32 0.0, %v251
      %253 = vmatmul.f32.gmra.mxu0 %v190
      %v254 = vpop.f32.mrf.mxu0
      %v255 = vadd.f32 0.0, %v254
      %256 = vmatmul.f32.gmra.mxu0 %v193
      %v257 = vpop.f32.mrf.mxu0
      %v258 = vadd.f32 0.0, %v257
      %259 = vdwg.mxu0
      %v260 = vld [vmem:[%s1] sm:$0xff]
      %v261 = vld [vmem:[%s1 + $0x8] sm:$0xff]
      %v262 = vld [vmem:[%s1 + $0x10] sm:$0xff]
      %v263 = vld [vmem:[%s1 + $0x18] sm:$0xff]
      %v264 = vld [vmem:[%s1 + $0x20] sm:$0xff]
      %v265 = vld [vmem:[%s1 + $0x28] sm:$0xff]
      %v266 = vld [vmem:[%s1 + $0x30] sm:$0xff]
      %v267 = vld [vmem:[%s1 + $0x38] sm:$0xff]
      %v268 = vld [vmem:[%s1 + $0x40] sm:$0xff]
      %v269 = vld [vmem:[%s1 + $0x48] sm:$0xff]
      %v270 = vld [vmem:[%s1 + $0x50] sm:$0xff]
      %v271 = vld [vmem:[%s1 + $0x58] sm:$0xff]
      %v272 = vld [vmem:[%s1 + $0x60] sm:$0xff]
      %v273 = vld [vmem:[%s1 + $0x68] sm:$0xff]
      %v274 = vld [vmem:[%s1 + $0x70] sm:$0xff]
      %v275 = vld [vmem:[%s1 + $0x78] sm:$0xff]
      %v276 = vadd.f32 %v260, %v213
      %v277 = vadd.f32 %v261, %v216
      %v278 = vadd.f32 %v262, %v219
      %v279 = vadd.f32 %v263, %v222
      %v280 = vadd.f32 %v264, %v225
      %v281 = vadd.f32 %v265, %v228
      %v282 = vadd.f32 %v266, %v231
      %v283 = vadd.f32 %v267, %v234
      %v284 = vadd.f32 %v268, %v237
      %v285 = vadd.f32 %v269, %v240
      %v286 = vadd.f32 %v270, %v243
      %v287 = vadd.f32 %v271, %v246
      %v288 = vadd.f32 %v272, %v249
      %v289 = vadd.f32 %v273, %v252
      %v290 = vadd.f32 %v274, %v255
      %v291 = vadd.f32 %v275, %v258
      %292 = vst [vmem:[#allocation2] sm:$0xff] %v276
      %293 = vst [vmem:[#allocation2 + $0x8] sm:$0xff] %v277
      %294 = vst [vmem:[#allocation2 + $0x10] sm:$0xff] %v278
      %295 = vst [vmem:[#allocation2 + $0x18] sm:$0xff] %v279
      %296 = vst [vmem:[#allocation2 + $0x20] sm:$0xff] %v280
      %297 = vst [vmem:[#allocation2 + $0x28] sm:$0xff] %v281
      %298 = vst [vmem:[#allocation2 + $0x30] sm:$0xff] %v282
      %299 = vst [vmem:[#allocation2 + $0x38] sm:$0xff] %v283
      %300 = vst [vmem:[#allocation2 + $0x40] sm:$0xff] %v284
      %301 = vst [vmem:[#allocation2 + $0x48] sm:$0xff] %v285
      %302 = vst [vmem:[#allocation2 + $0x50] sm:$0xff] %v286
      %303 = vst [vmem:[#allocation2 + $0x58] sm:$0xff] %v287
      %304 = vst [vmem:[#allocation2 + $0x60] sm:$0xff] %v288
      %305 = vst [vmem:[#allocation2 + $0x68] sm:$0xff] %v289
      %306 = vst [vmem:[#allocation2 + $0x70] sm:$0xff] %v290
      %307 = vst [vmem:[#allocation2 + $0x78] sm:$0xff] %v291
      %308 = vst [vmem:[#allocation3] sm:$0xff] 0.0
      %309 = vst [vmem:[#allocation3 + $0x8] sm:$0xff] 0.0
      %310 = vst [vmem:[#allocation3 + $0x10] sm:$0xff] 0.0
      %311 = vst [vmem:[#allocation3 + $0x18] sm:$0xff] 0.0
      %312 = vst [vmem:[#allocation3 + $0x20] sm:$0xff] 0.0
      %313 = vst [vmem:[#allocation3 + $0x28] sm:$0xff] 0.0
      %314 = vst [vmem:[#allocation3 + $0x30] sm:$0xff] 0.0
      %315 = vst [vmem:[#allocation3 + $0x38] sm:$0xff] 0.0
      %316 = vst [vmem:[#allocation3 + $0x40] sm:$0xff] 0.0
      %317 = vst [vmem:[#allocation3 + $0x48] sm:$0xff] 0.0
      %318 = vst [vmem:[#allocation3 + $0x50] sm:$0xff] 0.0
      %319 = vst [vmem:[#allocation3 + $0x58] sm:$0xff] 0.0
      %320 = vst [vmem:[#allocation3 + $0x60] sm:$0xff] 0.0
      %321 = vst [vmem:[#allocation3 + $0x68] sm:$0xff] 0.0
      %322 = vst [vmem:[#allocation3 + $0x70] sm:$0xff] 0.0
      %323 = vst [vmem:[#allocation3 + $0x78] sm:$0xff] 0.0
    $region93: #{gnn_node_virtualnode_forward.4} parent=1 // pred_fallthru
      _
    %v324 = vld [vmem:[%s4] sm:$0xff]
    %v325 = vld [vmem:[%s4 + $0x8] sm:$0xff]
    %v326 = vld [vmem:[%s4 + $0x10] sm:$0xff]
    %v327 = vld [vmem:[%s4 + $0x18] sm:$0xff]
    %v328 = vld [vmem:[%s4 + $0x20] sm:$0xff]
    %v329 = vld [vmem:[%s4 + $0x28] sm:$0xff]
    %v330 = vld [vmem:[%s4 + $0x30] sm:$0xff]
    %v331 = vld [vmem:[%s4 + $0x38] sm:$0xff]
    %v332 = vld [vmem:[%s4 + $0x40] sm:$0xff]
    %v333 = vld [vmem:[%s4 + $0x48] sm:$0xff]
    %v334 = vld [vmem:[%s4 + $0x50] sm:$0xff]
    %v335 = vld [vmem:[%s4 + $0x58] sm:$0xff]
    %v336 = vld [vmem:[%s4 + $0x60] sm:$0xff]
    %v337 = vld [vmem:[%s4 + $0x68] sm:$0xff]
    %v338 = vld [vmem:[%s4 + $0x70] sm:$0xff]
    %v339 = vld [vmem:[%s4 + $0x78] sm:$0xff]
    %v340 = vld [vmem:[%s4 + $0x80] sm:$0xff]
    %v341 = vld [vmem:[%s4 + $0x88] sm:$0xff]
    %v342 = vld [vmem:[%s4 + $0x90] sm:$0xff]
    %v343 = vld [vmem:[%s4 + $0x98] sm:$0xff]
    %v344 = vld [vmem:[%s4 + $0xa0] sm:$0xff]
    %v345 = vld [vmem:[%s4 + $0xa8] sm:$0xff]
    %v346 = vld [vmem:[%s4 + $0xb0] sm:$0xff]
    %v347 = vld [vmem:[%s4 + $0xb8] sm:$0xff]
    %v348 = vld [vmem:[%s4 + $0xc0] sm:$0xff]
    %v349 = vld [vmem:[%s4 + $0xc8] sm:$0xff]
    %v350 = vld [vmem:[%s4 + $0xd0] sm:$0xff]
    %v351 = vld [vmem:[%s4 + $0xd8] sm:$0xff]
    %v352 = vld [vmem:[%s4 + $0xe0] sm:$0xff]
    %v353 = vld [vmem:[%s4 + $0xe8] sm:$0xff]
    %v354 = vld [vmem:[%s4 + $0xf0] sm:$0xff]
    %v355 = vld [vmem:[%s4 + $0xf8] sm:$0xff]
    %v356 = vld [vmem:[%s5] sm:$0xff]
    %v357 = vld [vmem:[%s6] sm:$0x1]
    %v359 = vperm.slane %v357, 0
    %vm361 = vcmask 64512
    %v363 = vsel %vm361, %v324, 0
    %v366 = vsel %vm361, %v325, 0
    %v369 = vsel %vm361, %v326, 0
    %v372 = vsel %vm361, %v327, 0
    %v375 = vsel %vm361, %v328, 0
    %v378 = vsel %vm361, %v329, 0
    %v381 = vsel %vm361, %v330, 0
    %v384 = vsel %vm361, %v331, 0
    %v387 = vsel %vm361, %v332, 0
    %v390 = vsel %vm361, %v333, 0
    %v393 = vsel %vm361, %v334, 0
    %v396 = vsel %vm361, %v335, 0
    %v399 = vsel %vm361, %v336, 0
    %v402 = vsel %vm361, %v337, 0
    %v405 = vsel %vm361, %v338, 0
    %v408 = vsel %vm361, %v339, 0
    %v411 = vsel %vm361, %v340, 0
    %v414 = vsel %vm361, %v341, 0
    %v417 = vsel %vm361, %v342, 0
    %v420 = vsel %vm361, %v343, 0
    %v423 = vsel %vm361, %v344, 0
    %v426 = vsel %vm361, %v345, 0
    %v429 = vsel %vm361, %v346, 0
    %v432 = vsel %vm361, %v347, 0
    %v435 = vsel %vm361, %v348, 0
    %v438 = vsel %vm361, %v349, 0
    %v441 = vsel %vm361, %v350, 0
    %v444 = vsel %vm361, %v351, 0
    %v447 = vsel %vm361, %v352, 0
    %v450 = vsel %vm361, %v353, 0
    %v453 = vsel %vm361, %v354, 0
    %v456 = vsel %vm361, %v355, 0
    %458 = vmatpush.msra.mxu0 0.0
    %459 = vmatpush.msra.mxu0 0.0
    %460 = vmatpush.msra.mxu0 0.0
    %461 = vmatpush.msra.mxu0 0.0
    %462 = vmatpush.msra.mxu0 0.0
    %463 = vmatpush.msra.mxu0 0.0
    %464 = vmatpush.msra.mxu0 0.0
    %465 = vmatpush.msra.mxu0 0.0
    %466 = vmatpush.msra.mxu0 0.0
    %467 = vmatpush.msra.mxu0 0.0
    %468 = vmatpush.msra.mxu0 0.0
    %469 = vmatpush.msra.mxu0 0.0
    %470 = vmatpush.msra.mxu0 0.0
    %471 = vmatpush.msra.mxu0 0.0
    %472 = vmatpush.msra.mxu0 0.0
    %473 = vmatpush.msra.mxu0 %v356
    %474 = vmatmul.f32.gmra.mxu0 %v363
    %v475 = vpop.f32.mrf.mxu0
    %v476 = vadd.f32 %v359, %v475
    %477 = vmatmul.f32.gmra.mxu0 %v366
    %v478 = vpop.f32.mrf.mxu0
    %v479 = vadd.f32 %v359, %v478
    %480 = vmatmul.f32.gmra.mxu0 %v369
    %v481 = vpop.f32.mrf.mxu0
    %v482 = vadd.f32 %v359, %v481
    %483 = vmatmul.f32.gmra.mxu0 %v372
    %v484 = vpop.f32.mrf.mxu0
    %v485 = vadd.f32 %v359, %v484
    %486 = vmatmul.f32.gmra.mxu0 %v375
    %v487 = vpop.f32.mrf.mxu0
    %v488 = vadd.f32 %v359, %v487
    %489 = vmatmul.f32.gmra.mxu0 %v378
    %v490 = vpop.f32.mrf.mxu0
    %v491 = vadd.f32 %v359, %v490
    %492 = vmatmul.f32.gmra.mxu0 %v381
    %v493 = vpop.f32.mrf.mxu0
    %v494 = vadd.f32 %v359, %v493
    %495 = vmatmul.f32.gmra.mxu0 %v384
    %v496 = vpop.f32.mrf.mxu0
    %v497 = vadd.f32 %v359, %v496
    %498 = vmatmul.f32.gmra.mxu0 %v387
    %v499 = vpop.f32.mrf.mxu0
    %v500 = vadd.f32 %v359, %v499
    %501 = vmatmul.f32.gmra.mxu0 %v390
    %v502 = vpop.f32.mrf.mxu0
    %v503 = vadd.f32 %v359, %v502
    %504 = vmatmul.f32.gmra.mxu0 %v393
    %v505 = vpop.f32.mrf.mxu0
    %v506 = vadd.f32 %v359, %v505
    %507 = vmatmul.f32.gmra.mxu0 %v396
    %v508 = vpop.f32.mrf.mxu0
    %v509 = vadd.f32 %v359, %v508
    %510 = vmatmul.f32.gmra.mxu0 %v399
    %v511 = vpop.f32.mrf.mxu0
    %v512 = vadd.f32 %v359, %v511
    %513 = vmatmul.f32.gmra.mxu0 %v402
    %v514 = vpop.f32.mrf.mxu0
    %v515 = vadd.f32 %v359, %v514
    %516 = vmatmul.f32.gmra.mxu0 %v405
    %v517 = vpop.f32.mrf.mxu0
    %v518 = vadd.f32 %v359, %v517
    %519 = vmatmul.f32.gmra.mxu0 %v408
    %v520 = vpop.f32.mrf.mxu0
    %v521 = vadd.f32 %v359, %v520
    %522 = vmatmul.f32.gmra.mxu0 %v411
    %v523 = vpop.f32.mrf.mxu0
    %v524 = vadd.f32 %v359, %v523
    %525 = vmatmul.f32.gmra.mxu0 %v414
    %v526 = vpop.f32.mrf.mxu0
    %v527 = vadd.f32 %v359, %v526
    %528 = vmatmul.f32.gmra.mxu0 %v417
    %v529 = vpop.f32.mrf.mxu0
    %v530 = vadd.f32 %v359, %v529
    %531 = vmatmul.f32.gmra.mxu0 %v420
    %v532 = vpop.f32.mrf.mxu0
    %v533 = vadd.f32 %v359, %v532
    %534 = vmatmul.f32.gmra.mxu0 %v423
    %v535 = vpop.f32.mrf.mxu0
    %v536 = vadd.f32 %v359, %v535
    %537 = vmatmul.f32.gmra.mxu0 %v426
    %v538 = vpop.f32.mrf.mxu0
    %v539 = vadd.f32 %v359, %v538
    %540 = vmatmul.f32.gmra.mxu0 %v429
    %v541 = vpop.f32.mrf.mxu0
    %v542 = vadd.f32 %v359, %v541
    %543 = vmatmul.f32.gmra.mxu0 %v432
    %v544 = vpop.f32.mrf.mxu0
    %v545 = vadd.f32 %v359, %v544
    %546 = vmatmul.f32.gmra.mxu0 %v435
    %v547 = vpop.f32.mrf.mxu0
    %v548 = vadd.f32 %v359, %v547
    %549 = vmatmul.f32.gmra.mxu0 %v438
    %v550 = vpop.f32.mrf.mxu0
    %v551 = vadd.f32 %v359, %v550
    %552 = vmatmul.f32.gmra.mxu0 %v441
    %v553 = vpop.f32.mrf.mxu0
    %v554 = vadd.f32 %v359, %v553
    %555 = vmatmul.f32.gmra.mxu0 %v444
    %v556 = vpop.f32.mrf.mxu0
    %v557 = vadd.f32 %v359, %v556
    %558 = vmatmul.f32.gmra.mxu0 %v447
    %v559 = vpop.f32.mrf.mxu0
    %v560 = vadd.f32 %v359, %v559
    %561 = vmatmul.f32.gmra.mxu0 %v450
    %v562 = vpop.f32.mrf.mxu0
    %v563 = vadd.f32 %v359, %v562
    %564 = vmatmul.f32.gmra.mxu0 %v453
    %v565 = vpop.f32.mrf.mxu0
    %v566 = vadd.f32 %v359, %v565
    %567 = vmatmul.f32.gmra.mxu0 %v456
    %v568 = vpop.f32.mrf.mxu0
    %v569 = vadd.f32 %v359, %v568
    %570 = vdwg.mxu0
    %v571 = vld [vmem:[%s7] sm:$0xff]
    %v572 = vld [vmem:[%s7 + $0x8] sm:$0xff]
    %v573 = vld [vmem:[%s7 + $0x10] sm:$0xff]
    %v574 = vld [vmem:[%s7 + $0x18] sm:$0xff]
    %v575 = vld [vmem:[%s7 + $0x20] sm:$0xff]
    %v576 = vld [vmem:[%s7 + $0x28] sm:$0xff]
    %v577 = vld [vmem:[%s7 + $0x30] sm:$0xff]
    %v578 = vld [vmem:[%s7 + $0x38] sm:$0xff]
    %v579 = vld [vmem:[%s7 + $0x40] sm:$0xff]
    %v580 = vld [vmem:[%s7 + $0x48] sm:$0xff]
    %v581 = vld [vmem:[%s7 + $0x50] sm:$0xff]
    %v582 = vld [vmem:[%s7 + $0x58] sm:$0xff]
    %v583 = vld [vmem:[%s7 + $0x60] sm:$0xff]
    %v584 = vld [vmem:[%s7 + $0x68] sm:$0xff]
    %v585 = vld [vmem:[%s7 + $0x70] sm:$0xff]
    %v586 = vld [vmem:[%s7 + $0x78] sm:$0xff]
    %v587 = vld [vmem:[%s7 + $0x80] sm:$0xff]
    %v588 = vld [vmem:[%s7 + $0x88] sm:$0xff]
    %v589 = vld [vmem:[%s7 + $0x90] sm:$0xff]
    %v590 = vld [vmem:[%s7 + $0x98] sm:$0xff]
    %v591 = vld [vmem:[%s7 + $0xa0] sm:$0xff]
    %v592 = vld [vmem:[%s7 + $0xa8] sm:$0xff]
    %v593 = vld [vmem:[%s7 + $0xb0] sm:$0xff]
    %v594 = vld [vmem:[%s7 + $0xb8] sm:$0xff]
    %v595 = vld [vmem:[%s7 + $0xc0] sm:$0xff]
    %v596 = vld [vmem:[%s7 + $0xc8] sm:$0xff]
    %v597 = vld [vmem:[%s7 + $0xd0] sm:$0xff]
    %v598 = vld [vmem:[%s7 + $0xd8] sm:$0xff]
    %v599 = vld [vmem:[%s7 + $0xe0] sm:$0xff]
    %v600 = vld [vmem:[%s7 + $0xe8] sm:$0xff]
    %v601 = vld [vmem:[%s7 + $0xf0] sm:$0xff]
    %v602 = vld [vmem:[%s7 + $0xf8] sm:$0xff]
    %v603 = vld [vmem:[#allocation2] sm:$0xff]
    %v604 = vld [vmem:[#allocation2 + $0x8] sm:$0xff]
    %v605 = vld [vmem:[#allocation2 + $0x10] sm:$0xff]
    %v606 = vld [vmem:[#allocation2 + $0x18] sm:$0xff]
    %v607 = vld [vmem:[#allocation2 + $0x20] sm:$0xff]
    %v608 = vld [vmem:[#allocation2 + $0x28] sm:$0xff]
    %v609 = vld [vmem:[#allocation2 + $0x30] sm:$0xff]
    %v610 = vld [vmem:[#allocation2 + $0x38] sm:$0xff]
    %v611 = vld [vmem:[#allocation2 + $0x40] sm:$0xff]
    %v612 = vld [vmem:[#allocation2 + $0x48] sm:$0xff]
    %v613 = vld [vmem:[#allocation2 + $0x50] sm:$0xff]
    %v614 = vld [vmem:[#allocation2 + $0x58] sm:$0xff]
    %v615 = vld [vmem:[#allocation2 + $0x60] sm:$0xff]
    %v616 = vld [vmem:[#allocation2 + $0x68] sm:$0xff]
    %v617 = vld [vmem:[#allocation2 + $0x70] sm:$0xff]
    %v618 = vld [vmem:[#allocation2 + $0x78] sm:$0xff]
    %619 = vmatpush.msra.mxu0 %v618
    %620 = vmatpush.msra.mxu0 %v617
    %621 = vmatpush.msra.mxu0 %v616
    %622 = vmatpush.msra.mxu0 %v615
    %623 = vmatpush.msra.mxu0 %v614
    %624 = vmatpush.msra.mxu0 %v613
    %625 = vmatpush.msra.mxu0 %v612
    %626 = vmatpush.msra.mxu0 %v611
    %627 = vmatpush.msra.mxu0 %v610
    %628 = vmatpush.msra.mxu0 %v609
    %629 = vmatpush.msra.mxu0 %v608
    %630 = vmatpush.msra.mxu0 %v607
    %631 = vmatpush.msra.mxu0 %v606
    %632 = vmatpush.msra.mxu0 %v605
    %633 = vmatpush.msra.mxu0 %v604
    %634 = vmatpush.msra.mxu0 %v603
    %635 = vmatmul.f32.gmra.mxu0 %v571
    %v636 = vpop.f32.mrf.mxu0
    %v637 = vadd.f32 %v476, %v636
    %638 = vmatmul.f32.gmra.mxu0 %v572
    %v639 = vpop.f32.mrf.mxu0
    %v640 = vadd.f32 %v479, %v639
    %641 = vmatmul.f32.gmra.mxu0 %v573
    %v642 = vpop.f32.mrf.mxu0
    %v643 = vadd.f32 %v482, %v642
    %644 = vmatmul.f32.gmra.mxu0 %v574
    %v645 = vpop.f32.mrf.mxu0
    %v646 = vadd.f32 %v485, %v645
    %647 = vmatmul.f32.gmra.mxu0 %v575
    %v648 = vpop.f32.mrf.mxu0
    %v649 = vadd.f32 %v488, %v648
    %650 = vmatmul.f32.gmra.mxu0 %v576
    %v651 = vpop.f32.mrf.mxu0
    %v652 = vadd.f32 %v491, %v651
    %653 = vmatmul.f32.gmra.mxu0 %v577
    %v654 = vpop.f32.mrf.mxu0
    %v655 = vadd.f32 %v494, %v654
    %656 = vmatmul.f32.gmra.mxu0 %v578
    %v657 = vpop.f32.mrf.mxu0
    %v658 = vadd.f32 %v497, %v657
    %659 = vmatmul.f32.gmra.mxu0 %v579
    %v660 = vpop.f32.mrf.mxu0
    %v661 = vadd.f32 %v500, %v660
    %662 = vmatmul.f32.gmra.mxu0 %v580
    %v663 = vpop.f32.mrf.mxu0
    %v664 = vadd.f32 %v503, %v663
    %665 = vmatmul.f32.gmra.mxu0 %v581
    %v666 = vpop.f32.mrf.mxu0
    %v667 = vadd.f32 %v506, %v666
    %668 = vmatmul.f32.gmra.mxu0 %v582
    %v669 = vpop.f32.mrf.mxu0
    %v670 = vadd.f32 %v509, %v669
    %671 = vmatmul.f32.gmra.mxu0 %v583
    %v672 = vpop.f32.mrf.mxu0
    %v673 = vadd.f32 %v512, %v672
    %674 = vmatmul.f32.gmra.mxu0 %v584
    %v675 = vpop.f32.mrf.mxu0
    %v676 = vadd.f32 %v515, %v675
    %677 = vmatmul.f32.gmra.mxu0 %v585
    %v678 = vpop.f32.mrf.mxu0
    %v679 = vadd.f32 %v518, %v678
    %680 = vmatmul.f32.gmra.mxu0 %v586
    %v681 = vpop.f32.mrf.mxu0
    %v682 = vadd.f32 %v521, %v681
    %683 = vmatmul.f32.gmra.mxu0 %v587
    %v684 = vpop.f32.mrf.mxu0
    %v685 = vadd.f32 %v524, %v684
    %686 = vmatmul.f32.gmra.mxu0 %v588
    %v687 = vpop.f32.mrf.mxu0
    %v688 = vadd.f32 %v527, %v687
    %689 = vmatmul.f32.gmra.mxu0 %v589
    %v690 = vpop.f32.mrf.mxu0
    %v691 = vadd.f32 %v530, %v690
    %692 = vmatmul.f32.gmra.mxu0 %v590
    %v693 = vpop.f32.mrf.mxu0
    %v694 = vadd.f32 %v533, %v693
    %695 = vmatmul.f32.gmra.mxu0 %v591
    %v696 = vpop.f32.mrf.mxu0
    %v697 = vadd.f32 %v536, %v696
    %698 = vmatmul.f32.gmra.mxu0 %v592
    %v699 = vpop.f32.mrf.mxu0
    %v700 = vadd.f32 %v539, %v699
    %701 = vmatmul.f32.gmra.mxu0 %v593
    %v702 = vpop.f32.mrf.mxu0
    %v703 = vadd.f32 %v542, %v702
    %704 = vmatmul.f32.gmra.mxu0 %v594
    %v705 = vpop.f32.mrf.mxu0
    %v706 = vadd.f32 %v545, %v705
    %707 = vmatmul.f32.gmra.mxu0 %v595
    %v708 = vpop.f32.mrf.mxu0
    %v709 = vadd.f32 %v548, %v708
    %710 = vmatmul.f32.gmra.mxu0 %v596
    %v711 = vpop.f32.mrf.mxu0
    %v712 = vadd.f32 %v551, %v711
    %713 = vmatmul.f32.gmra.mxu0 %v597
    %v714 = vpop.f32.mrf.mxu0
    %v715 = vadd.f32 %v554, %v714
    %716 = vmatmul.f32.gmra.mxu0 %v598
    %v717 = vpop.f32.mrf.mxu0
    %v718 = vadd.f32 %v557, %v717
    %719 = vmatmul.f32.gmra.mxu0 %v599
    %v720 = vpop.f32.mrf.mxu0
    %v721 = vadd.f32 %v560, %v720
    %722 = vmatmul.f32.gmra.mxu0 %v600
    %v723 = vpop.f32.mrf.mxu0
    %v724 = vadd.f32 %v563, %v723
    %725 = vmatmul.f32.gmra.mxu0 %v601
    %v726 = vpop.f32.mrf.mxu0
    %v727 = vadd.f32 %v566, %v726
    %728 = vmatmul.f32.gmra.mxu0 %v602
    %v729 = vpop.f32.mrf.mxu0
    %v730 = vadd.f32 %v569, %v729
    %731 = vdwg.mxu0
    %v732 = vmax.f32 %v637, 0.0
    %v733 = vmax.f32 %v640, 0.0
    %v734 = vmax.f32 %v643, 0.0
    %v735 = vmax.f32 %v646, 0.0
    %v736 = vmax.f32 %v649, 0.0
    %v737 = vmax.f32 %v652, 0.0
    %v738 = vmax.f32 %v655, 0.0
    %v739 = vmax.f32 %v658, 0.0
    %v740 = vmax.f32 %v661, 0.0
    %v741 = vmax.f32 %v664, 0.0
    %v742 = vmax.f32 %v667, 0.0
    %v743 = vmax.f32 %v670, 0.0
    %v744 = vmax.f32 %v673, 0.0
    %v745 = vmax.f32 %v676, 0.0
    %v746 = vmax.f32 %v679, 0.0
    %v747 = vmax.f32 %v682, 0.0
    %v748 = vmax.f32 %v685, 0.0
    %v749 = vmax.f32 %v688, 0.0
    %v750 = vmax.f32 %v691, 0.0
    %v751 = vmax.f32 %v694, 0.0
    %v752 = vmax.f32 %v697, 0.0
    %v753 = vmax.f32 %v700, 0.0
    %v754 = vmax.f32 %v703, 0.0
    %v755 = vmax.f32 %v706, 0.0
    %v756 = vmax.f32 %v709, 0.0
    %v757 = vmax.f32 %v712, 0.0
    %v758 = vmax.f32 %v715, 0.0
    %v759 = vmax.f32 %v718, 0.0
    %v760 = vmax.f32 %v721, 0.0
    %v761 = vmax.f32 %v724, 0.0
    %v762 = vmax.f32 %v727, 0.0
    %v763 = vmax.f32 %v730, 0.0
    %v764 = vld [vmem:[#allocation3] sm:$0xff]
    %v765 = vld [vmem:[#allocation3 + $0x8] sm:$0xff]
    %v766 = vld [vmem:[#allocation3 + $0x10] sm:$0xff]
    %v767 = vld [vmem:[#allocation3 + $0x18] sm:$0xff]
    %v768 = vld [vmem:[#allocation3 + $0x20] sm:$0xff]
    %v769 = vld [vmem:[#allocation3 + $0x28] sm:$0xff]
    %v770 = vld [vmem:[#allocation3 + $0x30] sm:$0xff]
    %v771 = vld [vmem:[#allocation3 + $0x38] sm:$0xff]
    %v772 = vld [vmem:[#allocation3 + $0x40] sm:$0xff]
    %v773 = vld [vmem:[#allocation3 + $0x48] sm:$0xff]
    %v774 = vld [vmem:[#allocation3 + $0x50] sm:$0xff]
    %v775 = vld [vmem:[#allocation3 + $0x58] sm:$0xff]
    %v776 = vld [vmem:[#allocation3 + $0x60] sm:$0xff]
    %v777 = vld [vmem:[#allocation3 + $0x68] sm:$0xff]
    %v778 = vld [vmem:[#allocation3 + $0x70] sm:$0xff]
    %v779 = vld [vmem:[#allocation3 + $0x78] sm:$0xff]
    %v780 = vld [vmem:[%s8] sm:$0xff]
    %v781 = vld [vmem:[%s8 + $0x8] sm:$0xff]
    %v782 = vld [vmem:[%s8 + $0x10] sm:$0xff]
    %v783 = vld [vmem:[%s8 + $0x18] sm:$0xff]
    %v784 = vld [vmem:[%s8 + $0x20] sm:$0xff]
    %v785 = vld [vmem:[%s8 + $0x28] sm:$0xff]
    %v786 = vld [vmem:[%s8 + $0x30] sm:$0xff]
    %v787 = vld [vmem:[%s8 + $0x38] sm:$0xff]
    %v788 = vld [vmem:[%s8 + $0x40] sm:$0xff]
    %v789 = vld [vmem:[%s8 + $0x48] sm:$0xff]
    %v790 = vld [vmem:[%s8 + $0x50] sm:$0xff]
    %v791 = vld [vmem:[%s8 + $0x58] sm:$0xff]
    %v792 = vld [vmem:[%s8 + $0x60] sm:$0xff]
    %v793 = vld [vmem:[%s8 + $0x68] sm:$0xff]
    %v794 = vld [vmem:[%s8 + $0x70] sm:$0xff]
    %v795 = vld [vmem:[%s8 + $0x78] sm:$0xff]
    %v796 = vld [vmem:[%s8 + $0x80] sm:$0xff]
    %v797 = vld [vmem:[%s8 + $0x88] sm:$0xff]
    %v798 = vld [vmem:[%s8 + $0x90] sm:$0xff]
    %v799 = vld [vmem:[%s8 + $0x98] sm:$0xff]
    %v800 = vld [vmem:[%s8 + $0xa0] sm:$0xff]
    %v801 = vld [vmem:[%s8 + $0xa8] sm:$0xff]
    %v802 = vld [vmem:[%s8 + $0xb0] sm:$0xff]
    %v803 = vld [vmem:[%s8 + $0xb8] sm:$0xff]
    %v804 = vld [vmem:[%s8 + $0xc0] sm:$0xff]
    %v805 = vld [vmem:[%s8 + $0xc8] sm:$0xff]
    %v806 = vld [vmem:[%s8 + $0xd0] sm:$0xff]
    %v807 = vld [vmem:[%s8 + $0xd8] sm:$0xff]
    %v808 = vld [vmem:[%s8 + $0xe0] sm:$0xff]
    %v809 = vld [vmem:[%s8 + $0xe8] sm:$0xff]
    %v810 = vld [vmem:[%s8 + $0xf0] sm:$0xff]
    %v811 = vld [vmem:[%s8 + $0xf8] sm:$0xff]
    %812 = vmatpush.msra.mxu0 %v747
    %813 = vmatpush.msra.mxu0 %v746
    %814 = vmatpush.msra.mxu0 %v745
    %815 = vmatpush.msra.mxu0 %v744
    %816 = vmatpush.msra.mxu0 %v743
    %817 = vmatpush.msra.mxu0 %v742
    %818 = vmatpush.msra.mxu0 %v741
    %819 = vmatpush.msra.mxu0 %v740
    %820 = vmatpush.msra.mxu0 %v739
    %821 = vmatpush.msra.mxu0 %v738
    %822 = vmatpush.msra.mxu0 %v737
    %823 = vmatpush.msra.mxu0 %v736
    %824 = vmatpush.msra.mxu0 %v735
    %825 = vmatpush.msra.mxu0 %v734
    %826 = vmatpush.msra.mxu0 %v733
    %827 = vmatpush.msra.mxu0 %v732
    %828 = vmatmul.f32.gmra.mxu0 %v780
    %v829 = vpop.f32.mrf.mxu0
    %v830 = vadd.f32 0.0, %v829
    %831 = vmatmul.f32.gmra.mxu0 %v782
    %v832 = vpop.f32.mrf.mxu0
    %v833 = vadd.f32 0.0, %v832
    %834 = vmatmul.f32.gmra.mxu0 %v784
    %v835 = vpop.f32.mrf.mxu0
    %v836 = vadd.f32 0.0, %v835
    %837 = vmatmul.f32.gmra.mxu0 %v786
    %v838 = vpop.f32.mrf.mxu0
    %v839 = vadd.f32 0.0, %v838
    %840 = vmatmul.f32.gmra.mxu0 %v788
    %v841 = vpop.f32.mrf.mxu0
    %v842 = vadd.f32 0.0, %v841
    %843 = vmatmul.f32.gmra.mxu0 %v790
    %v844 = vpop.f32.mrf.mxu0
    %v845 = vadd.f32 0.0, %v844
    %846 = vmatmul.f32.gmra.mxu0 %v792
    %v847 = vpop.f32.mrf.mxu0
    %v848 = vadd.f32 0.0, %v847
    %849 = vmatmul.f32.gmra.mxu0 %v794
    %v850 = vpop.f32.mrf.mxu0
    %v851 = vadd.f32 0.0, %v850
    %852 = vmatmul.f32.gmra.mxu0 %v796
    %v853 = vpop.f32.mrf.mxu0
    %v854 = vadd.f32 0.0, %v853
    %855 = vmatmul.f32.gmra.mxu0 %v798
    %v856 = vpop.f32.mrf.mxu0
    %v857 = vadd.f32 0.0, %v856
    %858 = vmatmul.f32.gmra.mxu0 %v800
    %v859 = vpop.f32.mrf.mxu0
    %v860 = vadd.f32 0.0, %v859
    %861 = vmatmul.f32.gmra.mxu0 %v802
    %v862 = vpop.f32.mrf.mxu0
    %v863 = vadd.f32 0.0, %v862
    %864 = vmatmul.f32.gmra.mxu0 %v804
    %v865 = vpop.f32.mrf.mxu0
    %v866 = vadd.f32 0.0, %v865
    %867 = vmatmul.f32.gmra.mxu0 %v806
    %v868 = vpop.f32.mrf.mxu0
    %v869 = vadd.f32 0.0, %v868
    %870 = vmatmul.f32.gmra.mxu0 %v808
    %v871 = vpop.f32.mrf.mxu0
    %v872 = vadd.f32 0.0, %v871
    %873 = vmatmul.f32.gmra.mxu0 %v810
    %v874 = vpop.f32.mrf.mxu0
    %v875 = vadd.f32 0.0, %v874
    %876 = vdwg.mxu0
    %877 = vmatpush.msra.mxu0 %v763
    %878 = vmatpush.msra.mxu0 %v762
    %879 = vmatpush.msra.mxu0 %v761
    %880 = vmatpush.msra.mxu0 %v760
    %881 = vmatpush.msra.mxu0 %v759
    %882 = vmatpush.msra.mxu0 %v758
    %883 = vmatpush.msra.mxu0 %v757
    %884 = vmatpush.msra.mxu0 %v756
    %885 = vmatpush.msra.mxu0 %v755
    %886 = vmatpush.msra.mxu0 %v754
    %887 = vmatpush.msra.mxu0 %v753
    %888 = vmatpush.msra.mxu0 %v752
    %889 = vmatpush.msra.mxu0 %v751
    %890 = vmatpush.msra.mxu0 %v750
    %891 = vmatpush.msra.mxu0 %v749
    %892 = vmatpush.msra.mxu0 %v748
    %893 = vmatmul.f32.gmra.mxu0 %v781
    %v894 = vpop.f32.mrf.mxu0
    %v895 = vadd.f32 %v830, %v894
    %896 = vmatmul.f32.gmra.mxu0 %v783
    %v897 = vpop.f32.mrf.mxu0
    %v898 = vadd.f32 %v833, %v897
    %899 = vmatmul.f32.gmra.mxu0 %v785
    %v900 = vpop.f32.mrf.mxu0
    %v901 = vadd.f32 %v836, %v900
    %902 = vmatmul.f32.gmra.mxu0 %v787
    %v903 = vpop.f32.mrf.mxu0
    %v904 = vadd.f32 %v839, %v903
    %905 = vmatmul.f32.gmra.mxu0 %v789
    %v906 = vpop.f32.mrf.mxu0
    %v907 = vadd.f32 %v842, %v906
    %908 = vmatmul.f32.gmra.mxu0 %v791
    %v909 = vpop.f32.mrf.mxu0
    %v910 = vadd.f32 %v845, %v909
    %911 = vmatmul.f32.gmra.mxu0 %v793
    %v912 = vpop.f32.mrf.mxu0
    %v913 = vadd.f32 %v848, %v912
    %914 = vmatmul.f32.gmra.mxu0 %v795
    %v915 = vpop.f32.mrf.mxu0
    %v916 = vadd.f32 %v851, %v915
    %917 = vmatmul.f32.gmra.mxu0 %v797
    %v918 = vpop.f32.mrf.mxu0
    %v919 = vadd.f32 %v854, %v918
    %920 = vmatmul.f32.gmra.mxu0 %v799
    %v921 = vpop.f32.mrf.mxu0
    %v922 = vadd.f32 %v857, %v921
    %923 = vmatmul.f32.gmra.mxu0 %v801
    %v924 = vpop.f32.mrf.mxu0
    %v925 = vadd.f32 %v860, %v924
    %926 = vmatmul.f32.gmra.mxu0 %v803
    %v927 = vpop.f32.mrf.mxu0
    %v928 = vadd.f32 %v863, %v927
    %929 = vmatmul.f32.gmra.mxu0 %v805
    %v930 = vpop.f32.mrf.mxu0
    %v931 = vadd.f32 %v866, %v930
    %932 = vmatmul.f32.gmra.mxu0 %v807
    %v933 = vpop.f32.mrf.mxu0
    %v934 = vadd.f32 %v869, %v933
    %935 = vmatmul.f32.gmra.mxu0 %v809
    %v936 = vpop.f32.mrf.mxu0
    %v937 = vadd.f32 %v872, %v936
    %938 = vmatmul.f32.gmra.mxu0 %v811
    %v939 = vpop.f32.mrf.mxu0
    %v940 = vadd.f32 %v875, %v939
    %941 = vdwg.mxu0
    %v942 = vadd.f32 %v764, %v895
    %v943 = vadd.f32 %v765, %v898
    %v944 = vadd.f32 %v766, %v901
    %v945 = vadd.f32 %v767, %v904
    %v946 = vadd.f32 %v768, %v907
    %v947 = vadd.f32 %v769, %v910
    %v948 = vadd.f32 %v770, %v913
    %v949 = vadd.f32 %v771, %v916
    %v950 = vadd.f32 %v772, %v919
    %v951 = vadd.f32 %v773, %v922
    %v952 = vadd.f32 %v774, %v925
    %v953 = vadd.f32 %v775, %v928
    %v954 = vadd.f32 %v776, %v931
    %v955 = vadd.f32 %v777, %v934
    %v956 = vadd.f32 %v778, %v937
    %v957 = vadd.f32 %v779, %v940
    %958 = vst [vmem:[#allocation3] sm:$0xff] %v942
    %959 = vst [vmem:[#allocation3 + $0x8] sm:$0xff] %v943
    %960 = vst [vmem:[#allocation3 + $0x10] sm:$0xff] %v944
    %961 = vst [vmem:[#allocation3 + $0x18] sm:$0xff] %v945
    %962 = vst [vmem:[#allocation3 + $0x20] sm:$0xff] %v946
    %963 = vst [vmem:[#allocation3 + $0x28] sm:$0xff] %v947
    %964 = vst [vmem:[#allocation3 + $0x30] sm:$0xff] %v948
    %965 = vst [vmem:[#allocation3 + $0x38] sm:$0xff] %v949
    %966 = vst [vmem:[#allocation3 + $0x40] sm:$0xff] %v950
    %967 = vst [vmem:[#allocation3 + $0x48] sm:$0xff] %v951
    %968 = vst [vmem:[#allocation3 + $0x50] sm:$0xff] %v952
    %969 = vst [vmem:[#allocation3 + $0x58] sm:$0xff] %v953
    %970 = vst [vmem:[#allocation3 + $0x60] sm:$0xff] %v954
    %971 = vst [vmem:[#allocation3 + $0x68] sm:$0xff] %v955
    %972 = vst [vmem:[#allocation3 + $0x70] sm:$0xff] %v956
    %973 = vst [vmem:[#allocation3 + $0x78] sm:$0xff] %v957
    // Predicated region
    $region94: #{gnn_node_virtualnode_forward.4} parent=1 // pred_check
      %p974 = pneg %p125
    $region95: #{gnn_node_virtualnode_forward.4} parent=1 // pred_check_branch
      %976 = sbr.rel (%p974) target = $region97
    $region96: #{gnn_node_virtualnode_forward.4} parent=1 // pred_region
      %s977 = sld [smem:[#allocation4]]
      %v978 = vld [vmem:[#allocation2] sm:$0xff]
      %v979 = vld [vmem:[#allocation2 + $0x8] sm:$0xff]
      %v980 = vld [vmem:[#allocation2 + $0x10] sm:$0xff]
      %v981 = vld [vmem:[#allocation2 + $0x18] sm:$0xff]
      %v982 = vld [vmem:[#allocation2 + $0x20] sm:$0xff]
      %v983 = vld [vmem:[#allocation2 + $0x28] sm:$0xff]
      %v984 = vld [vmem:[#allocation2 + $0x30] sm:$0xff]
      %v985 = vld [vmem:[#allocation2 + $0x38] sm:$0xff]
      %v986 = vld [vmem:[#allocation2 + $0x40] sm:$0xff]
      %v987 = vld [vmem:[#allocation2 + $0x48] sm:$0xff]
      %v988 = vld [vmem:[#allocation2 + $0x50] sm:$0xff]
      %v989 = vld [vmem:[#allocation2 + $0x58] sm:$0xff]
      %v990 = vld [vmem:[#allocation2 + $0x60] sm:$0xff]
      %v991 = vld [vmem:[#allocation2 + $0x68] sm:$0xff]
      %v992 = vld [vmem:[#allocation2 + $0x70] sm:$0xff]
      %v993 = vld [vmem:[#allocation2 + $0x78] sm:$0xff]
      %v994 = vstv %s977
      %v995 = vmul.f32 %v994, %v978
      %v996 = vmul.f32 %v994, %v979
      %v997 = vmul.f32 %v994, %v980
      %v998 = vmul.f32 %v994, %v981
      %v999 = vmul.f32 %v994, %v982
      %v1000 = vmul.f32 %v994, %v983
      %v1001 = vmul.f32 %v994, %v984
      %v1002 = vmul.f32 %v994, %v985
      %v1003 = vmul.f32 %v994, %v986
      %v1004 = vmul.f32 %v994, %v987
      %v1005 = vmul.f32 %v994, %v988
      %v1006 = vmul.f32 %v994, %v989
      %v1007 = vmul.f32 %v994, %v990
      %v1008 = vmul.f32 %v994, %v991
      %v1009 = vmul.f32 %v994, %v992
      %v1010 = vmul.f32 %v994, %v993
      %v1011 = vld [vmem:[#allocation3] sm:$0xff]
      %v1012 = vld [vmem:[#allocation3 + $0x8] sm:$0xff]
      %v1013 = vld [vmem:[#allocation3 + $0x10] sm:$0xff]
      %v1014 = vld [vmem:[#allocation3 + $0x18] sm:$0xff]
      %v1015 = vld [vmem:[#allocation3 + $0x20] sm:$0xff]
      %v1016 = vld [vmem:[#allocation3 + $0x28] sm:$0xff]
      %v1017 = vld [vmem:[#allocation3 + $0x30] sm:$0xff]
      %v1018 = vld [vmem:[#allocation3 + $0x38] sm:$0xff]
      %v1019 = vld [vmem:[#allocation3 + $0x40] sm:$0xff]
      %v1020 = vld [vmem:[#allocation3 + $0x48] sm:$0xff]
      %v1021 = vld [vmem:[#allocation3 + $0x50] sm:$0xff]
      %v1022 = vld [vmem:[#allocation3 + $0x58] sm:$0xff]
      %v1023 = vld [vmem:[#allocation3 + $0x60] sm:$0xff]
      %v1024 = vld [vmem:[#allocation3 + $0x68] sm:$0xff]
      %v1025 = vld [vmem:[#allocation3 + $0x70] sm:$0xff]
      %v1026 = vld [vmem:[#allocation3 + $0x78] sm:$0xff]
      %v1027 = vadd.f32 %v995, %v1011
      %v1028 = vadd.f32 %v996, %v1012
      %v1029 = vadd.f32 %v997, %v1013
      %v1030 = vadd.f32 %v998, %v1014
      %v1031 = vadd.f32 %v999, %v1015
      %v1032 = vadd.f32 %v1000, %v1016
      %v1033 = vadd.f32 %v1001, %v1017
      %v1034 = vadd.f32 %v1002, %v1018
      %v1035 = vadd.f32 %v1003, %v1019
      %v1036 = vadd.f32 %v1004, %v1020
      %v1037 = vadd.f32 %v1005, %v1021
      %v1038 = vadd.f32 %v1006, %v1022
      %v1039 = vadd.f32 %v1007, %v1023
      %v1040 = vadd.f32 %v1008, %v1024
      %v1041 = vadd.f32 %v1009, %v1025
      %v1042 = vadd.f32 %v1010, %v1026
      %v1043 = vld [vmem:[#allocation5] sm:$0xff]
      %v1044 = vld [vmem:[#allocation5 + $0x8] sm:$0xff]
      %v1045 = vld [vmem:[#allocation5 + $0x10] sm:$0xff]
      %v1046 = vld [vmem:[#allocation5 + $0x18] sm:$0xff]
      %v1047 = vld [vmem:[#allocation5 + $0x20] sm:$0xff]
      %v1048 = vld [vmem:[#allocation5 + $0x28] sm:$0xff]
      %v1049 = vld [vmem:[#allocation5 + $0x30] sm:$0xff]
      %v1050 = vld [vmem:[#allocation5 + $0x38] sm:$0xff]
      %v1051 = vld [vmem:[#allocation5 + $0x40] sm:$0xff]
      %v1052 = vld [vmem:[#allocation5 + $0x48] sm:$0xff]
      %v1053 = vld [vmem:[#allocation5 + $0x50] sm:$0xff]
      %v1054 = vld [vmem:[#allocation5 + $0x58] sm:$0xff]
      %v1055 = vld [vmem:[#allocation5 + $0x60] sm:$0xff]
      %v1056 = vld [vmem:[#allocation5 + $0x68] sm:$0xff]
      %v1057 = vld [vmem:[#allocation5 + $0x70] sm:$0xff]
      %v1058 = vld [vmem:[#allocation5 + $0x78] sm:$0xff]
      %v1059 = vld [vmem:[#allocation5 + $0x80] sm:$0xff]
      %v1060 = vld [vmem:[#allocation5 + $0x88] sm:$0xff]
      %v1061 = vld [vmem:[#allocation5 + $0x90] sm:$0xff]
      %v1062 = vld [vmem:[#allocation5 + $0x98] sm:$0xff]
      %v1063 = vld [vmem:[#allocation5 + $0xa0] sm:$0xff]
      %v1064 = vld [vmem:[#allocation5 + $0xa8] sm:$0xff]
      %v1065 = vld [vmem:[#allocation5 + $0xb0] sm:$0xff]
      %v1066 = vld [vmem:[#allocation5 + $0xb8] sm:$0xff]
      %v1067 = vld [vmem:[#allocation5 + $0xc0] sm:$0xff]
      %v1068 = vld [vmem:[#allocation5 + $0xc8] sm:$0xff]
      %v1069 = vld [vmem:[#allocation5 + $0xd0] sm:$0xff]
      %v1070 = vld [vmem:[#allocation5 + $0xd8] sm:$0xff]
      %v1071 = vld [vmem:[#allocation5 + $0xe0] sm:$0xff]
      %v1072 = vld [vmem:[#allocation5 + $0xe8] sm:$0xff]
      %v1073 = vld [vmem:[#allocation5 + $0xf0] sm:$0xff]
      %v1074 = vld [vmem:[#allocation5 + $0xf8] sm:$0xff]
      %v1075 = vld [vmem:[%s10] sm:$0x3]
      %v1077 = vperm.slane %v1075, 0
      %v1078 = vperm.slane %v1075, 1
      %1081 = vmatpush.msra.mxu0 %v1073
      %1082 = vmatpush.msra.mxu0 %v1071
      %1083 = vmatpush.msra.mxu0 %v1069
      %1084 = vmatpush.msra.mxu0 %v1067
      %1085 = vmatpush.msra.mxu0 %v1065
      %1086 = vmatpush.msra.mxu0 %v1063
      %1087 = vmatpush.msra.mxu0 %v1061
      %1088 = vmatpush.msra.mxu0 %v1059
      %1089 = vmatpush.msra.mxu0 %v1057
      %1090 = vmatpush.msra.mxu0 %v1055
      %1091 = vmatpush.msra.mxu0 %v1053
      %1092 = vmatpush.msra.mxu0 %v1051
      %1093 = vmatpush.msra.mxu0 %v1049
      %1094 = vmatpush.msra.mxu0 %v1047
      %1095 = vmatpush.msra.mxu0 %v1045
      %1096 = vmatpush.msra.mxu0 %v1043
      %1097 = vmatmul.f32.gmra.mxu0 %v1027
      %v1098 = vpop.f32.mrf.mxu0
      %v1099 = vadd.f32 %v1077, %v1098
      %1100 = vmatmul.f32.gmra.mxu0 %v1028
      %v1101 = vpop.f32.mrf.mxu0
      %v1102 = vadd.f32 %v1077, %v1101
      %1103 = vmatmul.f32.gmra.mxu0 %v1029
      %v1104 = vpop.f32.mrf.mxu0
      %v1105 = vadd.f32 %v1077, %v1104
      %1106 = vmatmul.f32.gmra.mxu0 %v1030
      %v1107 = vpop.f32.mrf.mxu0
      %v1108 = vadd.f32 %v1077, %v1107
      %1109 = vmatmul.f32.gmra.mxu0 %v1031
      %v1110 = vpop.f32.mrf.mxu0
      %v1111 = vadd.f32 %v1077, %v1110
      %1112 = vmatmul.f32.gmra.mxu0 %v1032
      %v1113 = vpop.f32.mrf.mxu0
      %v1114 = vadd.f32 %v1077, %v1113
      %1115 = vmatmul.f32.gmra.mxu0 %v1033
      %v1116 = vpop.f32.mrf.mxu0
      %v1117 = vadd.f32 %v1077, %v1116
      %1118 = vmatmul.f32.gmra.mxu0 %v1034
      %v1119 = vpop.f32.mrf.mxu0
      %v1120 = vadd.f32 %v1077, %v1119
      %1121 = vmatmul.f32.gmra.mxu0 %v1035
      %v1122 = vpop.f32.mrf.mxu0
      %v1123 = vadd.f32 %v1077, %v1122
      %1124 = vmatmul.f32.gmra.mxu0 %v1036
      %v1125 = vpop.f32.mrf.mxu0
      %v1126 = vadd.f32 %v1077, %v1125
      %1127 = vmatmul.f32.gmra.mxu0 %v1037
      %v1128 = vpop.f32.mrf.mxu0
      %v1129 = vadd.f32 %v1077, %v1128
      %1130 = vmatmul.f32.gmra.mxu0 %v1038
      %v1131 = vpop.f32.mrf.mxu0
      %v1132 = vadd.f32 %v1077, %v1131
      %1133 = vmatmul.f32.gmra.mxu0 %v1039
      %v1134 = vpop.f32.mrf.mxu0
      %v1135 = vadd.f32 %v1077, %v1134
      %1136 = vmatmul.f32.gmra.mxu0 %v1040
      %v1137 = vpop.f32.mrf.mxu0
      %v1138 = vadd.f32 %v1077, %v1137
      %1139 = vmatmul.f32.gmra.mxu0 %v1041
      %v1140 = vpop.f32.mrf.mxu0
      %v1141 = vadd.f32 %v1077, %v1140
      %1142 = vmatmul.f32.gmra.mxu0 %v1042
      %v1143 = vpop.f32.mrf.mxu0
      %v1144 = vadd.f32 %v1077, %v1143
      %1145 = vdwg.mxu0
      %1146 = vmatpush.msra.mxu0 %v1074
      %1147 = vmatpush.msra.mxu0 %v1072
      %1148 = vmatpush.msra.mxu0 %v1070
      %1149 = vmatpush.msra.mxu0 %v1068
      %1150 = vmatpush.msra.mxu0 %v1066
      %1151 = vmatpush.msra.mxu0 %v1064
      %1152 = vmatpush.msra.mxu0 %v1062
      %1153 = vmatpush.msra.mxu0 %v1060
      %1154 = vmatpush.msra.mxu0 %v1058
      %1155 = vmatpush.msra.mxu0 %v1056
      %1156 = vmatpush.msra.mxu0 %v1054
      %1157 = vmatpush.msra.mxu0 %v1052
      %1158 = vmatpush.msra.mxu0 %v1050
      %1159 = vmatpush.msra.mxu0 %v1048
      %1160 = vmatpush.msra.mxu0 %v1046
      %1161 = vmatpush.msra.mxu0 %v1044
      %1162 = vmatmul.f32.gmra.mxu0 %v1027
      %v1163 = vpop.f32.mrf.mxu0
      %v1164 = vadd.f32 %v1078, %v1163
      %1165 = vmatmul.f32.gmra.mxu0 %v1028
      %v1166 = vpop.f32.mrf.mxu0
      %v1167 = vadd.f32 %v1078, %v1166
      %1168 = vmatmul.f32.gmra.mxu0 %v1029
      %v1169 = vpop.f32.mrf.mxu0
      %v1170 = vadd.f32 %v1078, %v1169
      %1171 = vmatmul.f32.gmra.mxu0 %v1030
      %v1172 = vpop.f32.mrf.mxu0
      %v1173 = vadd.f32 %v1078, %v1172
      %1174 = vmatmul.f32.gmra.mxu0 %v1031
      %v1175 = vpop.f32.mrf.mxu0
      %v1176 = vadd.f32 %v1078, %v1175
      %1177 = vmatmul.f32.gmra.mxu0 %v1032
      %v1178 = vpop.f32.mrf.mxu0
      %v1179 = vadd.f32 %v1078, %v1178
      %1180 = vmatmul.f32.gmra.mxu0 %v1033
      %v1181 = vpop.f32.mrf.mxu0
      %v1182 = vadd.f32 %v1078, %v1181
      %1183 = vmatmul.f32.gmra.mxu0 %v1034
      %v1184 = vpop.f32.mrf.mxu0
      %v1185 = vadd.f32 %v1078, %v1184
      %1186 = vmatmul.f32.gmra.mxu0 %v1035
      %v1187 = vpop.f32.mrf.mxu0
      %v1188 = vadd.f32 %v1078, %v1187
      %1189 = vmatmul.f32.gmra.mxu0 %v1036
      %v1190 = vpop.f32.mrf.mxu0
      %v1191 = vadd.f32 %v1078, %v1190
      %1192 = vmatmul.f32.gmra.mxu0 %v1037
      %v1193 = vpop.f32.mrf.mxu0
      %v1194 = vadd.f32 %v1078, %v1193
      %1195 = vmatmul.f32.gmra.mxu0 %v1038
      %v1196 = vpop.f32.mrf.mxu0
      %v1197 = vadd.f32 %v1078, %v1196
      %1198 = vmatmul.f32.gmra.mxu0 %v1039
      %v1199 = vpop.f32.mrf.mxu0
      %v1200 = vadd.f32 %v1078, %v1199
      %1201 = vmatmul.f32.gmra.mxu0 %v1040
      %v1202 = vpop.f32.mrf.mxu0
      %v1203 = vadd.f32 %v1078, %v1202
      %1204 = vmatmul.f32.gmra.mxu0 %v1041
      %v1205 = vpop.f32.mrf.mxu0
      %v1206 = vadd.f32 %v1078, %v1205
      %1207 = vmatmul.f32.gmra.mxu0 %v1042
      %v1208 = vpop.f32.mrf.mxu0
      %v1209 = vadd.f32 %v1078, %v1208
      %1210 = vdwg.mxu0
      %v1211 = vmax.f32 %v1099, 0.0
      %v1212 = vmax.f32 %v1164, 0.0
      %v1213 = vmax.f32 %v1102, 0.0
      %v1214 = vmax.f32 %v1167, 0.0
      %v1215 = vmax.f32 %v1105, 0.0
      %v1216 = vmax.f32 %v1170, 0.0
      %v1217 = vmax.f32 %v1108, 0.0
      %v1218 = vmax.f32 %v1173, 0.0
      %v1219 = vmax.f32 %v1111, 0.0
      %v1220 = vmax.f32 %v1176, 0.0
      %v1221 = vmax.f32 %v1114, 0.0
      %v1222 = vmax.f32 %v1179, 0.0
      %v1223 = vmax.f32 %v1117, 0.0
      %v1224 = vmax.f32 %v1182, 0.0
      %v1225 = vmax.f32 %v1120, 0.0
      %v1226 = vmax.f32 %v1185, 0.0
      %v1227 = vmax.f32 %v1123, 0.0
      %v1228 = vmax.f32 %v1188, 0.0
      %v1229 = vmax.f32 %v1126, 0.0
      %v1230 = vmax.f32 %v1191, 0.0
      %v1231 = vmax.f32 %v1129, 0.0
      %v1232 = vmax.f32 %v1194, 0.0
      %v1233 = vmax.f32 %v1132, 0.0
      %v1234 = vmax.f32 %v1197, 0.0
      %v1235 = vmax.f32 %v1135, 0.0
      %v1236 = vmax.f32 %v1200, 0.0
      %v1237 = vmax.f32 %v1138, 0.0
      %v1238 = vmax.f32 %v1203, 0.0
      %v1239 = vmax.f32 %v1141, 0.0
      %v1240 = vmax.f32 %v1206, 0.0
      %v1241 = vmax.f32 %v1144, 0.0
      %v1242 = vmax.f32 %v1209, 0.0
      %v1243 = vld [vmem:[#allocation7] sm:$0xff]
      %v1244 = vld [vmem:[#allocation7 + $0x8] sm:$0xff]
      %v1245 = vld [vmem:[#allocation7 + $0x10] sm:$0xff]
      %v1246 = vld [vmem:[#allocation7 + $0x18] sm:$0xff]
      %v1247 = vld [vmem:[#allocation7 + $0x20] sm:$0xff]
      %v1248 = vld [vmem:[#allocation7 + $0x28] sm:$0xff]
      %v1249 = vld [vmem:[#allocation7 + $0x30] sm:$0xff]
      %v1250 = vld [vmem:[#allocation7 + $0x38] sm:$0xff]
      %v1251 = vld [vmem:[#allocation7 + $0x40] sm:$0xff]
      %v1252 = vld [vmem:[#allocation7 + $0x48] sm:$0xff]
      %v1253 = vld [vmem:[#allocation7 + $0x50] sm:$0xff]
      %v1254 = vld [vmem:[#allocation7 + $0x58] sm:$0xff]
      %v1255 = vld [vmem:[#allocation7 + $0x60] sm:$0xff]
      %v1256 = vld [vmem:[#allocation7 + $0x68] sm:$0xff]
      %v1257 = vld [vmem:[#allocation7 + $0x70] sm:$0xff]
      %v1258 = vld [vmem:[#allocation7 + $0x78] sm:$0xff]
      %v1259 = vld [vmem:[#allocation7 + $0x80] sm:$0xff]
      %v1260 = vld [vmem:[#allocation7 + $0x88] sm:$0xff]
      %v1261 = vld [vmem:[#allocation7 + $0x90] sm:$0xff]
      %v1262 = vld [vmem:[#allocation7 + $0x98] sm:$0xff]
      %v1263 = vld [vmem:[#allocation7 + $0xa0] sm:$0xff]
      %v1264 = vld [vmem:[#allocation7 + $0xa8] sm:$0xff]
      %v1265 = vld [vmem:[#allocation7 + $0xb0] sm:$0xff]
      %v1266 = vld [vmem:[#allocation7 + $0xb8] sm:$0xff]
      %v1267 = vld [vmem:[#allocation7 + $0xc0] sm:$0xff]
      %v1268 = vld [vmem:[#allocation7 + $0xc8] sm:$0xff]
      %v1269 = vld [vmem:[#allocation7 + $0xd0] sm:$0xff]
      %v1270 = vld [vmem:[#allocation7 + $0xd8] sm:$0xff]
      %v1271 = vld [vmem:[#allocation7 + $0xe0] sm:$0xff]
      %v1272 = vld [vmem:[#allocation7 + $0xe8] sm:$0xff]
      %v1273 = vld [vmem:[#allocation7 + $0xf0] sm:$0xff]
      %v1274 = vld [vmem:[#allocation7 + $0xf8] sm:$0xff]
      %v1275 = vld [vmem:[%s12] sm:$0x1]
      %v1277 = vperm.slane %v1275, 0
      %1279 = vmatpush.msra.mxu0 %v1258
      %1280 = vmatpush.msra.mxu0 %v1257
      %1281 = vmatpush.msra.mxu0 %v1256
      %1282 = vmatpush.msra.mxu0 %v1255
      %1283 = vmatpush.msra.mxu0 %v1254
      %1284 = vmatpush.msra.mxu0 %v1253
      %1285 = vmatpush.msra.mxu0 %v1252
      %1286 = vmatpush.msra.mxu0 %v1251
      %1287 = vmatpush.msra.mxu0 %v1250
      %1288 = vmatpush.msra.mxu0 %v1249
      %1289 = vmatpush.msra.mxu0 %v1248
      %1290 = vmatpush.msra.mxu0 %v1247
      %1291 = vmatpush.msra.mxu0 %v1246
      %1292 = vmatpush.msra.mxu0 %v1245
      %1293 = vmatpush.msra.mxu0 %v1244
      %1294 = vmatpush.msra.mxu0 %v1243
      %1295 = vmatmul.f32.gmra.mxu0 %v1211
      %v1296 = vpop.f32.mrf.mxu0
      %v1297 = vadd.f32 %v1277, %v1296
      %1298 = vmatmul.f32.gmra.mxu0 %v1213
      %v1299 = vpop.f32.mrf.mxu0
      %v1300 = vadd.f32 %v1277, %v1299
      %1301 = vmatmul.f32.gmra.mxu0 %v1215
      %v1302 = vpop.f32.mrf.mxu0
      %v1303 = vadd.f32 %v1277, %v1302
      %1304 = vmatmul.f32.gmra.mxu0 %v1217
      %v1305 = vpop.f32.mrf.mxu0
      %v1306 = vadd.f32 %v1277, %v1305
      %1307 = vmatmul.f32.gmra.mxu0 %v1219
      %v1308 = vpop.f32.mrf.mxu0
      %v1309 = vadd.f32 %v1277, %v1308
      %1310 = vmatmul.f32.gmra.mxu0 %v1221
      %v1311 = vpop.f32.mrf.mxu0
      %v1312 = vadd.f32 %v1277, %v1311
      %1313 = vmatmul.f32.gmra.mxu0 %v1223
      %v1314 = vpop.f32.mrf.mxu0
      %v1315 = vadd.f32 %v1277, %v1314
      %1316 = vmatmul.f32.gmra.mxu0 %v1225
      %v1317 = vpop.f32.mrf.mxu0
      %v1318 = vadd.f32 %v1277, %v1317
      %1319 = vmatmul.f32.gmra.mxu0 %v1227
      %v1320 = vpop.f32.mrf.mxu0
      %v1321 = vadd.f32 %v1277, %v1320
      %1322 = vmatmul.f32.gmra.mxu0 %v1229
      %v1323 = vpop.f32.mrf.mxu0
      %v1324 = vadd.f32 %v1277, %v1323
      %1325 = vmatmul.f32.gmra.mxu0 %v1231
      %v1326 = vpop.f32.mrf.mxu0
      %v1327 = vadd.f32 %v1277, %v1326
      %1328 = vmatmul.f32.gmra.mxu0 %v1233
      %v1329 = vpop.f32.mrf.mxu0
      %v1330 = vadd.f32 %v1277, %v1329
      %1331 = vmatmul.f32.gmra.mxu0 %v1235
      %v1332 = vpop.f32.mrf.mxu0
      %v1333 = vadd.f32 %v1277, %v1332
      %1334 = vmatmul.f32.gmra.mxu0 %v1237
      %v1335 = vpop.f32.mrf.mxu0
      %v1336 = vadd.f32 %v1277, %v1335
      %1337 = vmatmul.f32.gmra.mxu0 %v1239
      %v1338 = vpop.f32.mrf.mxu0
      %v1339 = vadd.f32 %v1277, %v1338
      %1340 = vmatmul.f32.gmra.mxu0 %v1241
      %v1341 = vpop.f32.mrf.mxu0
      %v1342 = vadd.f32 %v1277, %v1341
      %1343 = vdwg.mxu0
      %1344 = vmatpush.msra.mxu0 %v1274
      %1345 = vmatpush.msra.mxu0 %v1273
      %1346 = vmatpush.msra.mxu0 %v1272
      %1347 = vmatpush.msra.mxu0 %v1271
      %1348 = vmatpush.msra.mxu0 %v1270
      %1349 = vmatpush.msra.mxu0 %v1269
      %1350 = vmatpush.msra.mxu0 %v1268
      %1351 = vmatpush.msra.mxu0 %v1267
      %1352 = vmatpush.msra.mxu0 %v1266
      %1353 = vmatpush.msra.mxu0 %v1265
      %1354 = vmatpush.msra.mxu0 %v1264
      %1355 = vmatpush.msra.mxu0 %v1263
      %1356 = vmatpush.msra.mxu0 %v1262
      %1357 = vmatpush.msra.mxu0 %v1261
      %1358 = vmatpush.msra.mxu0 %v1260
      %1359 = vmatpush.msra.mxu0 %v1259
      %1360 = vmatmul.f32.gmra.mxu0 %v1212
      %v1361 = vpop.f32.mrf.mxu0
      %v1362 = vadd.f32 %v1297, %v1361
      %1363 = vmatmul.f32.gmra.mxu0 %v1214
      %v1364 = vpop.f32.mrf.mxu0
      %v1365 = vadd.f32 %v1300, %v1364
      %1366 = vmatmul.f32.gmra.mxu0 %v1216
      %v1367 = vpop.f32.mrf.mxu0
      %v1368 = vadd.f32 %v1303, %v1367
      %1369 = vmatmul.f32.gmra.mxu0 %v1218
      %v1370 = vpop.f32.mrf.mxu0
      %v1371 = vadd.f32 %v1306, %v1370
      %1372 = vmatmul.f32.gmra.mxu0 %v1220
      %v1373 = vpop.f32.mrf.mxu0
      %v1374 = vadd.f32 %v1309, %v1373
      %1375 = vmatmul.f32.gmra.mxu0 %v1222
      %v1376 = vpop.f32.mrf.mxu0
      %v1377 = vadd.f32 %v1312, %v1376
      %1378 = vmatmul.f32.gmra.mxu0 %v1224
      %v1379 = vpop.f32.mrf.mxu0
      %v1380 = vadd.f32 %v1315, %v1379
      %1381 = vmatmul.f32.gmra.mxu0 %v1226
      %v1382 = vpop.f32.mrf.mxu0
      %v1383 = vadd.f32 %v1318, %v1382
      %1384 = vmatmul.f32.gmra.mxu0 %v1228
      %v1385 = vpop.f32.mrf.mxu0
      %v1386 = vadd.f32 %v1321, %v1385
      %1387 = vmatmul.f32.gmra.mxu0 %v1230
      %v1388 = vpop.f32.mrf.mxu0
      %v1389 = vadd.f32 %v1324, %v1388
      %1390 = vmatmul.f32.gmra.mxu0 %v1232
      %v1391 = vpop.f32.mrf.mxu0
      %v1392 = vadd.f32 %v1327, %v1391
      %1393 = vmatmul.f32.gmra.mxu0 %v1234
      %v1394 = vpop.f32.mrf.mxu0
      %v1395 = vadd.f32 %v1330, %v1394
      %1396 = vmatmul.f32.gmra.mxu0 %v1236
      %v1397 = vpop.f32.mrf.mxu0
      %v1398 = vadd.f32 %v1333, %v1397
      %1399 = vmatmul.f32.gmra.mxu0 %v1238
      %v1400 = vpop.f32.mrf.mxu0
      %v1401 = vadd.f32 %v1336, %v1400
      %1402 = vmatmul.f32.gmra.mxu0 %v1240
      %v1403 = vpop.f32.mrf.mxu0
      %v1404 = vadd.f32 %v1339, %v1403
      %1405 = vmatmul.f32.gmra.mxu0 %v1242
      %v1406 = vpop.f32.mrf.mxu0
      %v1407 = vadd.f32 %v1342, %v1406
      %1408 = vdwg.mxu0
      %v1409 = vmax.f32 %v1362, 0.0
      %v1410 = vmax.f32 %v1365, 0.0
      %v1411 = vmax.f32 %v1368, 0.0
      %v1412 = vmax.f32 %v1371, 0.0
      %v1413 = vmax.f32 %v1374, 0.0
      %v1414 = vmax.f32 %v1377, 0.0
      %v1415 = vmax.f32 %v1380, 0.0
      %v1416 = vmax.f32 %v1383, 0.0
      %v1417 = vmax.f32 %v1386, 0.0
      %v1418 = vmax.f32 %v1389, 0.0
      %v1419 = vmax.f32 %v1392, 0.0
      %v1420 = vmax.f32 %v1395, 0.0
      %v1421 = vmax.f32 %v1398, 0.0
      %v1422 = vmax.f32 %v1401, 0.0
      %v1423 = vmax.f32 %v1404, 0.0
      %v1424 = vmax.f32 %v1407, 0.0
      %1425 = vst [vmem:[%s18] sm:$0xff] %v1409
      %1426 = vst [vmem:[%s18 + $0x8] sm:$0xff] %v1410
      %1427 = vst [vmem:[%s18 + $0x10] sm:$0xff] %v1411
      %1428 = vst [vmem:[%s18 + $0x18] sm:$0xff] %v1412
      %1429 = vst [vmem:[%s18 + $0x20] sm:$0xff] %v1413
      %1430 = vst [vmem:[%s18 + $0x28] sm:$0xff] %v1414
      %1431 = vst [vmem:[%s18 + $0x30] sm:$0xff] %v1415
      %1432 = vst [vmem:[%s18 + $0x38] sm:$0xff] %v1416
      %1433 = vst [vmem:[%s18 + $0x40] sm:$0xff] %v1417
      %1434 = vst [vmem:[%s18 + $0x48] sm:$0xff] %v1418
      %1435 = vst [vmem:[%s18 + $0x50] sm:$0xff] %v1419
      %1436 = vst [vmem:[%s18 + $0x58] sm:$0xff] %v1420
      %1437 = vst [vmem:[%s18 + $0x60] sm:$0xff] %v1421
      %1438 = vst [vmem:[%s18 + $0x68] sm:$0xff] %v1422
      %1439 = vst [vmem:[%s18 + $0x70] sm:$0xff] %v1423
      %1440 = vst [vmem:[%s18 + $0x78] sm:$0xff] %v1424
      %v1441 = vld [vmem:[%s13] sm:$0xff]
      %v1442 = vld [vmem:[#allocation2] sm:$0xff]
      %v1443 = vld [vmem:[#allocation2 + $0x8] sm:$0xff]
      %v1444 = vld [vmem:[#allocation2 + $0x10] sm:$0xff]
      %v1445 = vld [vmem:[#allocation2 + $0x18] sm:$0xff]
      %v1446 = vld [vmem:[#allocation2 + $0x20] sm:$0xff]
      %v1447 = vld [vmem:[#allocation2 + $0x28] sm:$0xff]
      %v1448 = vld [vmem:[#allocation2 + $0x30] sm:$0xff]
      %v1449 = vld [vmem:[#allocation2 + $0x38] sm:$0xff]
      %v1450 = vld [vmem:[#allocation2 + $0x40] sm:$0xff]
      %v1451 = vld [vmem:[#allocation2 + $0x48] sm:$0xff]
      %v1452 = vld [vmem:[#allocation2 + $0x50] sm:$0xff]
      %v1453 = vld [vmem:[#allocation2 + $0x58] sm:$0xff]
      %v1454 = vld [vmem:[#allocation2 + $0x60] sm:$0xff]
      %v1455 = vld [vmem:[#allocation2 + $0x68] sm:$0xff]
      %v1456 = vld [vmem:[#allocation2 + $0x70] sm:$0xff]
      %v1457 = vld [vmem:[#allocation2 + $0x78] sm:$0xff]
      %1458 = vmatpush.msra.mxu0 %v1457
      %1459 = vmatpush.msra.mxu0 %v1456
      %1460 = vmatpush.msra.mxu0 %v1455
      %1461 = vmatpush.msra.mxu0 %v1454
      %1462 = vmatpush.msra.mxu0 %v1453
      %1463 = vmatpush.msra.mxu0 %v1452
      %1464 = vmatpush.msra.mxu0 %v1451
      %1465 = vmatpush.msra.mxu0 %v1450
      %1466 = vmatpush.msra.mxu0 %v1449
      %1467 = vmatpush.msra.mxu0 %v1448
      %1468 = vmatpush.msra.mxu0 %v1447
      %1469 = vmatpush.msra.mxu0 %v1446
      %1470 = vmatpush.msra.mxu0 %v1445
      %1471 = vmatpush.msra.mxu0 %v1444
      %1472 = vmatpush.msra.mxu0 %v1443
      %1473 = vmatpush.msra.mxu0 %v1442
      %1474 = vmatmul.f32.gmra.mxu0 %v1441
      %v1475 = vpop.f32.mrf.mxu0
      %v1476 = vadd.f32 0.0, %v1475
      %1477 = vdwg.mxu0
      %v1478 = vld [vmem:[%s3] sm:$0xff]
      %v1479 = vadd.f32 %v1478, %v1476
      %v1480 = vld [vmem:[#allocation9] sm:$0xff]
      %v1481 = vld [vmem:[#allocation9 + $0x8] sm:$0xff]
      %v1482 = vld [vmem:[#allocation9 + $0x10] sm:$0xff]
      %v1483 = vld [vmem:[#allocation9 + $0x18] sm:$0xff]
      %v1484 = vld [vmem:[#allocation9 + $0x20] sm:$0xff]
      %v1485 = vld [vmem:[#allocation9 + $0x28] sm:$0xff]
      %v1486 = vld [vmem:[#allocation9 + $0x30] sm:$0xff]
      %v1487 = vld [vmem:[#allocation9 + $0x38] sm:$0xff]
      %v1488 = vld [vmem:[#allocation9 + $0x40] sm:$0xff]
      %v1489 = vld [vmem:[#allocation9 + $0x48] sm:$0xff]
      %v1490 = vld [vmem:[#allocation9 + $0x50] sm:$0xff]
      %v1491 = vld [vmem:[#allocation9 + $0x58] sm:$0xff]
      %v1492 = vld [vmem:[#allocation9 + $0x60] sm:$0xff]
      %v1493 = vld [vmem:[#allocation9 + $0x68] sm:$0xff]
      %v1494 = vld [vmem:[#allocation9 + $0x70] sm:$0xff]
      %v1495 = vld [vmem:[#allocation9 + $0x78] sm:$0xff]
      %v1496 = vld [vmem:[#allocation9 + $0x80] sm:$0xff]
      %v1497 = vld [vmem:[#allocation9 + $0x88] sm:$0xff]
      %v1498 = vld [vmem:[#allocation9 + $0x90] sm:$0xff]
      %v1499 = vld [vmem:[#allocation9 + $0x98] sm:$0xff]
      %v1500 = vld [vmem:[#allocation9 + $0xa0] sm:$0xff]
      %v1501 = vld [vmem:[#allocation9 + $0xa8] sm:$0xff]
      %v1502 = vld [vmem:[#allocation9 + $0xb0] sm:$0xff]
      %v1503 = vld [vmem:[#allocation9 + $0xb8] sm:$0xff]
      %v1504 = vld [vmem:[#allocation9 + $0xc0] sm:$0xff]
      %v1505 = vld [vmem:[#allocation9 + $0xc8] sm:$0xff]
      %v1506 = vld [vmem:[#allocation9 + $0xd0] sm:$0xff]
      %v1507 = vld [vmem:[#allocation9 + $0xd8] sm:$0xff]
      %v1508 = vld [vmem:[#allocation9 + $0xe0] sm:$0xff]
      %v1509 = vld [vmem:[#allocation9 + $0xe8] sm:$0xff]
      %v1510 = vld [vmem:[#allocation9 + $0xf0] sm:$0xff]
      %v1511 = vld [vmem:[#allocation9 + $0xf8] sm:$0xff]
      %v1512 = vld [vmem:[%s15] sm:$0x3]
      %v1514 = vperm.slane %v1512, 0
      %v1515 = vperm.slane %v1512, 1
      %1518 = vmatpush.msra.mxu0 %v1510
      %1519 = vmatpush.msra.mxu0 %v1508
      %1520 = vmatpush.msra.mxu0 %v1506
      %1521 = vmatpush.msra.mxu0 %v1504
      %1522 = vmatpush.msra.mxu0 %v1502
      %1523 = vmatpush.msra.mxu0 %v1500
      %1524 = vmatpush.msra.mxu0 %v1498
      %1525 = vmatpush.msra.mxu0 %v1496
      %1526 = vmatpush.msra.mxu0 %v1494
      %1527 = vmatpush.msra.mxu0 %v1492
      %1528 = vmatpush.msra.mxu0 %v1490
      %1529 = vmatpush.msra.mxu0 %v1488
      %1530 = vmatpush.msra.mxu0 %v1486
      %1531 = vmatpush.msra.mxu0 %v1484
      %1532 = vmatpush.msra.mxu0 %v1482
      %1533 = vmatpush.msra.mxu0 %v1480
      %1534 = vmatmul.f32.gmra.mxu0 %v1479
      %v1535 = vpop.f32.mrf.mxu0
      %v1536 = vadd.f32 %v1514, %v1535
      %1537 = vdwg.mxu0
      %1538 = vmatpush.msra.mxu0 %v1511
      %1539 = vmatpush.msra.mxu0 %v1509
      %1540 = vmatpush.msra.mxu0 %v1507
      %1541 = vmatpush.msra.mxu0 %v1505
      %1542 = vmatpush.msra.mxu0 %v1503
      %1543 = vmatpush.msra.mxu0 %v1501
      %1544 = vmatpush.msra.mxu0 %v1499
      %1545 = vmatpush.msra.mxu0 %v1497
      %1546 = vmatpush.msra.mxu0 %v1495
      %1547 = vmatpush.msra.mxu0 %v1493
      %1548 = vmatpush.msra.mxu0 %v1491
      %1549 = vmatpush.msra.mxu0 %v1489
      %1550 = vmatpush.msra.mxu0 %v1487
      %1551 = vmatpush.msra.mxu0 %v1485
      %1552 = vmatpush.msra.mxu0 %v1483
      %1553 = vmatpush.msra.mxu0 %v1481
      %1554 = vmatmul.f32.gmra.mxu0 %v1479
      %v1555 = vpop.f32.mrf.mxu0
      %v1556 = vadd.f32 %v1515, %v1555
      %1557 = vdwg.mxu0
      %v1558 = vmax.f32 %v1536, 0.0
      %v1559 = vmax.f32 %v1556, 0.0
      %v1560 = vld [vmem:[#allocation10] sm:$0xff]
      %v1561 = vld [vmem:[#allocation10 + $0x8] sm:$0xff]
      %v1562 = vld [vmem:[#allocation10 + $0x10] sm:$0xff]
      %v1563 = vld [vmem:[#allocation10 + $0x18] sm:$0xff]
      %v1564 = vld [vmem:[#allocation10 + $0x20] sm:$0xff]
      %v1565 = vld [vmem:[#allocation10 + $0x28] sm:$0xff]
      %v1566 = vld [vmem:[#allocation10 + $0x30] sm:$0xff]
      %v1567 = vld [vmem:[#allocation10 + $0x38] sm:$0xff]
      %v1568 = vld [vmem:[#allocation10 + $0x40] sm:$0xff]
      %v1569 = vld [vmem:[#allocation10 + $0x48] sm:$0xff]
      %v1570 = vld [vmem:[#allocation10 + $0x50] sm:$0xff]
      %v1571 = vld [vmem:[#allocation10 + $0x58] sm:$0xff]
      %v1572 = vld [vmem:[#allocation10 + $0x60] sm:$0xff]
      %v1573 = vld [vmem:[#allocation10 + $0x68] sm:$0xff]
      %v1574 = vld [vmem:[#allocation10 + $0x70] sm:$0xff]
      %v1575 = vld [vmem:[#allocation10 + $0x78] sm:$0xff]
      %v1576 = vld [vmem:[#allocation10 + $0x80] sm:$0xff]
      %v1577 = vld [vmem:[#allocation10 + $0x88] sm:$0xff]
      %v1578 = vld [vmem:[#allocation10 + $0x90] sm:$0xff]
      %v1579 = vld [vmem:[#allocation10 + $0x98] sm:$0xff]
      %v1580 = vld [vmem:[#allocation10 + $0xa0] sm:$0xff]
      %v1581 = vld [vmem:[#allocation10 + $0xa8] sm:$0xff]
      %v1582 = vld [vmem:[#allocation10 + $0xb0] sm:$0xff]
      %v1583 = vld [vmem:[#allocation10 + $0xb8] sm:$0xff]
      %v1584 = vld [vmem:[#allocation10 + $0xc0] sm:$0xff]
      %v1585 = vld [vmem:[#allocation10 + $0xc8] sm:$0xff]
      %v1586 = vld [vmem:[#allocation10 + $0xd0] sm:$0xff]
      %v1587 = vld [vmem:[#allocation10 + $0xd8] sm:$0xff]
      %v1588 = vld [vmem:[#allocation10 + $0xe0] sm:$0xff]
      %v1589 = vld [vmem:[#allocation10 + $0xe8] sm:$0xff]
      %v1590 = vld [vmem:[#allocation10 + $0xf0] sm:$0xff]
      %v1591 = vld [vmem:[#allocation10 + $0xf8] sm:$0xff]
      %v1592 = vld [vmem:[%s17] sm:$0x1]
      %v1594 = vperm.slane %v1592, 0
      %1596 = vmatpush.msra.mxu0 %v1575
      %1597 = vmatpush.msra.mxu0 %v1574
      %1598 = vmatpush.msra.mxu0 %v1573
      %1599 = vmatpush.msra.mxu0 %v1572
      %1600 = vmatpush.msra.mxu0 %v1571
      %1601 = vmatpush.msra.mxu0 %v1570
      %1602 = vmatpush.msra.mxu0 %v1569
      %1603 = vmatpush.msra.mxu0 %v1568
      %1604 = vmatpush.msra.mxu0 %v1567
      %1605 = vmatpush.msra.mxu0 %v1566
      %1606 = vmatpush.msra.mxu0 %v1565
      %1607 = vmatpush.msra.mxu0 %v1564
      %1608 = vmatpush.msra.mxu0 %v1563
      %1609 = vmatpush.msra.mxu0 %v1562
      %1610 = vmatpush.msra.mxu0 %v1561
      %1611 = vmatpush.msra.mxu0 %v1560
      %1612 = vmatmul.f32.gmra.mxu0 %v1558
      %v1613 = vpop.f32.mrf.mxu0
      %v1614 = vadd.f32 %v1594, %v1613
      %1615 = vdwg.mxu0
      %1616 = vmatpush.msra.mxu0 %v1591
      %1617 = vmatpush.msra.mxu0 %v1590
      %1618 = vmatpush.msra.mxu0 %v1589
      %1619 = vmatpush.msra.mxu0 %v1588
      %1620 = vmatpush.msra.mxu0 %v1587
      %1621 = vmatpush.msra.mxu0 %v1586
      %1622 = vmatpush.msra.mxu0 %v1585
      %1623 = vmatpush.msra.mxu0 %v1584
      %1624 = vmatpush.msra.mxu0 %v1583
      %1625 = vmatpush.msra.mxu0 %v1582
      %1626 = vmatpush.msra.mxu0 %v1581
      %1627 = vmatpush.msra.mxu0 %v1580
      %1628 = vmatpush.msra.mxu0 %v1579
      %1629 = vmatpush.msra.mxu0 %v1578
      %1630 = vmatpush.msra.mxu0 %v1577
      %1631 = vmatpush.msra.mxu0 %v1576
      %1632 = vmatmul.f32.gmra.mxu0 %v1559
      %v1633 = vpop.f32.mrf.mxu0
      %v1634 = vadd.f32 %v1614, %v1633
      %1635 = vdwg.mxu0
      %v1636 = vmax.f32 %v1634, 0.0
      %1637 = vst [vmem:[%s19] sm:$0xff] %v1636
    $region97: #{gnn_node_virtualnode_forward.4} parent=1 // pred_fallthru
      _
    // Predicated region
    $region98: #{gnn_node_virtualnode_forward.4} parent=1 // pred_check
      _
    $region99: #{gnn_node_virtualnode_forward.4} parent=1 // pred_check_branch
      %1639 = sbr.rel (0) target = $region101
    $region100: #{gnn_node_virtualnode_forward.4} parent=1 // pred_region
      _
    $region101: #{gnn_node_virtualnode_forward.4} parent=1 // pred_fallthru
      _
    // Predicated region
    $region102: #{gnn_node_virtualnode_forward.4} parent=1 // pred_check
      _
    $region103: #{gnn_node_virtualnode_forward.4} parent=1 // pred_check_branch
      %1641 = sbr.rel (0) target = $region105
    $region104: #{gnn_node_virtualnode_forward.4} parent=1 // pred_region
      _
    $region105: #{gnn_node_virtualnode_forward.4} parent=1 // pred_fallthru
      _
    // Predicated region
    $region106: #{gnn_node_virtualnode_forward.4} parent=1 // pred_check
      _
    $region107: #{gnn_node_virtualnode_forward.4} parent=1 // pred_check_branch
      %1643 = sbr.rel (0) target = $region109
    $region108: #{gnn_node_virtualnode_forward.4} parent=1 // pred_region
      _
    $region109: #{gnn_node_virtualnode_forward.4} parent=1 // pred_fallthru
      _
    // Predicated region
    $region110: #{gnn_node_virtualnode_forward.4} parent=1 // pred_check
      _
    $region111: #{gnn_node_virtualnode_forward.4} parent=1 // pred_check_branch
      %1645 = sbr.rel (0) target = $region113
    $region112: #{gnn_node_virtualnode_forward.4} parent=1 // pred_region
      _
    $region113: #{gnn_node_virtualnode_forward.4} parent=1 // pred_fallthru
      _
    %1646 = vsyncpa [#allocation6], 1
    %1647 = vsyncpa [#allocation8], 1
    %1648 = vsyncpa [#allocation11], 1

// kernel: gnn_node_virtualnode_forward.5
$region0: #{gnn_node_virtualnode_forward.5}
  #allocation0 [shape = 'u32[]', space=smem, size = 0x4, offset = 0x4, fixed_abs, tag = 'smem constant byte address 0x4 - core index']
  #allocation1 [shape = 'u32[72,128]{1,0:T(1,128)}', space=vmem, size = 0x9000, scoped, tag = 'internal scratch']
  #allocation2 [shape = 'f32[128,128]{1,0:T(8,128)}', space=vmem, size = 0x10000, scoped, tag = 'scratch operand']
  #allocation3 [shape = 'f32[128,128]{1,0:T(8,128)}', space=vmem, size = 0x10000, scoped, tag = 'scratch operand']
  #allocation4 [shape = 'f32[1,1]{1,0:T(1,128)S(6)}', space=smem, size = 0x200, scoped, tag = 'scoped memory for gnn_node_virtualnode_forward.5']
  %s0 = inlined_call_operand.<no memory space> [shape: f32[1,1], index: 0, kind: input, shape index: {}]
  %s1 = inlined_call_operand.vmem [shape: f32[128,128], index: 1, kind: input, shape index: {}]
  %s2 = inlined_call_operand.vmem [shape: f32[128,8], index: 2, kind: input, shape index: {}]
  %s3 = inlined_call_operand.vmem [shape: f32[8,128], index: 3, kind: input, shape index: {}]
  %s4 = inlined_call_operand.vmem [shape: f32[256,8], index: 4, kind: input, shape index: {}]
  %s5 = inlined_call_operand.vmem [shape: f32[8,128], index: 5, kind: input, shape index: {}]
  %s6 = inlined_call_operand.vmem [shape: f32[1,128], index: 6, kind: input, shape index: {}]
  %s7 = inlined_call_operand.vmem [shape: f32[256,128], index: 7, kind: input, shape index: {}]
  %s8 = inlined_call_operand.vmem [shape: f32[128,256], index: 8, kind: input, shape index: {}]
  %s9 = inlined_call_operand.hbm [shape: f32[128,256], index: 9, kind: input, shape index: {}]
  %s10 = inlined_call_operand.vmem [shape: f32[1,256], index: 10, kind: input, shape index: {}]
  %s11 = inlined_call_operand.hbm [shape: f32[256,128], index: 11, kind: input, shape index: {}]
  %s12 = inlined_call_operand.vmem [shape: f32[1,128], index: 12, kind: input, shape index: {}]
  %s13 = inlined_call_operand.vmem [shape: f32[128,128], index: 13, kind: output, shape index: {}]
  %s14 = sld [smem:[#allocation0]]
  $region78: #{gnn_node_virtualnode_forward.5} parent=0
    _
  %s16 = ssub.s32 1, %s14
  %s17 = scalar_select 0, %s16, %s14
  %18 = sst [smem:[#allocation4]] %s0
  $region1: #{gnn_node_virtualnode_forward.5} parent=0
    #allocation5 [shape = 'u8[131072]{0}', space=vmem, size = 0x20000, scoped, tag = 'input window, operand 9, single buffered']
    #allocation6 [shape = 's32[1]{0}', space=sflag, size = 0x4, scoped, tag = 'scoped memory for gnn_node_virtualnode_forward.5']
    #allocation7 [shape = 'u8[131072]{0}', space=vmem, size = 0x20000, scoped, tag = 'input window, operand 11, single buffered']
    #allocation8 [shape = 's32[1]{0}', space=sflag, size = 0x4, scoped, tag = 'scoped memory for gnn_node_virtualnode_forward.5']
    %19 = vsyncpa [#allocation6], 0
    %20 = vsyncpa [#allocation8], 0
    // Predicated region
    $region2: #{gnn_node_virtualnode_forward.5} parent=1 // pred_check
      _
    $region3: #{gnn_node_virtualnode_forward.5} parent=1 // pred_check_branch
      %22 = sbr.rel (0) target = $region5
    $region4: #{gnn_node_virtualnode_forward.5} parent=1 // pred_region
      _
    $region5: #{gnn_node_virtualnode_forward.5} parent=1 // pred_fallthru
      _
    // Predicated region
    $region6: #{gnn_node_virtualnode_forward.5} parent=1 // pred_check
      _
    $region7: #{gnn_node_virtualnode_forward.5} parent=1 // pred_check_branch
      %24 = sbr.rel (0) target = $region9
    $region8: #{gnn_node_virtualnode_forward.5} parent=1 // pred_region
      _
    $region9: #{gnn_node_virtualnode_forward.5} parent=1 // pred_fallthru
      _
    // Predicated region
    $region10: #{gnn_node_virtualnode_forward.5} parent=1 // pred_check
      _
    $region11: #{gnn_node_virtualnode_forward.5} parent=1 // pred_check_branch
      %26 = sbr.rel (0) target = $region13
    $region12: #{gnn_node_virtualnode_forward.5} parent=1 // pred_region
      _
    $region13: #{gnn_node_virtualnode_forward.5} parent=1 // pred_fallthru
      _
    // Predicated region
    $region14: #{gnn_node_virtualnode_forward.5} parent=1 // pred_check
      _
    $region15: #{gnn_node_virtualnode_forward.5} parent=1 // pred_check_branch
      %28 = sbr.rel (0) target = $region17
    $region16: #{gnn_node_virtualnode_forward.5} parent=1 // pred_region
      _
    $region17: #{gnn_node_virtualnode_forward.5} parent=1 // pred_fallthru
      _
    // Predicated region
    $region18: #{gnn_node_virtualnode_forward.5} parent=1 // pred_check
      _
    $region19: #{gnn_node_virtualnode_forward.5} parent=1 // pred_check_branch
      %30 = sbr.rel (0) target = $region21
    $region20: #{gnn_node_virtualnode_forward.5} parent=1 // pred_region
      _
    $region21: #{gnn_node_virtualnode_forward.5} parent=1 // pred_fallthru
      _
    // Predicated region
    $region22: #{gnn_node_virtualnode_forward.5} parent=1 // pred_check
      _
    $region23: #{gnn_node_virtualnode_forward.5} parent=1 // pred_check_branch
      %32 = sbr.rel (0) target = $region25
    $region24: #{gnn_node_virtualnode_forward.5} parent=1 // pred_region
      _
    $region25: #{gnn_node_virtualnode_forward.5} parent=1 // pred_fallthru
      _
    // Predicated region
    $region26: #{gnn_node_virtualnode_forward.5} parent=1 // pred_check
      _
    $region27: #{gnn_node_virtualnode_forward.5} parent=1 // pred_check_branch
      %34 = sbr.rel (0) target = $region29
    $region28: #{gnn_node_virtualnode_forward.5} parent=1 // pred_region
      _
    $region29: #{gnn_node_virtualnode_forward.5} parent=1 // pred_fallthru
      _
    // Predicated region
    $region30: #{gnn_node_virtualnode_forward.5} parent=1 // pred_check
      _
    $region31: #{gnn_node_virtualnode_forward.5} parent=1 // pred_check_branch
      %36 = sbr.rel (0) target = $region33
    $region32: #{gnn_node_virtualnode_forward.5} parent=1 // pred_region
      _
    $region33: #{gnn_node_virtualnode_forward.5} parent=1 // pred_fallthru
      _
    // Predicated region
    $region34: #{gnn_node_virtualnode_forward.5} parent=1 // pred_check
      _
    $region35: #{gnn_node_virtualnode_forward.5} parent=1 // pred_check_branch
      %38 = sbr.rel (0) target = $region37
    $region36: #{gnn_node_virtualnode_forward.5} parent=1 // pred_region
      _
    $region37: #{gnn_node_virtualnode_forward.5} parent=1 // pred_fallthru
      _
    // Predicated region
    $region38: #{gnn_node_virtualnode_forward.5} parent=1 // pred_check
      _
    $region39: #{gnn_node_virtualnode_forward.5} parent=1 // pred_check_branch
      %40 = sbr.rel (0) target = $region41
    $region40: #{gnn_node_virtualnode_forward.5} parent=1 // pred_region
      %42 = vsyncadd [#allocation6], 0
      %s43 = sshll.u32 %s9, 4
      %s44 = int_to_ptr.hbm [resolvable:$true] %s43
      %s45 = sshll.u32 [#allocation5], 4
      %s46 = int_to_ptr.vmem [resolvable:$true] %s45
      %51 = dma.hbm_to_vmem [thread:$0]  %s44, 4096, %s46, [#allocation6], 256, 256, 16
    $region41: #{gnn_node_virtualnode_forward.5} parent=1 // pred_fallthru
      _
    // Predicated region
    $region42: #{gnn_node_virtualnode_forward.5} parent=1 // pred_check
      _
    $region43: #{gnn_node_virtualnode_forward.5} parent=1 // pred_check_branch
      %53 = sbr.rel (0) target = $region45
    $region44: #{gnn_node_virtualnode_forward.5} parent=1 // pred_region
      _
    $region45: #{gnn_node_virtualnode_forward.5} parent=1 // pred_fallthru
      _
    // Predicated region
    $region46: #{gnn_node_virtualnode_forward.5} parent=1 // pred_check
      _
    $region47: #{gnn_node_virtualnode_forward.5} parent=1 // pred_check_branch
      %55 = sbr.rel (0) target = $region49
    $region48: #{gnn_node_virtualnode_forward.5} parent=1 // pred_region
      %57 = vsyncadd [#allocation8], 0
      %s58 = sshll.u32 %s11, 4
      %s59 = int_to_ptr.hbm [resolvable:$true] %s58
      %s60 = sshll.u32 [#allocation7], 4
      %s61 = int_to_ptr.vmem [resolvable:$true] %s60
      %66 = dma.hbm_to_vmem [thread:$0]  %s59, 4096, %s61, [#allocation8], 128, 128, 8
    $region49: #{gnn_node_virtualnode_forward.5} parent=1 // pred_fallthru
      _
    // Predicated region
    $region50: #{gnn_node_virtualnode_forward.5} parent=1 // pred_check
      _
    $region51: #{gnn_node_virtualnode_forward.5} parent=1 // pred_check_branch
      %68 = sbr.rel (0) target = $region53
    $region52: #{gnn_node_virtualnode_forward.5} parent=1 // pred_region
      _
    $region53: #{gnn_node_virtualnode_forward.5} parent=1 // pred_fallthru
      _
    // Predicated region
    $region54: #{gnn_node_virtualnode_forward.5} parent=1 // pred_check
      _
    $region55: #{gnn_node_virtualnode_forward.5} parent=1 // pred_check_branch
      %70 = sbr.rel (0) target = $region57
    $region56: #{gnn_node_virtualnode_forward.5} parent=1 // pred_region
      %72 = dma.done [#allocation6], 4096
    $region57: #{gnn_node_virtualnode_forward.5} parent=1 // pred_fallthru
      _
    // Predicated region
    $region58: #{gnn_node_virtualnode_forward.5} parent=1 // pred_check
      _
    $region59: #{gnn_node_virtualnode_forward.5} parent=1 // pred_check_branch
      %74 = sbr.rel (0) target = $region61
    $region60: #{gnn_node_virtualnode_forward.5} parent=1 // pred_region
      %76 = dma.done [#allocation8], 4096
    $region61: #{gnn_node_virtualnode_forward.5} parent=1 // pred_fallthru
      _
    %p77 = scmp.eq.s32.totalorder 0, 0
    // Predicated region
    $region62: #{gnn_node_virtualnode_forward.5} parent=1 // pred_check
      %p78 = pneg %p77
    $region63: #{gnn_node_virtualnode_forward.5} parent=1 // pred_check_branch
      %80 = sbr.rel (%p78) target = $region65
    $region64: #{gnn_node_virtualnode_forward.5} parent=1 // pred_region
      %v81 = vld [vmem:[%s2] sm:$0xff]
      %v82 = vld [vmem:[%s2 + $0x8] sm:$0xff]
      %v83 = vld [vmem:[%s2 + $0x10] sm:$0xff]
      %v84 = vld [vmem:[%s2 + $0x18] sm:$0xff]
      %v85 = vld [vmem:[%s2 + $0x20] sm:$0xff]
      %v86 = vld [vmem:[%s2 + $0x28] sm:$0xff]
      %v87 = vld [vmem:[%s2 + $0x30] sm:$0xff]
      %v88 = vld [vmem:[%s2 + $0x38] sm:$0xff]
      %v89 = vld [vmem:[%s2 + $0x40] sm:$0xff]
      %v90 = vld [vmem:[%s2 + $0x48] sm:$0xff]
      %v91 = vld [vmem:[%s2 + $0x50] sm:$0xff]
      %v92 = vld [vmem:[%s2 + $0x58] sm:$0xff]
      %v93 = vld [vmem:[%s2 + $0x60] sm:$0xff]
      %v94 = vld [vmem:[%s2 + $0x68] sm:$0xff]
      %v95 = vld [vmem:[%s2 + $0x70] sm:$0xff]
      %v96 = vld [vmem:[%s2 + $0x78] sm:$0xff]
      %v97 = vld [vmem:[%s3] sm:$0xff]
      %vm98 = vcmask 64512
      %v100 = vsel %vm98, %v81, 0
      %v103 = vsel %vm98, %v82, 0
      %v106 = vsel %vm98, %v83, 0
      %v109 = vsel %vm98, %v84, 0
      %v112 = vsel %vm98, %v85, 0
      %v115 = vsel %vm98, %v86, 0
      %v118 = vsel %vm98, %v87, 0
      %v121 = vsel %vm98, %v88, 0
      %v124 = vsel %vm98, %v89, 0
      %v127 = vsel %vm98, %v90, 0
      %v130 = vsel %vm98, %v91, 0
      %v133 = vsel %vm98, %v92, 0
      %v136 = vsel %vm98, %v93, 0
      %v139 = vsel %vm98, %v94, 0
      %v142 = vsel %vm98, %v95, 0
      %v145 = vsel %vm98, %v96, 0
      %147 = vmatpush.msra.mxu0 0.0
      %148 = vmatpush.msra.mxu0 0.0
      %149 = vmatpush.msra.mxu0 0.0
      %150 = vmatpush.msra.mxu0 0.0
      %151 = vmatpush.msra.mxu0 0.0
      %152 = vmatpush.msra.mxu0 0.0
      %153 = vmatpush.msra.mxu0 0.0
      %154 = vmatpush.msra.mxu0 0.0
      %155 = vmatpush.msra.mxu0 0.0
      %156 = vmatpush.msra.mxu0 0.0
      %157 = vmatpush.msra.mxu0 0.0
      %158 = vmatpush.msra.mxu0 0.0
      %159 = vmatpush.msra.mxu0 0.0
      %160 = vmatpush.msra.mxu0 0.0
      %161 = vmatpush.msra.mxu0 0.0
      %162 = vmatpush.msra.mxu0 %v97
      %163 = vmatmul.f32.gmra.mxu0 %v100
      %v164 = vpop.f32.mrf.mxu0
      %v165 = vadd.f32 0.0, %v164
      %166 = vmatmul.f32.gmra.mxu0 %v103
      %v167 = vpop.f32.mrf.mxu0
      %v168 = vadd.f32 0.0, %v167
      %169 = vmatmul.f32.gmra.mxu0 %v106
      %v170 = vpop.f32.mrf.mxu0
      %v171 = vadd.f32 0.0, %v170
      %172 = vmatmul.f32.gmra.mxu0 %v109
      %v173 = vpop.f32.mrf.mxu0
      %v174 = vadd.f32 0.0, %v173
      %175 = vmatmul.f32.gmra.mxu0 %v112
      %v176 = vpop.f32.mrf.mxu0
      %v177 = vadd.f32 0.0, %v176
      %178 = vmatmul.f32.gmra.mxu0 %v115
      %v179 = vpop.f32.mrf.mxu0
      %v180 = vadd.f32 0.0, %v179
      %181 = vmatmul.f32.gmra.mxu0 %v118
      %v182 = vpop.f32.mrf.mxu0
      %v183 = vadd.f32 0.0, %v182
      %184 = vmatmul.f32.gmra.mxu0 %v121
      %v185 = vpop.f32.mrf.mxu0
      %v186 = vadd.f32 0.0, %v185
      %187 = vmatmul.f32.gmra.mxu0 %v124
      %v188 = vpop.f32.mrf.mxu0
      %v189 = vadd.f32 0.0, %v188
      %190 = vmatmul.f32.gmra.mxu0 %v127
      %v191 = vpop.f32.mrf.mxu0
      %v192 = vadd.f32 0.0, %v191
      %193 = vmatmul.f32.gmra.mxu0 %v130
      %v194 = vpop.f32.mrf.mxu0
      %v195 = vadd.f32 0.0, %v194
      %196 = vmatmul.f32.gmra.mxu0 %v133
      %v197 = vpop.f32.mrf.mxu0
      %v198 = vadd.f32 0.0, %v197
      %199 = vmatmul.f32.gmra.mxu0 %v136
      %v200 = vpop.f32.mrf.mxu0
      %v201 = vadd.f32 0.0, %v200
      %202 = vmatmul.f32.gmra.mxu0 %v139
      %v203 = vpop.f32.mrf.mxu0
      %v204 = vadd.f32 0.0, %v203
      %205 = vmatmul.f32.gmra.mxu0 %v142
      %v206 = vpop.f32.mrf.mxu0
      %v207 = vadd.f32 0.0, %v206
      %208 = vmatmul.f32.gmra.mxu0 %v145
      %v209 = vpop.f32.mrf.mxu0
      %v210 = vadd.f32 0.0, %v209
      %211 = vdwg.mxu0
      %v212 = vld [vmem:[%s1] sm:$0xff]
      %v213 = vld [vmem:[%s1 + $0x8] sm:$0xff]
      %v214 = vld [vmem:[%s1 + $0x10] sm:$0xff]
      %v215 = vld [vmem:[%s1 + $0x18] sm:$0xff]
      %v216 = vld [vmem:[%s1 + $0x20] sm:$0xff]
      %v217 = vld [vmem:[%s1 + $0x28] sm:$0xff]
      %v218 = vld [vmem:[%s1 + $0x30] sm:$0xff]
      %v219 = vld [vmem:[%s1 + $0x38] sm:$0xff]
      %v220 = vld [vmem:[%s1 + $0x40] sm:$0xff]
      %v221 = vld [vmem:[%s1 + $0x48] sm:$0xff]
      %v222 = vld [vmem:[%s1 + $0x50] sm:$0xff]
      %v223 = vld [vmem:[%s1 + $0x58] sm:$0xff]
      %v224 = vld [vmem:[%s1 + $0x60] sm:$0xff]
      %v225 = vld [vmem:[%s1 + $0x68] sm:$0xff]
      %v226 = vld [vmem:[%s1 + $0x70] sm:$0xff]
      %v227 = vld [vmem:[%s1 + $0x78] sm:$0xff]
      %v228 = vadd.f32 %v212, %v165
      %v229 = vadd.f32 %v213, %v168
      %v230 = vadd.f32 %v214, %v171
      %v231 = vadd.f32 %v215, %v174
      %v232 = vadd.f32 %v216, %v177
      %v233 = vadd.f32 %v217, %v180
      %v234 = vadd.f32 %v218, %v183
      %v235 = vadd.f32 %v219, %v186
      %v236 = vadd.f32 %v220, %v189
      %v237 = vadd.f32 %v221, %v192
      %v238 = vadd.f32 %v222, %v195
      %v239 = vadd.f32 %v223, %v198
      %v240 = vadd.f32 %v224, %v201
      %v241 = vadd.f32 %v225, %v204
      %v242 = vadd.f32 %v226, %v207
      %v243 = vadd.f32 %v227, %v210
      %244 = vst [vmem:[#allocation2] sm:$0xff] %v228
      %245 = vst [vmem:[#allocation2 + $0x8] sm:$0xff] %v229
      %246 = vst [vmem:[#allocation2 + $0x10] sm:$0xff] %v230
      %247 = vst [vmem:[#allocation2 + $0x18] sm:$0xff] %v231
      %248 = vst [vmem:[#allocation2 + $0x20] sm:$0xff] %v232
      %249 = vst [vmem:[#allocation2 + $0x28] sm:$0xff] %v233
      %250 = vst [vmem:[#allocation2 + $0x30] sm:$0xff] %v234
      %251 = vst [vmem:[#allocation2 + $0x38] sm:$0xff] %v235
      %252 = vst [vmem:[#allocation2 + $0x40] sm:$0xff] %v236
      %253 = vst [vmem:[#allocation2 + $0x48] sm:$0xff] %v237
      %254 = vst [vmem:[#allocation2 + $0x50] sm:$0xff] %v238
      %255 = vst [vmem:[#allocation2 + $0x58] sm:$0xff] %v239
      %256 = vst [vmem:[#allocation2 + $0x60] sm:$0xff] %v240
      %257 = vst [vmem:[#allocation2 + $0x68] sm:$0xff] %v241
      %258 = vst [vmem:[#allocation2 + $0x70] sm:$0xff] %v242
      %259 = vst [vmem:[#allocation2 + $0x78] sm:$0xff] %v243
      %260 = vst [vmem:[#allocation3] sm:$0xff] 0.0
      %261 = vst [vmem:[#allocation3 + $0x8] sm:$0xff] 0.0
      %262 = vst [vmem:[#allocation3 + $0x10] sm:$0xff] 0.0
      %263 = vst [vmem:[#allocation3 + $0x18] sm:$0xff] 0.0
      %264 = vst [vmem:[#allocation3 + $0x20] sm:$0xff] 0.0
      %265 = vst [vmem:[#allocation3 + $0x28] sm:$0xff] 0.0
      %266 = vst [vmem:[#allocation3 + $0x30] sm:$0xff] 0.0
      %267 = vst [vmem:[#allocation3 + $0x38] sm:$0xff] 0.0
      %268 = vst [vmem:[#allocation3 + $0x40] sm:$0xff] 0.0
      %269 = vst [vmem:[#allocation3 + $0x48] sm:$0xff] 0.0
      %270 = vst [vmem:[#allocation3 + $0x50] sm:$0xff] 0.0
      %271 = vst [vmem:[#allocation3 + $0x58] sm:$0xff] 0.0
      %272 = vst [vmem:[#allocation3 + $0x60] sm:$0xff] 0.0
      %273 = vst [vmem:[#allocation3 + $0x68] sm:$0xff] 0.0
      %274 = vst [vmem:[#allocation3 + $0x70] sm:$0xff] 0.0
      %275 = vst [vmem:[#allocation3 + $0x78] sm:$0xff] 0.0
    $region65: #{gnn_node_virtualnode_forward.5} parent=1 // pred_fallthru
      _
    %v276 = vld [vmem:[%s4] sm:$0xff]
    %v277 = vld [vmem:[%s4 + $0x8] sm:$0xff]
    %v278 = vld [vmem:[%s4 + $0x10] sm:$0xff]
    %v279 = vld [vmem:[%s4 + $0x18] sm:$0xff]
    %v280 = vld [vmem:[%s4 + $0x20] sm:$0xff]
    %v281 = vld [vmem:[%s4 + $0x28] sm:$0xff]
    %v282 = vld [vmem:[%s4 + $0x30] sm:$0xff]
    %v283 = vld [vmem:[%s4 + $0x38] sm:$0xff]
    %v284 = vld [vmem:[%s4 + $0x40] sm:$0xff]
    %v285 = vld [vmem:[%s4 + $0x48] sm:$0xff]
    %v286 = vld [vmem:[%s4 + $0x50] sm:$0xff]
    %v287 = vld [vmem:[%s4 + $0x58] sm:$0xff]
    %v288 = vld [vmem:[%s4 + $0x60] sm:$0xff]
    %v289 = vld [vmem:[%s4 + $0x68] sm:$0xff]
    %v290 = vld [vmem:[%s4 + $0x70] sm:$0xff]
    %v291 = vld [vmem:[%s4 + $0x78] sm:$0xff]
    %v292 = vld [vmem:[%s4 + $0x80] sm:$0xff]
    %v293 = vld [vmem:[%s4 + $0x88] sm:$0xff]
    %v294 = vld [vmem:[%s4 + $0x90] sm:$0xff]
    %v295 = vld [vmem:[%s4 + $0x98] sm:$0xff]
    %v296 = vld [vmem:[%s4 + $0xa0] sm:$0xff]
    %v297 = vld [vmem:[%s4 + $0xa8] sm:$0xff]
    %v298 = vld [vmem:[%s4 + $0xb0] sm:$0xff]
    %v299 = vld [vmem:[%s4 + $0xb8] sm:$0xff]
    %v300 = vld [vmem:[%s4 + $0xc0] sm:$0xff]
    %v301 = vld [vmem:[%s4 + $0xc8] sm:$0xff]
    %v302 = vld [vmem:[%s4 + $0xd0] sm:$0xff]
    %v303 = vld [vmem:[%s4 + $0xd8] sm:$0xff]
    %v304 = vld [vmem:[%s4 + $0xe0] sm:$0xff]
    %v305 = vld [vmem:[%s4 + $0xe8] sm:$0xff]
    %v306 = vld [vmem:[%s4 + $0xf0] sm:$0xff]
    %v307 = vld [vmem:[%s4 + $0xf8] sm:$0xff]
    %v308 = vld [vmem:[%s5] sm:$0xff]
    %v309 = vld [vmem:[%s6] sm:$0x1]
    %v311 = vperm.slane %v309, 0
    %vm313 = vcmask 64512
    %v315 = vsel %vm313, %v276, 0
    %v318 = vsel %vm313, %v277, 0
    %v321 = vsel %vm313, %v278, 0
    %v324 = vsel %vm313, %v279, 0
    %v327 = vsel %vm313, %v280, 0
    %v330 = vsel %vm313, %v281, 0
    %v333 = vsel %vm313, %v282, 0
    %v336 = vsel %vm313, %v283, 0
    %v339 = vsel %vm313, %v284, 0
    %v342 = vsel %vm313, %v285, 0
    %v345 = vsel %vm313, %v286, 0
    %v348 = vsel %vm313, %v287, 0
    %v351 = vsel %vm313, %v288, 0
    %v354 = vsel %vm313, %v289, 0
    %v357 = vsel %vm313, %v290, 0
    %v360 = vsel %vm313, %v291, 0
    %v363 = vsel %vm313, %v292, 0
    %v366 = vsel %vm313, %v293, 0
    %v369 = vsel %vm313, %v294, 0
    %v372 = vsel %vm313, %v295, 0
    %v375 = vsel %vm313, %v296, 0
    %v378 = vsel %vm313, %v297, 0
    %v381 = vsel %vm313, %v298, 0
    %v384 = vsel %vm313, %v299, 0
    %v387 = vsel %vm313, %v300, 0
    %v390 = vsel %vm313, %v301, 0
    %v393 = vsel %vm313, %v302, 0
    %v396 = vsel %vm313, %v303, 0
    %v399 = vsel %vm313, %v304, 0
    %v402 = vsel %vm313, %v305, 0
    %v405 = vsel %vm313, %v306, 0
    %v408 = vsel %vm313, %v307, 0
    %410 = vmatpush.msra.mxu0 0.0
    %411 = vmatpush.msra.mxu0 0.0
    %412 = vmatpush.msra.mxu0 0.0
    %413 = vmatpush.msra.mxu0 0.0
    %414 = vmatpush.msra.mxu0 0.0
    %415 = vmatpush.msra.mxu0 0.0
    %416 = vmatpush.msra.mxu0 0.0
    %417 = vmatpush.msra.mxu0 0.0
    %418 = vmatpush.msra.mxu0 0.0
    %419 = vmatpush.msra.mxu0 0.0
    %420 = vmatpush.msra.mxu0 0.0
    %421 = vmatpush.msra.mxu0 0.0
    %422 = vmatpush.msra.mxu0 0.0
    %423 = vmatpush.msra.mxu0 0.0
    %424 = vmatpush.msra.mxu0 0.0
    %425 = vmatpush.msra.mxu0 %v308
    %426 = vmatmul.f32.gmra.mxu0 %v315
    %v427 = vpop.f32.mrf.mxu0
    %v428 = vadd.f32 %v311, %v427
    %429 = vmatmul.f32.gmra.mxu0 %v318
    %v430 = vpop.f32.mrf.mxu0
    %v431 = vadd.f32 %v311, %v430
    %432 = vmatmul.f32.gmra.mxu0 %v321
    %v433 = vpop.f32.mrf.mxu0
    %v434 = vadd.f32 %v311, %v433
    %435 = vmatmul.f32.gmra.mxu0 %v324
    %v436 = vpop.f32.mrf.mxu0
    %v437 = vadd.f32 %v311, %v436
    %438 = vmatmul.f32.gmra.mxu0 %v327
    %v439 = vpop.f32.mrf.mxu0
    %v440 = vadd.f32 %v311, %v439
    %441 = vmatmul.f32.gmra.mxu0 %v330
    %v442 = vpop.f32.mrf.mxu0
    %v443 = vadd.f32 %v311, %v442
    %444 = vmatmul.f32.gmra.mxu0 %v333
    %v445 = vpop.f32.mrf.mxu0
    %v446 = vadd.f32 %v311, %v445
    %447 = vmatmul.f32.gmra.mxu0 %v336
    %v448 = vpop.f32.mrf.mxu0
    %v449 = vadd.f32 %v311, %v448
    %450 = vmatmul.f32.gmra.mxu0 %v339
    %v451 = vpop.f32.mrf.mxu0
    %v452 = vadd.f32 %v311, %v451
    %453 = vmatmul.f32.gmra.mxu0 %v342
    %v454 = vpop.f32.mrf.mxu0
    %v455 = vadd.f32 %v311, %v454
    %456 = vmatmul.f32.gmra.mxu0 %v345
    %v457 = vpop.f32.mrf.mxu0
    %v458 = vadd.f32 %v311, %v457
    %459 = vmatmul.f32.gmra.mxu0 %v348
    %v460 = vpop.f32.mrf.mxu0
    %v461 = vadd.f32 %v311, %v460
    %462 = vmatmul.f32.gmra.mxu0 %v351
    %v463 = vpop.f32.mrf.mxu0
    %v464 = vadd.f32 %v311, %v463
    %465 = vmatmul.f32.gmra.mxu0 %v354
    %v466 = vpop.f32.mrf.mxu0
    %v467 = vadd.f32 %v311, %v466
    %468 = vmatmul.f32.gmra.mxu0 %v357
    %v469 = vpop.f32.mrf.mxu0
    %v470 = vadd.f32 %v311, %v469
    %471 = vmatmul.f32.gmra.mxu0 %v360
    %v472 = vpop.f32.mrf.mxu0
    %v473 = vadd.f32 %v311, %v472
    %474 = vmatmul.f32.gmra.mxu0 %v363
    %v475 = vpop.f32.mrf.mxu0
    %v476 = vadd.f32 %v311, %v475
    %477 = vmatmul.f32.gmra.mxu0 %v366
    %v478 = vpop.f32.mrf.mxu0
    %v479 = vadd.f32 %v311, %v478
    %480 = vmatmul.f32.gmra.mxu0 %v369
    %v481 = vpop.f32.mrf.mxu0
    %v482 = vadd.f32 %v311, %v481
    %483 = vmatmul.f32.gmra.mxu0 %v372
    %v484 = vpop.f32.mrf.mxu0
    %v485 = vadd.f32 %v311, %v484
    %486 = vmatmul.f32.gmra.mxu0 %v375
    %v487 = vpop.f32.mrf.mxu0
    %v488 = vadd.f32 %v311, %v487
    %489 = vmatmul.f32.gmra.mxu0 %v378
    %v490 = vpop.f32.mrf.mxu0
    %v491 = vadd.f32 %v311, %v490
    %492 = vmatmul.f32.gmra.mxu0 %v381
    %v493 = vpop.f32.mrf.mxu0
    %v494 = vadd.f32 %v311, %v493
    %495 = vmatmul.f32.gmra.mxu0 %v384
    %v496 = vpop.f32.mrf.mxu0
    %v497 = vadd.f32 %v311, %v496
    %498 = vmatmul.f32.gmra.mxu0 %v387
    %v499 = vpop.f32.mrf.mxu0
    %v500 = vadd.f32 %v311, %v499
    %501 = vmatmul.f32.gmra.mxu0 %v390
    %v502 = vpop.f32.mrf.mxu0
    %v503 = vadd.f32 %v311, %v502
    %504 = vmatmul.f32.gmra.mxu0 %v393
    %v505 = vpop.f32.mrf.mxu0
    %v506 = vadd.f32 %v311, %v505
    %507 = vmatmul.f32.gmra.mxu0 %v396
    %v508 = vpop.f32.mrf.mxu0
    %v509 = vadd.f32 %v311, %v508
    %510 = vmatmul.f32.gmra.mxu0 %v399
    %v511 = vpop.f32.mrf.mxu0
    %v512 = vadd.f32 %v311, %v511
    %513 = vmatmul.f32.gmra.mxu0 %v402
    %v514 = vpop.f32.mrf.mxu0
    %v515 = vadd.f32 %v311, %v514
    %516 = vmatmul.f32.gmra.mxu0 %v405
    %v517 = vpop.f32.mrf.mxu0
    %v518 = vadd.f32 %v311, %v517
    %519 = vmatmul.f32.gmra.mxu0 %v408
    %v520 = vpop.f32.mrf.mxu0
    %v521 = vadd.f32 %v311, %v520
    %522 = vdwg.mxu0
    %v523 = vld [vmem:[%s7] sm:$0xff]
    %v524 = vld [vmem:[%s7 + $0x8] sm:$0xff]
    %v525 = vld [vmem:[%s7 + $0x10] sm:$0xff]
    %v526 = vld [vmem:[%s7 + $0x18] sm:$0xff]
    %v527 = vld [vmem:[%s7 + $0x20] sm:$0xff]
    %v528 = vld [vmem:[%s7 + $0x28] sm:$0xff]
    %v529 = vld [vmem:[%s7 + $0x30] sm:$0xff]
    %v530 = vld [vmem:[%s7 + $0x38] sm:$0xff]
    %v531 = vld [vmem:[%s7 + $0x40] sm:$0xff]
    %v532 = vld [vmem:[%s7 + $0x48] sm:$0xff]
    %v533 = vld [vmem:[%s7 + $0x50] sm:$0xff]
    %v534 = vld [vmem:[%s7 + $0x58] sm:$0xff]
    %v535 = vld [vmem:[%s7 + $0x60] sm:$0xff]
    %v536 = vld [vmem:[%s7 + $0x68] sm:$0xff]
    %v537 = vld [vmem:[%s7 + $0x70] sm:$0xff]
    %v538 = vld [vmem:[%s7 + $0x78] sm:$0xff]
    %v539 = vld [vmem:[%s7 + $0x80] sm:$0xff]
    %v540 = vld [vmem:[%s7 + $0x88] sm:$0xff]
    %v541 = vld [vmem:[%s7 + $0x90] sm:$0xff]
    %v542 = vld [vmem:[%s7 + $0x98] sm:$0xff]
    %v543 = vld [vmem:[%s7 + $0xa0] sm:$0xff]
    %v544 = vld [vmem:[%s7 + $0xa8] sm:$0xff]
    %v545 = vld [vmem:[%s7 + $0xb0] sm:$0xff]
    %v546 = vld [vmem:[%s7 + $0xb8] sm:$0xff]
    %v547 = vld [vmem:[%s7 + $0xc0] sm:$0xff]
    %v548 = vld [vmem:[%s7 + $0xc8] sm:$0xff]
    %v549 = vld [vmem:[%s7 + $0xd0] sm:$0xff]
    %v550 = vld [vmem:[%s7 + $0xd8] sm:$0xff]
    %v551 = vld [vmem:[%s7 + $0xe0] sm:$0xff]
    %v552 = vld [vmem:[%s7 + $0xe8] sm:$0xff]
    %v553 = vld [vmem:[%s7 + $0xf0] sm:$0xff]
    %v554 = vld [vmem:[%s7 + $0xf8] sm:$0xff]
    %v555 = vld [vmem:[#allocation2] sm:$0xff]
    %v556 = vld [vmem:[#allocation2 + $0x8] sm:$0xff]
    %v557 = vld [vmem:[#allocation2 + $0x10] sm:$0xff]
    %v558 = vld [vmem:[#allocation2 + $0x18] sm:$0xff]
    %v559 = vld [vmem:[#allocation2 + $0x20] sm:$0xff]
    %v560 = vld [vmem:[#allocation2 + $0x28] sm:$0xff]
    %v561 = vld [vmem:[#allocation2 + $0x30] sm:$0xff]
    %v562 = vld [vmem:[#allocation2 + $0x38] sm:$0xff]
    %v563 = vld [vmem:[#allocation2 + $0x40] sm:$0xff]
    %v564 = vld [vmem:[#allocation2 + $0x48] sm:$0xff]
    %v565 = vld [vmem:[#allocation2 + $0x50] sm:$0xff]
    %v566 = vld [vmem:[#allocation2 + $0x58] sm:$0xff]
    %v567 = vld [vmem:[#allocation2 + $0x60] sm:$0xff]
    %v568 = vld [vmem:[#allocation2 + $0x68] sm:$0xff]
    %v569 = vld [vmem:[#allocation2 + $0x70] sm:$0xff]
    %v570 = vld [vmem:[#allocation2 + $0x78] sm:$0xff]
    %571 = vmatpush.msra.mxu0 %v570
    %572 = vmatpush.msra.mxu0 %v569
    %573 = vmatpush.msra.mxu0 %v568
    %574 = vmatpush.msra.mxu0 %v567
    %575 = vmatpush.msra.mxu0 %v566
    %576 = vmatpush.msra.mxu0 %v565
    %577 = vmatpush.msra.mxu0 %v564
    %578 = vmatpush.msra.mxu0 %v563
    %579 = vmatpush.msra.mxu0 %v562
    %580 = vmatpush.msra.mxu0 %v561
    %581 = vmatpush.msra.mxu0 %v560
    %582 = vmatpush.msra.mxu0 %v559
    %583 = vmatpush.msra.mxu0 %v558
    %584 = vmatpush.msra.mxu0 %v557
    %585 = vmatpush.msra.mxu0 %v556
    %586 = vmatpush.msra.mxu0 %v555
    %587 = vmatmul.f32.gmra.mxu0 %v523
    %v588 = vpop.f32.mrf.mxu0
    %v589 = vadd.f32 %v428, %v588
    %590 = vmatmul.f32.gmra.mxu0 %v524
    %v591 = vpop.f32.mrf.mxu0
    %v592 = vadd.f32 %v431, %v591
    %593 = vmatmul.f32.gmra.mxu0 %v525
    %v594 = vpop.f32.mrf.mxu0
    %v595 = vadd.f32 %v434, %v594
    %596 = vmatmul.f32.gmra.mxu0 %v526
    %v597 = vpop.f32.mrf.mxu0
    %v598 = vadd.f32 %v437, %v597
    %599 = vmatmul.f32.gmra.mxu0 %v527
    %v600 = vpop.f32.mrf.mxu0
    %v601 = vadd.f32 %v440, %v600
    %602 = vmatmul.f32.gmra.mxu0 %v528
    %v603 = vpop.f32.mrf.mxu0
    %v604 = vadd.f32 %v443, %v603
    %605 = vmatmul.f32.gmra.mxu0 %v529
    %v606 = vpop.f32.mrf.mxu0
    %v607 = vadd.f32 %v446, %v606
    %608 = vmatmul.f32.gmra.mxu0 %v530
    %v609 = vpop.f32.mrf.mxu0
    %v610 = vadd.f32 %v449, %v609
    %611 = vmatmul.f32.gmra.mxu0 %v531
    %v612 = vpop.f32.mrf.mxu0
    %v613 = vadd.f32 %v452, %v612
    %614 = vmatmul.f32.gmra.mxu0 %v532
    %v615 = vpop.f32.mrf.mxu0
    %v616 = vadd.f32 %v455, %v615
    %617 = vmatmul.f32.gmra.mxu0 %v533
    %v618 = vpop.f32.mrf.mxu0
    %v619 = vadd.f32 %v458, %v618
    %620 = vmatmul.f32.gmra.mxu0 %v534
    %v621 = vpop.f32.mrf.mxu0
    %v622 = vadd.f32 %v461, %v621
    %623 = vmatmul.f32.gmra.mxu0 %v535
    %v624 = vpop.f32.mrf.mxu0
    %v625 = vadd.f32 %v464, %v624
    %626 = vmatmul.f32.gmra.mxu0 %v536
    %v627 = vpop.f32.mrf.mxu0
    %v628 = vadd.f32 %v467, %v627
    %629 = vmatmul.f32.gmra.mxu0 %v537
    %v630 = vpop.f32.mrf.mxu0
    %v631 = vadd.f32 %v470, %v630
    %632 = vmatmul.f32.gmra.mxu0 %v538
    %v633 = vpop.f32.mrf.mxu0
    %v634 = vadd.f32 %v473, %v633
    %635 = vmatmul.f32.gmra.mxu0 %v539
    %v636 = vpop.f32.mrf.mxu0
    %v637 = vadd.f32 %v476, %v636
    %638 = vmatmul.f32.gmra.mxu0 %v540
    %v639 = vpop.f32.mrf.mxu0
    %v640 = vadd.f32 %v479, %v639
    %641 = vmatmul.f32.gmra.mxu0 %v541
    %v642 = vpop.f32.mrf.mxu0
    %v643 = vadd.f32 %v482, %v642
    %644 = vmatmul.f32.gmra.mxu0 %v542
    %v645 = vpop.f32.mrf.mxu0
    %v646 = vadd.f32 %v485, %v645
    %647 = vmatmul.f32.gmra.mxu0 %v543
    %v648 = vpop.f32.mrf.mxu0
    %v649 = vadd.f32 %v488, %v648
    %650 = vmatmul.f32.gmra.mxu0 %v544
    %v651 = vpop.f32.mrf.mxu0
    %v652 = vadd.f32 %v491, %v651
    %653 = vmatmul.f32.gmra.mxu0 %v545
    %v654 = vpop.f32.mrf.mxu0
    %v655 = vadd.f32 %v494, %v654
    %656 = vmatmul.f32.gmra.mxu0 %v546
    %v657 = vpop.f32.mrf.mxu0
    %v658 = vadd.f32 %v497, %v657
    %659 = vmatmul.f32.gmra.mxu0 %v547
    %v660 = vpop.f32.mrf.mxu0
    %v661 = vadd.f32 %v500, %v660
    %662 = vmatmul.f32.gmra.mxu0 %v548
    %v663 = vpop.f32.mrf.mxu0
    %v664 = vadd.f32 %v503, %v663
    %665 = vmatmul.f32.gmra.mxu0 %v549
    %v666 = vpop.f32.mrf.mxu0
    %v667 = vadd.f32 %v506, %v666
    %668 = vmatmul.f32.gmra.mxu0 %v550
    %v669 = vpop.f32.mrf.mxu0
    %v670 = vadd.f32 %v509, %v669
    %671 = vmatmul.f32.gmra.mxu0 %v551
    %v672 = vpop.f32.mrf.mxu0
    %v673 = vadd.f32 %v512, %v672
    %674 = vmatmul.f32.gmra.mxu0 %v552
    %v675 = vpop.f32.mrf.mxu0
    %v676 = vadd.f32 %v515, %v675
    %677 = vmatmul.f32.gmra.mxu0 %v553
    %v678 = vpop.f32.mrf.mxu0
    %v679 = vadd.f32 %v518, %v678
    %680 = vmatmul.f32.gmra.mxu0 %v554
    %v681 = vpop.f32.mrf.mxu0
    %v682 = vadd.f32 %v521, %v681
    %683 = vdwg.mxu0
    %v684 = vmax.f32 %v589, 0.0
    %v685 = vmax.f32 %v592, 0.0
    %v686 = vmax.f32 %v595, 0.0
    %v687 = vmax.f32 %v598, 0.0
    %v688 = vmax.f32 %v601, 0.0
    %v689 = vmax.f32 %v604, 0.0
    %v690 = vmax.f32 %v607, 0.0
    %v691 = vmax.f32 %v610, 0.0
    %v692 = vmax.f32 %v613, 0.0
    %v693 = vmax.f32 %v616, 0.0
    %v694 = vmax.f32 %v619, 0.0
    %v695 = vmax.f32 %v622, 0.0
    %v696 = vmax.f32 %v625, 0.0
    %v697 = vmax.f32 %v628, 0.0
    %v698 = vmax.f32 %v631, 0.0
    %v699 = vmax.f32 %v634, 0.0
    %v700 = vmax.f32 %v637, 0.0
    %v701 = vmax.f32 %v640, 0.0
    %v702 = vmax.f32 %v643, 0.0
    %v703 = vmax.f32 %v646, 0.0
    %v704 = vmax.f32 %v649, 0.0
    %v705 = vmax.f32 %v652, 0.0
    %v706 = vmax.f32 %v655, 0.0
    %v707 = vmax.f32 %v658, 0.0
    %v708 = vmax.f32 %v661, 0.0
    %v709 = vmax.f32 %v664, 0.0
    %v710 = vmax.f32 %v667, 0.0
    %v711 = vmax.f32 %v670, 0.0
    %v712 = vmax.f32 %v673, 0.0
    %v713 = vmax.f32 %v676, 0.0
    %v714 = vmax.f32 %v679, 0.0
    %v715 = vmax.f32 %v682, 0.0
    %v716 = vld [vmem:[#allocation3] sm:$0xff]
    %v717 = vld [vmem:[#allocation3 + $0x8] sm:$0xff]
    %v718 = vld [vmem:[#allocation3 + $0x10] sm:$0xff]
    %v719 = vld [vmem:[#allocation3 + $0x18] sm:$0xff]
    %v720 = vld [vmem:[#allocation3 + $0x20] sm:$0xff]
    %v721 = vld [vmem:[#allocation3 + $0x28] sm:$0xff]
    %v722 = vld [vmem:[#allocation3 + $0x30] sm:$0xff]
    %v723 = vld [vmem:[#allocation3 + $0x38] sm:$0xff]
    %v724 = vld [vmem:[#allocation3 + $0x40] sm:$0xff]
    %v725 = vld [vmem:[#allocation3 + $0x48] sm:$0xff]
    %v726 = vld [vmem:[#allocation3 + $0x50] sm:$0xff]
    %v727 = vld [vmem:[#allocation3 + $0x58] sm:$0xff]
    %v728 = vld [vmem:[#allocation3 + $0x60] sm:$0xff]
    %v729 = vld [vmem:[#allocation3 + $0x68] sm:$0xff]
    %v730 = vld [vmem:[#allocation3 + $0x70] sm:$0xff]
    %v731 = vld [vmem:[#allocation3 + $0x78] sm:$0xff]
    %v732 = vld [vmem:[%s8] sm:$0xff]
    %v733 = vld [vmem:[%s8 + $0x8] sm:$0xff]
    %v734 = vld [vmem:[%s8 + $0x10] sm:$0xff]
    %v735 = vld [vmem:[%s8 + $0x18] sm:$0xff]
    %v736 = vld [vmem:[%s8 + $0x20] sm:$0xff]
    %v737 = vld [vmem:[%s8 + $0x28] sm:$0xff]
    %v738 = vld [vmem:[%s8 + $0x30] sm:$0xff]
    %v739 = vld [vmem:[%s8 + $0x38] sm:$0xff]
    %v740 = vld [vmem:[%s8 + $0x40] sm:$0xff]
    %v741 = vld [vmem:[%s8 + $0x48] sm:$0xff]
    %v742 = vld [vmem:[%s8 + $0x50] sm:$0xff]
    %v743 = vld [vmem:[%s8 + $0x58] sm:$0xff]
    %v744 = vld [vmem:[%s8 + $0x60] sm:$0xff]
    %v745 = vld [vmem:[%s8 + $0x68] sm:$0xff]
    %v746 = vld [vmem:[%s8 + $0x70] sm:$0xff]
    %v747 = vld [vmem:[%s8 + $0x78] sm:$0xff]
    %v748 = vld [vmem:[%s8 + $0x80] sm:$0xff]
    %v749 = vld [vmem:[%s8 + $0x88] sm:$0xff]
    %v750 = vld [vmem:[%s8 + $0x90] sm:$0xff]
    %v751 = vld [vmem:[%s8 + $0x98] sm:$0xff]
    %v752 = vld [vmem:[%s8 + $0xa0] sm:$0xff]
    %v753 = vld [vmem:[%s8 + $0xa8] sm:$0xff]
    %v754 = vld [vmem:[%s8 + $0xb0] sm:$0xff]
    %v755 = vld [vmem:[%s8 + $0xb8] sm:$0xff]
    %v756 = vld [vmem:[%s8 + $0xc0] sm:$0xff]
    %v757 = vld [vmem:[%s8 + $0xc8] sm:$0xff]
    %v758 = vld [vmem:[%s8 + $0xd0] sm:$0xff]
    %v759 = vld [vmem:[%s8 + $0xd8] sm:$0xff]
    %v760 = vld [vmem:[%s8 + $0xe0] sm:$0xff]
    %v761 = vld [vmem:[%s8 + $0xe8] sm:$0xff]
    %v762 = vld [vmem:[%s8 + $0xf0] sm:$0xff]
    %v763 = vld [vmem:[%s8 + $0xf8] sm:$0xff]
    %764 = vmatpush.msra.mxu0 %v699
    %765 = vmatpush.msra.mxu0 %v698
    %766 = vmatpush.msra.mxu0 %v697
    %767 = vmatpush.msra.mxu0 %v696
    %768 = vmatpush.msra.mxu0 %v695
    %769 = vmatpush.msra.mxu0 %v694
    %770 = vmatpush.msra.mxu0 %v693
    %771 = vmatpush.msra.mxu0 %v692
    %772 = vmatpush.msra.mxu0 %v691
    %773 = vmatpush.msra.mxu0 %v690
    %774 = vmatpush.msra.mxu0 %v689
    %775 = vmatpush.msra.mxu0 %v688
    %776 = vmatpush.msra.mxu0 %v687
    %777 = vmatpush.msra.mxu0 %v686
    %778 = vmatpush.msra.mxu0 %v685
    %779 = vmatpush.msra.mxu0 %v684
    %780 = vmatmul.f32.gmra.mxu0 %v732
    %v781 = vpop.f32.mrf.mxu0
    %v782 = vadd.f32 0.0, %v781
    %783 = vmatmul.f32.gmra.mxu0 %v734
    %v784 = vpop.f32.mrf.mxu0
    %v785 = vadd.f32 0.0, %v784
    %786 = vmatmul.f32.gmra.mxu0 %v736
    %v787 = vpop.f32.mrf.mxu0
    %v788 = vadd.f32 0.0, %v787
    %789 = vmatmul.f32.gmra.mxu0 %v738
    %v790 = vpop.f32.mrf.mxu0
    %v791 = vadd.f32 0.0, %v790
    %792 = vmatmul.f32.gmra.mxu0 %v740
    %v793 = vpop.f32.mrf.mxu0
    %v794 = vadd.f32 0.0, %v793
    %795 = vmatmul.f32.gmra.mxu0 %v742
    %v796 = vpop.f32.mrf.mxu0
    %v797 = vadd.f32 0.0, %v796
    %798 = vmatmul.f32.gmra.mxu0 %v744
    %v799 = vpop.f32.mrf.mxu0
    %v800 = vadd.f32 0.0, %v799
    %801 = vmatmul.f32.gmra.mxu0 %v746
    %v802 = vpop.f32.mrf.mxu0
    %v803 = vadd.f32 0.0, %v802
    %804 = vmatmul.f32.gmra.mxu0 %v748
    %v805 = vpop.f32.mrf.mxu0
    %v806 = vadd.f32 0.0, %v805
    %807 = vmatmul.f32.gmra.mxu0 %v750
    %v808 = vpop.f32.mrf.mxu0
    %v809 = vadd.f32 0.0, %v808
    %810 = vmatmul.f32.gmra.mxu0 %v752
    %v811 = vpop.f32.mrf.mxu0
    %v812 = vadd.f32 0.0, %v811
    %813 = vmatmul.f32.gmra.mxu0 %v754
    %v814 = vpop.f32.mrf.mxu0
    %v815 = vadd.f32 0.0, %v814
    %816 = vmatmul.f32.gmra.mxu0 %v756
    %v817 = vpop.f32.mrf.mxu0
    %v818 = vadd.f32 0.0, %v817
    %819 = vmatmul.f32.gmra.mxu0 %v758
    %v820 = vpop.f32.mrf.mxu0
    %v821 = vadd.f32 0.0, %v820
    %822 = vmatmul.f32.gmra.mxu0 %v760
    %v823 = vpop.f32.mrf.mxu0
    %v824 = vadd.f32 0.0, %v823
    %825 = vmatmul.f32.gmra.mxu0 %v762
    %v826 = vpop.f32.mrf.mxu0
    %v827 = vadd.f32 0.0, %v826
    %828 = vdwg.mxu0
    %829 = vmatpush.msra.mxu0 %v715
    %830 = vmatpush.msra.mxu0 %v714
    %831 = vmatpush.msra.mxu0 %v713
    %832 = vmatpush.msra.mxu0 %v712
    %833 = vmatpush.msra.mxu0 %v711
    %834 = vmatpush.msra.mxu0 %v710
    %835 = vmatpush.msra.mxu0 %v709
    %836 = vmatpush.msra.mxu0 %v708
    %837 = vmatpush.msra.mxu0 %v707
    %838 = vmatpush.msra.mxu0 %v706
    %839 = vmatpush.msra.mxu0 %v705
    %840 = vmatpush.msra.mxu0 %v704
    %841 = vmatpush.msra.mxu0 %v703
    %842 = vmatpush.msra.mxu0 %v702
    %843 = vmatpush.msra.mxu0 %v701
    %844 = vmatpush.msra.mxu0 %v700
    %845 = vmatmul.f32.gmra.mxu0 %v733
    %v846 = vpop.f32.mrf.mxu0
    %v847 = vadd.f32 %v782, %v846
    %848 = vmatmul.f32.gmra.mxu0 %v735
    %v849 = vpop.f32.mrf.mxu0
    %v850 = vadd.f32 %v785, %v849
    %851 = vmatmul.f32.gmra.mxu0 %v737
    %v852 = vpop.f32.mrf.mxu0
    %v853 = vadd.f32 %v788, %v852
    %854 = vmatmul.f32.gmra.mxu0 %v739
    %v855 = vpop.f32.mrf.mxu0
    %v856 = vadd.f32 %v791, %v855
    %857 = vmatmul.f32.gmra.mxu0 %v741
    %v858 = vpop.f32.mrf.mxu0
    %v859 = vadd.f32 %v794, %v858
    %860 = vmatmul.f32.gmra.mxu0 %v743
    %v861 = vpop.f32.mrf.mxu0
    %v862 = vadd.f32 %v797, %v861
    %863 = vmatmul.f32.gmra.mxu0 %v745
    %v864 = vpop.f32.mrf.mxu0
    %v865 = vadd.f32 %v800, %v864
    %866 = vmatmul.f32.gmra.mxu0 %v747
    %v867 = vpop.f32.mrf.mxu0
    %v868 = vadd.f32 %v803, %v867
    %869 = vmatmul.f32.gmra.mxu0 %v749
    %v870 = vpop.f32.mrf.mxu0
    %v871 = vadd.f32 %v806, %v870
    %872 = vmatmul.f32.gmra.mxu0 %v751
    %v873 = vpop.f32.mrf.mxu0
    %v874 = vadd.f32 %v809, %v873
    %875 = vmatmul.f32.gmra.mxu0 %v753
    %v876 = vpop.f32.mrf.mxu0
    %v877 = vadd.f32 %v812, %v876
    %878 = vmatmul.f32.gmra.mxu0 %v755
    %v879 = vpop.f32.mrf.mxu0
    %v880 = vadd.f32 %v815, %v879
    %881 = vmatmul.f32.gmra.mxu0 %v757
    %v882 = vpop.f32.mrf.mxu0
    %v883 = vadd.f32 %v818, %v882
    %884 = vmatmul.f32.gmra.mxu0 %v759
    %v885 = vpop.f32.mrf.mxu0
    %v886 = vadd.f32 %v821, %v885
    %887 = vmatmul.f32.gmra.mxu0 %v761
    %v888 = vpop.f32.mrf.mxu0
    %v889 = vadd.f32 %v824, %v888
    %890 = vmatmul.f32.gmra.mxu0 %v763
    %v891 = vpop.f32.mrf.mxu0
    %v892 = vadd.f32 %v827, %v891
    %893 = vdwg.mxu0
    %v894 = vadd.f32 %v716, %v847
    %v895 = vadd.f32 %v717, %v850
    %v896 = vadd.f32 %v718, %v853
    %v897 = vadd.f32 %v719, %v856
    %v898 = vadd.f32 %v720, %v859
    %v899 = vadd.f32 %v721, %v862
    %v900 = vadd.f32 %v722, %v865
    %v901 = vadd.f32 %v723, %v868
    %v902 = vadd.f32 %v724, %v871
    %v903 = vadd.f32 %v725, %v874
    %v904 = vadd.f32 %v726, %v877
    %v905 = vadd.f32 %v727, %v880
    %v906 = vadd.f32 %v728, %v883
    %v907 = vadd.f32 %v729, %v886
    %v908 = vadd.f32 %v730, %v889
    %v909 = vadd.f32 %v731, %v892
    %910 = vst [vmem:[#allocation3] sm:$0xff] %v894
    %911 = vst [vmem:[#allocation3 + $0x8] sm:$0xff] %v895
    %912 = vst [vmem:[#allocation3 + $0x10] sm:$0xff] %v896
    %913 = vst [vmem:[#allocation3 + $0x18] sm:$0xff] %v897
    %914 = vst [vmem:[#allocation3 + $0x20] sm:$0xff] %v898
    %915 = vst [vmem:[#allocation3 + $0x28] sm:$0xff] %v899
    %916 = vst [vmem:[#allocation3 + $0x30] sm:$0xff] %v900
    %917 = vst [vmem:[#allocation3 + $0x38] sm:$0xff] %v901
    %918 = vst [vmem:[#allocation3 + $0x40] sm:$0xff] %v902
    %919 = vst [vmem:[#allocation3 + $0x48] sm:$0xff] %v903
    %920 = vst [vmem:[#allocation3 + $0x50] sm:$0xff] %v904
    %921 = vst [vmem:[#allocation3 + $0x58] sm:$0xff] %v905
    %922 = vst [vmem:[#allocation3 + $0x60] sm:$0xff] %v906
    %923 = vst [vmem:[#allocation3 + $0x68] sm:$0xff] %v907
    %924 = vst [vmem:[#allocation3 + $0x70] sm:$0xff] %v908
    %925 = vst [vmem:[#allocation3 + $0x78] sm:$0xff] %v909
    // Predicated region
    $region66: #{gnn_node_virtualnode_forward.5} parent=1 // pred_check
      %p926 = pneg %p77
    $region67: #{gnn_node_virtualnode_forward.5} parent=1 // pred_check_branch
      %928 = sbr.rel (%p926) target = $region69
    $region68: #{gnn_node_virtualnode_forward.5} parent=1 // pred_region
      %s929 = sld [smem:[#allocation4]]
      %v930 = vld [vmem:[#allocation2] sm:$0xff]
      %v931 = vld [vmem:[#allocation2 + $0x8] sm:$0xff]
      %v932 = vld [vmem:[#allocation2 + $0x10] sm:$0xff]
      %v933 = vld [vmem:[#allocation2 + $0x18] sm:$0xff]
      %v934 = vld [vmem:[#allocation2 + $0x20] sm:$0xff]
      %v935 = vld [vmem:[#allocation2 + $0x28] sm:$0xff]
      %v936 = vld [vmem:[#allocation2 + $0x30] sm:$0xff]
      %v937 = vld [vmem:[#allocation2 + $0x38] sm:$0xff]
      %v938 = vld [vmem:[#allocation2 + $0x40] sm:$0xff]
      %v939 = vld [vmem:[#allocation2 + $0x48] sm:$0xff]
      %v940 = vld [vmem:[#allocation2 + $0x50] sm:$0xff]
      %v941 = vld [vmem:[#allocation2 + $0x58] sm:$0xff]
      %v942 = vld [vmem:[#allocation2 + $0x60] sm:$0xff]
      %v943 = vld [vmem:[#allocation2 + $0x68] sm:$0xff]
      %v944 = vld [vmem:[#allocation2 + $0x70] sm:$0xff]
      %v945 = vld [vmem:[#allocation2 + $0x78] sm:$0xff]
      %v946 = vstv %s929
      %v947 = vmul.f32 %v946, %v930
      %v948 = vmul.f32 %v946, %v931
      %v949 = vmul.f32 %v946, %v932
      %v950 = vmul.f32 %v946, %v933
      %v951 = vmul.f32 %v946, %v934
      %v952 = vmul.f32 %v946, %v935
      %v953 = vmul.f32 %v946, %v936
      %v954 = vmul.f32 %v946, %v937
      %v955 = vmul.f32 %v946, %v938
      %v956 = vmul.f32 %v946, %v939
      %v957 = vmul.f32 %v946, %v940
      %v958 = vmul.f32 %v946, %v941
      %v959 = vmul.f32 %v946, %v942
      %v960 = vmul.f32 %v946, %v943
      %v961 = vmul.f32 %v946, %v944
      %v962 = vmul.f32 %v946, %v945
      %v963 = vld [vmem:[#allocation3] sm:$0xff]
      %v964 = vld [vmem:[#allocation3 + $0x8] sm:$0xff]
      %v965 = vld [vmem:[#allocation3 + $0x10] sm:$0xff]
      %v966 = vld [vmem:[#allocation3 + $0x18] sm:$0xff]
      %v967 = vld [vmem:[#allocation3 + $0x20] sm:$0xff]
      %v968 = vld [vmem:[#allocation3 + $0x28] sm:$0xff]
      %v969 = vld [vmem:[#allocation3 + $0x30] sm:$0xff]
      %v970 = vld [vmem:[#allocation3 + $0x38] sm:$0xff]
      %v971 = vld [vmem:[#allocation3 + $0x40] sm:$0xff]
      %v972 = vld [vmem:[#allocation3 + $0x48] sm:$0xff]
      %v973 = vld [vmem:[#allocation3 + $0x50] sm:$0xff]
      %v974 = vld [vmem:[#allocation3 + $0x58] sm:$0xff]
      %v975 = vld [vmem:[#allocation3 + $0x60] sm:$0xff]
      %v976 = vld [vmem:[#allocation3 + $0x68] sm:$0xff]
      %v977 = vld [vmem:[#allocation3 + $0x70] sm:$0xff]
      %v978 = vld [vmem:[#allocation3 + $0x78] sm:$0xff]
      %v979 = vadd.f32 %v947, %v963
      %v980 = vadd.f32 %v948, %v964
      %v981 = vadd.f32 %v949, %v965
      %v982 = vadd.f32 %v950, %v966
      %v983 = vadd.f32 %v951, %v967
      %v984 = vadd.f32 %v952, %v968
      %v985 = vadd.f32 %v953, %v969
      %v986 = vadd.f32 %v954, %v970
      %v987 = vadd.f32 %v955, %v971
      %v988 = vadd.f32 %v956, %v972
      %v989 = vadd.f32 %v957, %v973
      %v990 = vadd.f32 %v958, %v974
      %v991 = vadd.f32 %v959, %v975
      %v992 = vadd.f32 %v960, %v976
      %v993 = vadd.f32 %v961, %v977
      %v994 = vadd.f32 %v962, %v978
      %v995 = vld [vmem:[#allocation5] sm:$0xff]
      %v996 = vld [vmem:[#allocation5 + $0x8] sm:$0xff]
      %v997 = vld [vmem:[#allocation5 + $0x10] sm:$0xff]
      %v998 = vld [vmem:[#allocation5 + $0x18] sm:$0xff]
      %v999 = vld [vmem:[#allocation5 + $0x20] sm:$0xff]
      %v1000 = vld [vmem:[#allocation5 + $0x28] sm:$0xff]
      %v1001 = vld [vmem:[#allocation5 + $0x30] sm:$0xff]
      %v1002 = vld [vmem:[#allocation5 + $0x38] sm:$0xff]
      %v1003 = vld [vmem:[#allocation5 + $0x40] sm:$0xff]
      %v1004 = vld [vmem:[#allocation5 + $0x48] sm:$0xff]
      %v1005 = vld [vmem:[#allocation5 + $0x50] sm:$0xff]
      %v1006 = vld [vmem:[#allocation5 + $0x58] sm:$0xff]
      %v1007 = vld [vmem:[#allocation5 + $0x60] sm:$0xff]
      %v1008 = vld [vmem:[#allocation5 + $0x68] sm:$0xff]
      %v1009 = vld [vmem:[#allocation5 + $0x70] sm:$0xff]
      %v1010 = vld [vmem:[#allocation5 + $0x78] sm:$0xff]
      %v1011 = vld [vmem:[#allocation5 + $0x80] sm:$0xff]
      %v1012 = vld [vmem:[#allocation5 + $0x88] sm:$0xff]
      %v1013 = vld [vmem:[#allocation5 + $0x90] sm:$0xff]
      %v1014 = vld [vmem:[#allocation5 + $0x98] sm:$0xff]
      %v1015 = vld [vmem:[#allocation5 + $0xa0] sm:$0xff]
      %v1016 = vld [vmem:[#allocation5 + $0xa8] sm:$0xff]
      %v1017 = vld [vmem:[#allocation5 + $0xb0] sm:$0xff]
      %v1018 = vld [vmem:[#allocation5 + $0xb8] sm:$0xff]
      %v1019 = vld [vmem:[#allocation5 + $0xc0] sm:$0xff]
      %v1020 = vld [vmem:[#allocation5 + $0xc8] sm:$0xff]
      %v1021 = vld [vmem:[#allocation5 + $0xd0] sm:$0xff]
      %v1022 = vld [vmem:[#allocation5 + $0xd8] sm:$0xff]
      %v1023 = vld [vmem:[#allocation5 + $0xe0] sm:$0xff]
      %v1024 = vld [vmem:[#allocation5 + $0xe8] sm:$0xff]
      %v1025 = vld [vmem:[#allocation5 + $0xf0] sm:$0xff]
      %v1026 = vld [vmem:[#allocation5 + $0xf8] sm:$0xff]
      %v1027 = vld [vmem:[%s10] sm:$0x3]
      %v1029 = vperm.slane %v1027, 0
      %v1030 = vperm.slane %v1027, 1
      %1033 = vmatpush.msra.mxu0 %v1025
      %1034 = vmatpush.msra.mxu0 %v1023
      %1035 = vmatpush.msra.mxu0 %v1021
      %1036 = vmatpush.msra.mxu0 %v1019
      %1037 = vmatpush.msra.mxu0 %v1017
      %1038 = vmatpush.msra.mxu0 %v1015
      %1039 = vmatpush.msra.mxu0 %v1013
      %1040 = vmatpush.msra.mxu0 %v1011
      %1041 = vmatpush.msra.mxu0 %v1009
      %1042 = vmatpush.msra.mxu0 %v1007
      %1043 = vmatpush.msra.mxu0 %v1005
      %1044 = vmatpush.msra.mxu0 %v1003
      %1045 = vmatpush.msra.mxu0 %v1001
      %1046 = vmatpush.msra.mxu0 %v999
      %1047 = vmatpush.msra.mxu0 %v997
      %1048 = vmatpush.msra.mxu0 %v995
      %1049 = vmatmul.f32.gmra.mxu0 %v979
      %v1050 = vpop.f32.mrf.mxu0
      %v1051 = vadd.f32 %v1029, %v1050
      %1052 = vmatmul.f32.gmra.mxu0 %v980
      %v1053 = vpop.f32.mrf.mxu0
      %v1054 = vadd.f32 %v1029, %v1053
      %1055 = vmatmul.f32.gmra.mxu0 %v981
      %v1056 = vpop.f32.mrf.mxu0
      %v1057 = vadd.f32 %v1029, %v1056
      %1058 = vmatmul.f32.gmra.mxu0 %v982
      %v1059 = vpop.f32.mrf.mxu0
      %v1060 = vadd.f32 %v1029, %v1059
      %1061 = vmatmul.f32.gmra.mxu0 %v983
      %v1062 = vpop.f32.mrf.mxu0
      %v1063 = vadd.f32 %v1029, %v1062
      %1064 = vmatmul.f32.gmra.mxu0 %v984
      %v1065 = vpop.f32.mrf.mxu0
      %v1066 = vadd.f32 %v1029, %v1065
      %1067 = vmatmul.f32.gmra.mxu0 %v985
      %v1068 = vpop.f32.mrf.mxu0
      %v1069 = vadd.f32 %v1029, %v1068
      %1070 = vmatmul.f32.gmra.mxu0 %v986
      %v1071 = vpop.f32.mrf.mxu0
      %v1072 = vadd.f32 %v1029, %v1071
      %1073 = vmatmul.f32.gmra.mxu0 %v987
      %v1074 = vpop.f32.mrf.mxu0
      %v1075 = vadd.f32 %v1029, %v1074
      %1076 = vmatmul.f32.gmra.mxu0 %v988
      %v1077 = vpop.f32.mrf.mxu0
      %v1078 = vadd.f32 %v1029, %v1077
      %1079 = vmatmul.f32.gmra.mxu0 %v989
      %v1080 = vpop.f32.mrf.mxu0
      %v1081 = vadd.f32 %v1029, %v1080
      %1082 = vmatmul.f32.gmra.mxu0 %v990
      %v1083 = vpop.f32.mrf.mxu0
      %v1084 = vadd.f32 %v1029, %v1083
      %1085 = vmatmul.f32.gmra.mxu0 %v991
      %v1086 = vpop.f32.mrf.mxu0
      %v1087 = vadd.f32 %v1029, %v1086
      %1088 = vmatmul.f32.gmra.mxu0 %v992
      %v1089 = vpop.f32.mrf.mxu0
      %v1090 = vadd.f32 %v1029, %v1089
      %1091 = vmatmul.f32.gmra.mxu0 %v993
      %v1092 = vpop.f32.mrf.mxu0
      %v1093 = vadd.f32 %v1029, %v1092
      %1094 = vmatmul.f32.gmra.mxu0 %v994
      %v1095 = vpop.f32.mrf.mxu0
      %v1096 = vadd.f32 %v1029, %v1095
      %1097 = vdwg.mxu0
      %1098 = vmatpush.msra.mxu0 %v1026
      %1099 = vmatpush.msra.mxu0 %v1024
      %1100 = vmatpush.msra.mxu0 %v1022
      %1101 = vmatpush.msra.mxu0 %v1020
      %1102 = vmatpush.msra.mxu0 %v1018
      %1103 = vmatpush.msra.mxu0 %v1016
      %1104 = vmatpush.msra.mxu0 %v1014
      %1105 = vmatpush.msra.mxu0 %v1012
      %1106 = vmatpush.msra.mxu0 %v1010
      %1107 = vmatpush.msra.mxu0 %v1008
      %1108 = vmatpush.msra.mxu0 %v1006
      %1109 = vmatpush.msra.mxu0 %v1004
      %1110 = vmatpush.msra.mxu0 %v1002
      %1111 = vmatpush.msra.mxu0 %v1000
      %1112 = vmatpush.msra.mxu0 %v998
      %1113 = vmatpush.msra.mxu0 %v996
      %1114 = vmatmul.f32.gmra.mxu0 %v979
      %v1115 = vpop.f32.mrf.mxu0
      %v1116 = vadd.f32 %v1030, %v1115
      %1117 = vmatmul.f32.gmra.mxu0 %v980
      %v1118 = vpop.f32.mrf.mxu0
      %v1119 = vadd.f32 %v1030, %v1118
      %1120 = vmatmul.f32.gmra.mxu0 %v981
      %v1121 = vpop.f32.mrf.mxu0
      %v1122 = vadd.f32 %v1030, %v1121
      %1123 = vmatmul.f32.gmra.mxu0 %v982
      %v1124 = vpop.f32.mrf.mxu0
      %v1125 = vadd.f32 %v1030, %v1124
      %1126 = vmatmul.f32.gmra.mxu0 %v983
      %v1127 = vpop.f32.mrf.mxu0
      %v1128 = vadd.f32 %v1030, %v1127
      %1129 = vmatmul.f32.gmra.mxu0 %v984
      %v1130 = vpop.f32.mrf.mxu0
      %v1131 = vadd.f32 %v1030, %v1130
      %1132 = vmatmul.f32.gmra.mxu0 %v985
      %v1133 = vpop.f32.mrf.mxu0
      %v1134 = vadd.f32 %v1030, %v1133
      %1135 = vmatmul.f32.gmra.mxu0 %v986
      %v1136 = vpop.f32.mrf.mxu0
      %v1137 = vadd.f32 %v1030, %v1136
      %1138 = vmatmul.f32.gmra.mxu0 %v987
      %v1139 = vpop.f32.mrf.mxu0
      %v1140 = vadd.f32 %v1030, %v1139
      %1141 = vmatmul.f32.gmra.mxu0 %v988
      %v1142 = vpop.f32.mrf.mxu0
      %v1143 = vadd.f32 %v1030, %v1142
      %1144 = vmatmul.f32.gmra.mxu0 %v989
      %v1145 = vpop.f32.mrf.mxu0
      %v1146 = vadd.f32 %v1030, %v1145
      %1147 = vmatmul.f32.gmra.mxu0 %v990
      %v1148 = vpop.f32.mrf.mxu0
      %v1149 = vadd.f32 %v1030, %v1148
      %1150 = vmatmul.f32.gmra.mxu0 %v991
      %v1151 = vpop.f32.mrf.mxu0
      %v1152 = vadd.f32 %v1030, %v1151
      %1153 = vmatmul.f32.gmra.mxu0 %v992
      %v1154 = vpop.f32.mrf.mxu0
      %v1155 = vadd.f32 %v1030, %v1154
      %1156 = vmatmul.f32.gmra.mxu0 %v993
      %v1157 = vpop.f32.mrf.mxu0
      %v1158 = vadd.f32 %v1030, %v1157
      %1159 = vmatmul.f32.gmra.mxu0 %v994
      %v1160 = vpop.f32.mrf.mxu0
      %v1161 = vadd.f32 %v1030, %v1160
      %1162 = vdwg.mxu0
      %v1163 = vmax.f32 %v1051, 0.0
      %v1164 = vmax.f32 %v1116, 0.0
      %v1165 = vmax.f32 %v1054, 0.0
      %v1166 = vmax.f32 %v1119, 0.0
      %v1167 = vmax.f32 %v1057, 0.0
      %v1168 = vmax.f32 %v1122, 0.0
      %v1169 = vmax.f32 %v1060, 0.0
      %v1170 = vmax.f32 %v1125, 0.0
      %v1171 = vmax.f32 %v1063, 0.0
      %v1172 = vmax.f32 %v1128, 0.0
      %v1173 = vmax.f32 %v1066, 0.0
      %v1174 = vmax.f32 %v1131, 0.0
      %v1175 = vmax.f32 %v1069, 0.0
      %v1176 = vmax.f32 %v1134, 0.0
      %v1177 = vmax.f32 %v1072, 0.0
      %v1178 = vmax.f32 %v1137, 0.0
      %v1179 = vmax.f32 %v1075, 0.0
      %v1180 = vmax.f32 %v1140, 0.0
      %v1181 = vmax.f32 %v1078, 0.0
      %v1182 = vmax.f32 %v1143, 0.0
      %v1183 = vmax.f32 %v1081, 0.0
      %v1184 = vmax.f32 %v1146, 0.0
      %v1185 = vmax.f32 %v1084, 0.0
      %v1186 = vmax.f32 %v1149, 0.0
      %v1187 = vmax.f32 %v1087, 0.0
      %v1188 = vmax.f32 %v1152, 0.0
      %v1189 = vmax.f32 %v1090, 0.0
      %v1190 = vmax.f32 %v1155, 0.0
      %v1191 = vmax.f32 %v1093, 0.0
      %v1192 = vmax.f32 %v1158, 0.0
      %v1193 = vmax.f32 %v1096, 0.0
      %v1194 = vmax.f32 %v1161, 0.0
      %v1195 = vld [vmem:[#allocation7] sm:$0xff]
      %v1196 = vld [vmem:[#allocation7 + $0x8] sm:$0xff]
      %v1197 = vld [vmem:[#allocation7 + $0x10] sm:$0xff]
      %v1198 = vld [vmem:[#allocation7 + $0x18] sm:$0xff]
      %v1199 = vld [vmem:[#allocation7 + $0x20] sm:$0xff]
      %v1200 = vld [vmem:[#allocation7 + $0x28] sm:$0xff]
      %v1201 = vld [vmem:[#allocation7 + $0x30] sm:$0xff]
      %v1202 = vld [vmem:[#allocation7 + $0x38] sm:$0xff]
      %v1203 = vld [vmem:[#allocation7 + $0x40] sm:$0xff]
      %v1204 = vld [vmem:[#allocation7 + $0x48] sm:$0xff]
      %v1205 = vld [vmem:[#allocation7 + $0x50] sm:$0xff]
      %v1206 = vld [vmem:[#allocation7 + $0x58] sm:$0xff]
      %v1207 = vld [vmem:[#allocation7 + $0x60] sm:$0xff]
      %v1208 = vld [vmem:[#allocation7 + $0x68] sm:$0xff]
      %v1209 = vld [vmem:[#allocation7 + $0x70] sm:$0xff]
      %v1210 = vld [vmem:[#allocation7 + $0x78] sm:$0xff]
      %v1211 = vld [vmem:[#allocation7 + $0x80] sm:$0xff]
      %v1212 = vld [vmem:[#allocation7 + $0x88] sm:$0xff]
      %v1213 = vld [vmem:[#allocation7 + $0x90] sm:$0xff]
      %v1214 = vld [vmem:[#allocation7 + $0x98] sm:$0xff]
      %v1215 = vld [vmem:[#allocation7 + $0xa0] sm:$0xff]
      %v1216 = vld [vmem:[#allocation7 + $0xa8] sm:$0xff]
      %v1217 = vld [vmem:[#allocation7 + $0xb0] sm:$0xff]
      %v1218 = vld [vmem:[#allocation7 + $0xb8] sm:$0xff]
      %v1219 = vld [vmem:[#allocation7 + $0xc0] sm:$0xff]
      %v1220 = vld [vmem:[#allocation7 + $0xc8] sm:$0xff]
      %v1221 = vld [vmem:[#allocation7 + $0xd0] sm:$0xff]
      %v1222 = vld [vmem:[#allocation7 + $0xd8] sm:$0xff]
      %v1223 = vld [vmem:[#allocation7 + $0xe0] sm:$0xff]
      %v1224 = vld [vmem:[#allocation7 + $0xe8] sm:$0xff]
      %v1225 = vld [vmem:[#allocation7 + $0xf0] sm:$0xff]
      %v1226 = vld [vmem:[#allocation7 + $0xf8] sm:$0xff]
      %v1227 = vld [vmem:[%s12] sm:$0x1]
      %v1229 = vperm.slane %v1227, 0
      %1231 = vmatpush.msra.mxu0 %v1210
      %1232 = vmatpush.msra.mxu0 %v1209
      %1233 = vmatpush.msra.mxu0 %v1208
      %1234 = vmatpush.msra.mxu0 %v1207
      %1235 = vmatpush.msra.mxu0 %v1206
      %1236 = vmatpush.msra.mxu0 %v1205
      %1237 = vmatpush.msra.mxu0 %v1204
      %1238 = vmatpush.msra.mxu0 %v1203
      %1239 = vmatpush.msra.mxu0 %v1202
      %1240 = vmatpush.msra.mxu0 %v1201
      %1241 = vmatpush.msra.mxu0 %v1200
      %1242 = vmatpush.msra.mxu0 %v1199
      %1243 = vmatpush.msra.mxu0 %v1198
      %1244 = vmatpush.msra.mxu0 %v1197
      %1245 = vmatpush.msra.mxu0 %v1196
      %1246 = vmatpush.msra.mxu0 %v1195
      %1247 = vmatmul.f32.gmra.mxu0 %v1163
      %v1248 = vpop.f32.mrf.mxu0
      %v1249 = vadd.f32 %v1229, %v1248
      %1250 = vmatmul.f32.gmra.mxu0 %v1165
      %v1251 = vpop.f32.mrf.mxu0
      %v1252 = vadd.f32 %v1229, %v1251
      %1253 = vmatmul.f32.gmra.mxu0 %v1167
      %v1254 = vpop.f32.mrf.mxu0
      %v1255 = vadd.f32 %v1229, %v1254
      %1256 = vmatmul.f32.gmra.mxu0 %v1169
      %v1257 = vpop.f32.mrf.mxu0
      %v1258 = vadd.f32 %v1229, %v1257
      %1259 = vmatmul.f32.gmra.mxu0 %v1171
      %v1260 = vpop.f32.mrf.mxu0
      %v1261 = vadd.f32 %v1229, %v1260
      %1262 = vmatmul.f32.gmra.mxu0 %v1173
      %v1263 = vpop.f32.mrf.mxu0
      %v1264 = vadd.f32 %v1229, %v1263
      %1265 = vmatmul.f32.gmra.mxu0 %v1175
      %v1266 = vpop.f32.mrf.mxu0
      %v1267 = vadd.f32 %v1229, %v1266
      %1268 = vmatmul.f32.gmra.mxu0 %v1177
      %v1269 = vpop.f32.mrf.mxu0
      %v1270 = vadd.f32 %v1229, %v1269
      %1271 = vmatmul.f32.gmra.mxu0 %v1179
      %v1272 = vpop.f32.mrf.mxu0
      %v1273 = vadd.f32 %v1229, %v1272
      %1274 = vmatmul.f32.gmra.mxu0 %v1181
      %v1275 = vpop.f32.mrf.mxu0
      %v1276 = vadd.f32 %v1229, %v1275
      %1277 = vmatmul.f32.gmra.mxu0 %v1183
      %v1278 = vpop.f32.mrf.mxu0
      %v1279 = vadd.f32 %v1229, %v1278
      %1280 = vmatmul.f32.gmra.mxu0 %v1185
      %v1281 = vpop.f32.mrf.mxu0
      %v1282 = vadd.f32 %v1229, %v1281
      %1283 = vmatmul.f32.gmra.mxu0 %v1187
      %v1284 = vpop.f32.mrf.mxu0
      %v1285 = vadd.f32 %v1229, %v1284
      %1286 = vmatmul.f32.gmra.mxu0 %v1189
      %v1287 = vpop.f32.mrf.mxu0
      %v1288 = vadd.f32 %v1229, %v1287
      %1289 = vmatmul.f32.gmra.mxu0 %v1191
      %v1290 = vpop.f32.mrf.mxu0
      %v1291 = vadd.f32 %v1229, %v1290
      %1292 = vmatmul.f32.gmra.mxu0 %v1193
      %v1293 = vpop.f32.mrf.mxu0
      %v1294 = vadd.f32 %v1229, %v1293
      %1295 = vdwg.mxu0
      %1296 = vmatpush.msra.mxu0 %v1226
      %1297 = vmatpush.msra.mxu0 %v1225
      %1298 = vmatpush.msra.mxu0 %v1224
      %1299 = vmatpush.msra.mxu0 %v1223
      %1300 = vmatpush.msra.mxu0 %v1222
      %1301 = vmatpush.msra.mxu0 %v1221
      %1302 = vmatpush.msra.mxu0 %v1220
      %1303 = vmatpush.msra.mxu0 %v1219
      %1304 = vmatpush.msra.mxu0 %v1218
      %1305 = vmatpush.msra.mxu0 %v1217
      %1306 = vmatpush.msra.mxu0 %v1216
      %1307 = vmatpush.msra.mxu0 %v1215
      %1308 = vmatpush.msra.mxu0 %v1214
      %1309 = vmatpush.msra.mxu0 %v1213
      %1310 = vmatpush.msra.mxu0 %v1212
      %1311 = vmatpush.msra.mxu0 %v1211
      %1312 = vmatmul.f32.gmra.mxu0 %v1164
      %v1313 = vpop.f32.mrf.mxu0
      %v1314 = vadd.f32 %v1249, %v1313
      %1315 = vmatmul.f32.gmra.mxu0 %v1166
      %v1316 = vpop.f32.mrf.mxu0
      %v1317 = vadd.f32 %v1252, %v1316
      %1318 = vmatmul.f32.gmra.mxu0 %v1168
      %v1319 = vpop.f32.mrf.mxu0
      %v1320 = vadd.f32 %v1255, %v1319
      %1321 = vmatmul.f32.gmra.mxu0 %v1170
      %v1322 = vpop.f32.mrf.mxu0
      %v1323 = vadd.f32 %v1258, %v1322
      %1324 = vmatmul.f32.gmra.mxu0 %v1172
      %v1325 = vpop.f32.mrf.mxu0
      %v1326 = vadd.f32 %v1261, %v1325
      %1327 = vmatmul.f32.gmra.mxu0 %v1174
      %v1328 = vpop.f32.mrf.mxu0
      %v1329 = vadd.f32 %v1264, %v1328
      %1330 = vmatmul.f32.gmra.mxu0 %v1176
      %v1331 = vpop.f32.mrf.mxu0
      %v1332 = vadd.f32 %v1267, %v1331
      %1333 = vmatmul.f32.gmra.mxu0 %v1178
      %v1334 = vpop.f32.mrf.mxu0
      %v1335 = vadd.f32 %v1270, %v1334
      %1336 = vmatmul.f32.gmra.mxu0 %v1180
      %v1337 = vpop.f32.mrf.mxu0
      %v1338 = vadd.f32 %v1273, %v1337
      %1339 = vmatmul.f32.gmra.mxu0 %v1182
      %v1340 = vpop.f32.mrf.mxu0
      %v1341 = vadd.f32 %v1276, %v1340
      %1342 = vmatmul.f32.gmra.mxu0 %v1184
      %v1343 = vpop.f32.mrf.mxu0
      %v1344 = vadd.f32 %v1279, %v1343
      %1345 = vmatmul.f32.gmra.mxu0 %v1186
      %v1346 = vpop.f32.mrf.mxu0
      %v1347 = vadd.f32 %v1282, %v1346
      %1348 = vmatmul.f32.gmra.mxu0 %v1188
      %v1349 = vpop.f32.mrf.mxu0
      %v1350 = vadd.f32 %v1285, %v1349
      %1351 = vmatmul.f32.gmra.mxu0 %v1190
      %v1352 = vpop.f32.mrf.mxu0
      %v1353 = vadd.f32 %v1288, %v1352
      %1354 = vmatmul.f32.gmra.mxu0 %v1192
      %v1355 = vpop.f32.mrf.mxu0
      %v1356 = vadd.f32 %v1291, %v1355
      %1357 = vmatmul.f32.gmra.mxu0 %v1194
      %v1358 = vpop.f32.mrf.mxu0
      %v1359 = vadd.f32 %v1294, %v1358
      %1360 = vdwg.mxu0
      %1361 = vst [vmem:[%s13] sm:$0xff] %v1314
      %1362 = vst [vmem:[%s13 + $0x8] sm:$0xff] %v1317
      %1363 = vst [vmem:[%s13 + $0x10] sm:$0xff] %v1320
      %1364 = vst [vmem:[%s13 + $0x18] sm:$0xff] %v1323
      %1365 = vst [vmem:[%s13 + $0x20] sm:$0xff] %v1326
      %1366 = vst [vmem:[%s13 + $0x28] sm:$0xff] %v1329
      %1367 = vst [vmem:[%s13 + $0x30] sm:$0xff] %v1332
      %1368 = vst [vmem:[%s13 + $0x38] sm:$0xff] %v1335
      %1369 = vst [vmem:[%s13 + $0x40] sm:$0xff] %v1338
      %1370 = vst [vmem:[%s13 + $0x48] sm:$0xff] %v1341
      %1371 = vst [vmem:[%s13 + $0x50] sm:$0xff] %v1344
      %1372 = vst [vmem:[%s13 + $0x58] sm:$0xff] %v1347
      %1373 = vst [vmem:[%s13 + $0x60] sm:$0xff] %v1350
      %1374 = vst [vmem:[%s13 + $0x68] sm:$0xff] %v1353
      %1375 = vst [vmem:[%s13 + $0x70] sm:$0xff] %v1356
      %1376 = vst [vmem:[%s13 + $0x78] sm:$0xff] %v1359
    $region69: #{gnn_node_virtualnode_forward.5} parent=1 // pred_fallthru
      _
    // Predicated region
    $region70: #{gnn_node_virtualnode_forward.5} parent=1 // pred_check
      _
    $region71: #{gnn_node_virtualnode_forward.5} parent=1 // pred_check_branch
      %1378 = sbr.rel (0) target = $region73
    $region72: #{gnn_node_virtualnode_forward.5} parent=1 // pred_region
      _
    $region73: #{gnn_node_virtualnode_forward.5} parent=1 // pred_fallthru
      _
    // Predicated region
    $region74: #{gnn_node_virtualnode_forward.5} parent=1 // pred_check
      _
    $region75: #{gnn_node_virtualnode_forward.5} parent=1 // pred_check_branch
      %1380 = sbr.rel (0) target = $region77
    $region76: #{gnn_node_virtualnode_forward.5} parent=1 // pred_region
      _
    $region77: #{gnn_node_virtualnode_forward.5} parent=1 // pred_fallthru
      _
    %1381 = vsyncpa [#allocation6], 1
    %1382 = vsyncpa [#allocation8], 1

// kernel: gnn_node_virtualnode_forward.3
$region0: #{gnn_node_virtualnode_forward.3}
  #allocation0 [shape = 'u32[]', space=smem, size = 0x4, offset = 0x4, fixed_abs, tag = 'smem constant byte address 0x4 - core index']
  #allocation1 [shape = 'u32[72,128]{1,0:T(1,128)}', space=vmem, size = 0x9000, scoped, tag = 'internal scratch']
  #allocation2 [shape = 'f32[128,128]{1,0:T(8,128)}', space=vmem, size = 0x10000, scoped, tag = 'scratch operand']
  #allocation3 [shape = 'f32[128,128]{1,0:T(8,128)}', space=vmem, size = 0x10000, scoped, tag = 'scratch operand']
  #allocation4 [shape = 'f32[1,1]{1,0:T(1,128)S(6)}', space=smem, size = 0x200, scoped, tag = 'scoped memory for gnn_node_virtualnode_forward.3']
  %s0 = inlined_call_operand.<no memory space> [shape: f32[1,1], index: 0, kind: input, shape index: {}]
  %s1 = inlined_call_operand.vmem [shape: f32[128,128], index: 1, kind: input, shape index: {}]
  %s2 = inlined_call_operand.vmem [shape: f32[128,8], index: 2, kind: input, shape index: {}]
  %s3 = inlined_call_operand.vmem [shape: f32[8,128], index: 3, kind: input, shape index: {}]
  %s4 = inlined_call_operand.vmem [shape: f32[256,8], index: 4, kind: input, shape index: {}]
  %s5 = inlined_call_operand.vmem [shape: f32[8,128], index: 5, kind: input, shape index: {}]
  %s6 = inlined_call_operand.vmem [shape: f32[1,128], index: 6, kind: input, shape index: {}]
  %s7 = inlined_call_operand.vmem [shape: f32[256,128], index: 7, kind: input, shape index: {}]
  %s8 = inlined_call_operand.vmem [shape: f32[128,256], index: 8, kind: input, shape index: {}]
  %s9 = inlined_call_operand.vmem [shape: f32[128,256], index: 9, kind: input, shape index: {}]
  %s10 = inlined_call_operand.vmem [shape: f32[1,256], index: 10, kind: input, shape index: {}]
  %s11 = inlined_call_operand.vmem [shape: f32[256,128], index: 11, kind: input, shape index: {}]
  %s12 = inlined_call_operand.vmem [shape: f32[1,128], index: 12, kind: input, shape index: {}]
  %s13 = inlined_call_operand.vmem [shape: f32[8,128], index: 13, kind: input, shape index: {}]
  %s14 = inlined_call_operand.vmem [shape: f32[128,256], index: 14, kind: input, shape index: {}]
  %s15 = inlined_call_operand.vmem [shape: f32[1,256], index: 15, kind: input, shape index: {}]
  %s16 = inlined_call_operand.vmem [shape: f32[256,128], index: 16, kind: input, shape index: {}]
  %s17 = inlined_call_operand.vmem [shape: f32[1,128], index: 17, kind: input, shape index: {}]
  %s18 = inlined_call_operand.vmem [shape: f32[128,128], index: 18, kind: output, shape index: {0}]
  %s19 = inlined_call_operand.vmem [shape: f32[8,128], index: 19, kind: output, shape index: {1}]
  %20 = xla_tuple %s18, %s19
  %s21 = sld [smem:[#allocation0]]
  $region98: #{gnn_node_virtualnode_forward.3} parent=0
    _
  %s23 = ssub.s32 1, %s21
  %s24 = scalar_select 0, %s23, %s21
  %25 = sst [smem:[#allocation4]] %s0
  // Predicated region
  $region2: #{gnn_node_virtualnode_forward.3} parent=0 // pred_check
    _
  $region3: #{gnn_node_virtualnode_forward.3} parent=0 // pred_check_branch
    %27 = sbr.rel (0) target = $region5
  $region4: #{gnn_node_virtualnode_forward.3} parent=0 // pred_region
    _
  $region5: #{gnn_node_virtualnode_forward.3} parent=0 // pred_fallthru
    _
  // Predicated region
  $region6: #{gnn_node_virtualnode_forward.3} parent=0 // pred_check
    _
  $region7: #{gnn_node_virtualnode_forward.3} parent=0 // pred_check_branch
    %29 = sbr.rel (0) target = $region9
  $region8: #{gnn_node_virtualnode_forward.3} parent=0 // pred_region
    _
  $region9: #{gnn_node_virtualnode_forward.3} parent=0 // pred_fallthru
    _
  // Predicated region
  $region10: #{gnn_node_virtualnode_forward.3} parent=0 // pred_check
    _
  $region11: #{gnn_node_virtualnode_forward.3} parent=0 // pred_check_branch
    %31 = sbr.rel (0) target = $region13
  $region12: #{gnn_node_virtualnode_forward.3} parent=0 // pred_region
    _
  $region13: #{gnn_node_virtualnode_forward.3} parent=0 // pred_fallthru
    _
  // Predicated region
  $region14: #{gnn_node_virtualnode_forward.3} parent=0 // pred_check
    _
  $region15: #{gnn_node_virtualnode_forward.3} parent=0 // pred_check_branch
    %33 = sbr.rel (0) target = $region17
  $region16: #{gnn_node_virtualnode_forward.3} parent=0 // pred_region
    _
  $region17: #{gnn_node_virtualnode_forward.3} parent=0 // pred_fallthru
    _
  // Predicated region
  $region18: #{gnn_node_virtualnode_forward.3} parent=0 // pred_check
    _
  $region19: #{gnn_node_virtualnode_forward.3} parent=0 // pred_check_branch
    %35 = sbr.rel (0) target = $region21
  $region20: #{gnn_node_virtualnode_forward.3} parent=0 // pred_region
    _
  $region21: #{gnn_node_virtualnode_forward.3} parent=0 // pred_fallthru
    _
  // Predicated region
  $region22: #{gnn_node_virtualnode_forward.3} parent=0 // pred_check
    _
  $region23: #{gnn_node_virtualnode_forward.3} parent=0 // pred_check_branch
    %37 = sbr.rel (0) target = $region25
  $region24: #{gnn_node_virtualnode_forward.3} parent=0 // pred_region
    _
  $region25: #{gnn_node_virtualnode_forward.3} parent=0 // pred_fallthru
    _
  // Predicated region
  $region26: #{gnn_node_virtualnode_forward.3} parent=0 // pred_check
    _
  $region27: #{gnn_node_virtualnode_forward.3} parent=0 // pred_check_branch
    %39 = sbr.rel (0) target = $region29
  $region28: #{gnn_node_virtualnode_forward.3} parent=0 // pred_region
    _
  $region29: #{gnn_node_virtualnode_forward.3} parent=0 // pred_fallthru
    _
  // Predicated region
  $region30: #{gnn_node_virtualnode_forward.3} parent=0 // pred_check
    _
  $region31: #{gnn_node_virtualnode_forward.3} parent=0 // pred_check_branch
    %41 = sbr.rel (0) target = $region33
  $region32: #{gnn_node_virtualnode_forward.3} parent=0 // pred_region
    _
  $region33: #{gnn_node_virtualnode_forward.3} parent=0 // pred_fallthru
    _
  // Predicated region
  $region34: #{gnn_node_virtualnode_forward.3} parent=0 // pred_check
    _
  $region35: #{gnn_node_virtualnode_forward.3} parent=0 // pred_check_branch
    %43 = sbr.rel (0) target = $region37
  $region36: #{gnn_node_virtualnode_forward.3} parent=0 // pred_region
    _
  $region37: #{gnn_node_virtualnode_forward.3} parent=0 // pred_fallthru
    _
  // Predicated region
  $region38: #{gnn_node_virtualnode_forward.3} parent=0 // pred_check
    _
  $region39: #{gnn_node_virtualnode_forward.3} parent=0 // pred_check_branch
    %45 = sbr.rel (0) target = $region41
  $region40: #{gnn_node_virtualnode_forward.3} parent=0 // pred_region
    _
  $region41: #{gnn_node_virtualnode_forward.3} parent=0 // pred_fallthru
    _
  // Predicated region
  $region42: #{gnn_node_virtualnode_forward.3} parent=0 // pred_check
    _
  $region43: #{gnn_node_virtualnode_forward.3} parent=0 // pred_check_branch
    %47 = sbr.rel (0) target = $region45
  $region44: #{gnn_node_virtualnode_forward.3} parent=0 // pred_region
    _
  $region45: #{gnn_node_virtualnode_forward.3} parent=0 // pred_fallthru
    _
  // Predicated region
  $region46: #{gnn_node_virtualnode_forward.3} parent=0 // pred_check
    _
  $region47: #{gnn_node_virtualnode_forward.3} parent=0 // pred_check_branch
    %49 = sbr.rel (0) target = $region49
  $region48: #{gnn_node_virtualnode_forward.3} parent=0 // pred_region
    _
  $region49: #{gnn_node_virtualnode_forward.3} parent=0 // pred_fallthru
    _
  // Predicated region
  $region50: #{gnn_node_virtualnode_forward.3} parent=0 // pred_check
    _
  $region51: #{gnn_node_virtualnode_forward.3} parent=0 // pred_check_branch
    %51 = sbr.rel (0) target = $region53
  $region52: #{gnn_node_virtualnode_forward.3} parent=0 // pred_region
    _
  $region53: #{gnn_node_virtualnode_forward.3} parent=0 // pred_fallthru
    _
  // Predicated region
  $region54: #{gnn_node_virtualnode_forward.3} parent=0 // pred_check
    _
  $region55: #{gnn_node_virtualnode_forward.3} parent=0 // pred_check_branch
    %53 = sbr.rel (0) target = $region57
  $region56: #{gnn_node_virtualnode_forward.3} parent=0 // pred_region
    _
  $region57: #{gnn_node_virtualnode_forward.3} parent=0 // pred_fallthru
    _
  // Predicated region
  $region58: #{gnn_node_virtualnode_forward.3} parent=0 // pred_check
    _
  $region59: #{gnn_node_virtualnode_forward.3} parent=0 // pred_check_branch
    %55 = sbr.rel (0) target = $region61
  $region60: #{gnn_node_virtualnode_forward.3} parent=0 // pred_region
    _
  $region61: #{gnn_node_virtualnode_forward.3} parent=0 // pred_fallthru
    _
  // Predicated region
  $region62: #{gnn_node_virtualnode_forward.3} parent=0 // pred_check
    _
  $region63: #{gnn_node_virtualnode_forward.3} parent=0 // pred_check_branch
    %57 = sbr.rel (0) target = $region65
  $region64: #{gnn_node_virtualnode_forward.3} parent=0 // pred_region
    _
  $region65: #{gnn_node_virtualnode_forward.3} parent=0 // pred_fallthru
    _
  // Predicated region
  $region66: #{gnn_node_virtualnode_forward.3} parent=0 // pred_check
    _
  $region67: #{gnn_node_virtualnode_forward.3} parent=0 // pred_check_branch
    %59 = sbr.rel (0) target = $region69
  $region68: #{gnn_node_virtualnode_forward.3} parent=0 // pred_region
    _
  $region69: #{gnn_node_virtualnode_forward.3} parent=0 // pred_fallthru
    _
  // Predicated region
  $region70: #{gnn_node_virtualnode_forward.3} parent=0 // pred_check
    _
  $region71: #{gnn_node_virtualnode_forward.3} parent=0 // pred_check_branch
    %61 = sbr.rel (0) target = $region73
  $region72: #{gnn_node_virtualnode_forward.3} parent=0 // pred_region
    _
  $region73: #{gnn_node_virtualnode_forward.3} parent=0 // pred_fallthru
    _
  %p62 = scmp.eq.s32.totalorder 0, 0
  // Predicated region
  $region74: #{gnn_node_virtualnode_forward.3} parent=0 // pred_check
    %p63 = pneg %p62
  $region75: #{gnn_node_virtualnode_forward.3} parent=0 // pred_check_branch
    %65 = sbr.rel (%p63) target = $region77
  $region76: #{gnn_node_virtualnode_forward.3} parent=0 // pred_region
    %v66 = vld [vmem:[%s2] sm:$0xff]
    %v67 = vld [vmem:[%s2 + $0x8] sm:$0xff]
    %v68 = vld [vmem:[%s2 + $0x10] sm:$0xff]
    %v69 = vld [vmem:[%s2 + $0x18] sm:$0xff]
    %v70 = vld [vmem:[%s2 + $0x20] sm:$0xff]
    %v71 = vld [vmem:[%s2 + $0x28] sm:$0xff]
    %v72 = vld [vmem:[%s2 + $0x30] sm:$0xff]
    %v73 = vld [vmem:[%s2 + $0x38] sm:$0xff]
    %v74 = vld [vmem:[%s2 + $0x40] sm:$0xff]
    %v75 = vld [vmem:[%s2 + $0x48] sm:$0xff]
    %v76 = vld [vmem:[%s2 + $0x50] sm:$0xff]
    %v77 = vld [vmem:[%s2 + $0x58] sm:$0xff]
    %v78 = vld [vmem:[%s2 + $0x60] sm:$0xff]
    %v79 = vld [vmem:[%s2 + $0x68] sm:$0xff]
    %v80 = vld [vmem:[%s2 + $0x70] sm:$0xff]
    %v81 = vld [vmem:[%s2 + $0x78] sm:$0xff]
    %v82 = vld [vmem:[%s3] sm:$0xff]
    %vm83 = vcmask 64512
    %v85 = vsel %vm83, %v66, 0
    %v88 = vsel %vm83, %v67, 0
    %v91 = vsel %vm83, %v68, 0
    %v94 = vsel %vm83, %v69, 0
    %v97 = vsel %vm83, %v70, 0
    %v100 = vsel %vm83, %v71, 0
    %v103 = vsel %vm83, %v72, 0
    %v106 = vsel %vm83, %v73, 0
    %v109 = vsel %vm83, %v74, 0
    %v112 = vsel %vm83, %v75, 0
    %v115 = vsel %vm83, %v76, 0
    %v118 = vsel %vm83, %v77, 0
    %v121 = vsel %vm83, %v78, 0
    %v124 = vsel %vm83, %v79, 0
    %v127 = vsel %vm83, %v80, 0
    %v130 = vsel %vm83, %v81, 0
    %132 = vmatpush.msra.mxu0 0.0
    %133 = vmatpush.msra.mxu0 0.0
    %134 = vmatpush.msra.mxu0 0.0
    %135 = vmatpush.msra.mxu0 0.0
    %136 = vmatpush.msra.mxu0 0.0
    %137 = vmatpush.msra.mxu0 0.0
    %138 = vmatpush.msra.mxu0 0.0
    %139 = vmatpush.msra.mxu0 0.0
    %140 = vmatpush.msra.mxu0 0.0
    %141 = vmatpush.msra.mxu0 0.0
    %142 = vmatpush.msra.mxu0 0.0
    %143 = vmatpush.msra.mxu0 0.0
    %144 = vmatpush.msra.mxu0 0.0
    %145 = vmatpush.msra.mxu0 0.0
    %146 = vmatpush.msra.mxu0 0.0
    %147 = vmatpush.msra.mxu0 %v82
    %148 = vmatmul.f32.gmra.mxu0 %v85
    %v149 = vpop.f32.mrf.mxu0
    %v150 = vadd.f32 0.0, %v149
    %151 = vmatmul.f32.gmra.mxu0 %v88
    %v152 = vpop.f32.mrf.mxu0
    %v153 = vadd.f32 0.0, %v152
    %154 = vmatmul.f32.gmra.mxu0 %v91
    %v155 = vpop.f32.mrf.mxu0
    %v156 = vadd.f32 0.0, %v155
    %157 = vmatmul.f32.gmra.mxu0 %v94
    %v158 = vpop.f32.mrf.mxu0
    %v159 = vadd.f32 0.0, %v158
    %160 = vmatmul.f32.gmra.mxu0 %v97
    %v161 = vpop.f32.mrf.mxu0
    %v162 = vadd.f32 0.0, %v161
    %163 = vmatmul.f32.gmra.mxu0 %v100
    %v164 = vpop.f32.mrf.mxu0
    %v165 = vadd.f32 0.0, %v164
    %166 = vmatmul.f32.gmra.mxu0 %v103
    %v167 = vpop.f32.mrf.mxu0
    %v168 = vadd.f32 0.0, %v167
    %169 = vmatmul.f32.gmra.mxu0 %v106
    %v170 = vpop.f32.mrf.mxu0
    %v171 = vadd.f32 0.0, %v170
    %172 = vmatmul.f32.gmra.mxu0 %v109
    %v173 = vpop.f32.mrf.mxu0
    %v174 = vadd.f32 0.0, %v173
    %175 = vmatmul.f32.gmra.mxu0 %v112
    %v176 = vpop.f32.mrf.mxu0
    %v177 = vadd.f32 0.0, %v176
    %178 = vmatmul.f32.gmra.mxu0 %v115
    %v179 = vpop.f32.mrf.mxu0
    %v180 = vadd.f32 0.0, %v179
    %181 = vmatmul.f32.gmra.mxu0 %v118
    %v182 = vpop.f32.mrf.mxu0
    %v183 = vadd.f32 0.0, %v182
    %184 = vmatmul.f32.gmra.mxu0 %v121
    %v185 = vpop.f32.mrf.mxu0
    %v186 = vadd.f32 0.0, %v185
    %187 = vmatmul.f32.gmra.mxu0 %v124
    %v188 = vpop.f32.mrf.mxu0
    %v189 = vadd.f32 0.0, %v188
    %190 = vmatmul.f32.gmra.mxu0 %v127
    %v191 = vpop.f32.mrf.mxu0
    %v192 = vadd.f32 0.0, %v191
    %193 = vmatmul.f32.gmra.mxu0 %v130
    %v194 = vpop.f32.mrf.mxu0
    %v195 = vadd.f32 0.0, %v194
    %196 = vdwg.mxu0
    %v197 = vld [vmem:[%s1] sm:$0xff]
    %v198 = vld [vmem:[%s1 + $0x8] sm:$0xff]
    %v199 = vld [vmem:[%s1 + $0x10] sm:$0xff]
    %v200 = vld [vmem:[%s1 + $0x18] sm:$0xff]
    %v201 = vld [vmem:[%s1 + $0x20] sm:$0xff]
    %v202 = vld [vmem:[%s1 + $0x28] sm:$0xff]
    %v203 = vld [vmem:[%s1 + $0x30] sm:$0xff]
    %v204 = vld [vmem:[%s1 + $0x38] sm:$0xff]
    %v205 = vld [vmem:[%s1 + $0x40] sm:$0xff]
    %v206 = vld [vmem:[%s1 + $0x48] sm:$0xff]
    %v207 = vld [vmem:[%s1 + $0x50] sm:$0xff]
    %v208 = vld [vmem:[%s1 + $0x58] sm:$0xff]
    %v209 = vld [vmem:[%s1 + $0x60] sm:$0xff]
    %v210 = vld [vmem:[%s1 + $0x68] sm:$0xff]
    %v211 = vld [vmem:[%s1 + $0x70] sm:$0xff]
    %v212 = vld [vmem:[%s1 + $0x78] sm:$0xff]
    %v213 = vadd.f32 %v197, %v150
    %v214 = vadd.f32 %v198, %v153
    %v215 = vadd.f32 %v199, %v156
    %v216 = vadd.f32 %v200, %v159
    %v217 = vadd.f32 %v201, %v162
    %v218 = vadd.f32 %v202, %v165
    %v219 = vadd.f32 %v203, %v168
    %v220 = vadd.f32 %v204, %v171
    %v221 = vadd.f32 %v205, %v174
    %v222 = vadd.f32 %v206, %v177
    %v223 = vadd.f32 %v207, %v180
    %v224 = vadd.f32 %v208, %v183
    %v225 = vadd.f32 %v209, %v186
    %v226 = vadd.f32 %v210, %v189
    %v227 = vadd.f32 %v211, %v192
    %v228 = vadd.f32 %v212, %v195
    %229 = vst [vmem:[#allocation2] sm:$0xff] %v213
    %230 = vst [vmem:[#allocation2 + $0x8] sm:$0xff] %v214
    %231 = vst [vmem:[#allocation2 + $0x10] sm:$0xff] %v215
    %232 = vst [vmem:[#allocation2 + $0x18] sm:$0xff] %v216
    %233 = vst [vmem:[#allocation2 + $0x20] sm:$0xff] %v217
    %234 = vst [vmem:[#allocation2 + $0x28] sm:$0xff] %v218
    %235 = vst [vmem:[#allocation2 + $0x30] sm:$0xff] %v219
    %236 = vst [vmem:[#allocation2 + $0x38] sm:$0xff] %v220
    %237 = vst [vmem:[#allocation2 + $0x40] sm:$0xff] %v221
    %238 = vst [vmem:[#allocation2 + $0x48] sm:$0xff] %v222
    %239 = vst [vmem:[#allocation2 + $0x50] sm:$0xff] %v223
    %240 = vst [vmem:[#allocation2 + $0x58] sm:$0xff] %v224
    %241 = vst [vmem:[#allocation2 + $0x60] sm:$0xff] %v225
    %242 = vst [vmem:[#allocation2 + $0x68] sm:$0xff] %v226
    %243 = vst [vmem:[#allocation2 + $0x70] sm:$0xff] %v227
    %244 = vst [vmem:[#allocation2 + $0x78] sm:$0xff] %v228
    %245 = vst [vmem:[#allocation3] sm:$0xff] 0.0
    %246 = vst [vmem:[#allocation3 + $0x8] sm:$0xff] 0.0
    %247 = vst [vmem:[#allocation3 + $0x10] sm:$0xff] 0.0
    %248 = vst [vmem:[#allocation3 + $0x18] sm:$0xff] 0.0
    %249 = vst [vmem:[#allocation3 + $0x20] sm:$0xff] 0.0
    %250 = vst [vmem:[#allocation3 + $0x28] sm:$0xff] 0.0
    %251 = vst [vmem:[#allocation3 + $0x30] sm:$0xff] 0.0
    %252 = vst [vmem:[#allocation3 + $0x38] sm:$0xff] 0.0
    %253 = vst [vmem:[#allocation3 + $0x40] sm:$0xff] 0.0
    %254 = vst [vmem:[#allocation3 + $0x48] sm:$0xff] 0.0
    %255 = vst [vmem:[#allocation3 + $0x50] sm:$0xff] 0.0
    %256 = vst [vmem:[#allocation3 + $0x58] sm:$0xff] 0.0
    %257 = vst [vmem:[#allocation3 + $0x60] sm:$0xff] 0.0
    %258 = vst [vmem:[#allocation3 + $0x68] sm:$0xff] 0.0
    %259 = vst [vmem:[#allocation3 + $0x70] sm:$0xff] 0.0
    %260 = vst [vmem:[#allocation3 + $0x78] sm:$0xff] 0.0
  $region77: #{gnn_node_virtualnode_forward.3} parent=0 // pred_fallthru
    _
  %v261 = vld [vmem:[%s4] sm:$0xff]
  %v262 = vld [vmem:[%s4 + $0x8] sm:$0xff]
  %v263 = vld [vmem:[%s4 + $0x10] sm:$0xff]
  %v264 = vld [vmem:[%s4 + $0x18] sm:$0xff]
  %v265 = vld [vmem:[%s4 + $0x20] sm:$0xff]
  %v266 = vld [vmem:[%s4 + $0x28] sm:$0xff]
  %v267 = vld [vmem:[%s4 + $0x30] sm:$0xff]
  %v268 = vld [vmem:[%s4 + $0x38] sm:$0xff]
  %v269 = vld [vmem:[%s4 + $0x40] sm:$0xff]
  %v270 = vld [vmem:[%s4 + $0x48] sm:$0xff]
  %v271 = vld [vmem:[%s4 + $0x50] sm:$0xff]
  %v272 = vld [vmem:[%s4 + $0x58] sm:$0xff]
  %v273 = vld [vmem:[%s4 + $0x60] sm:$0xff]
  %v274 = vld [vmem:[%s4 + $0x68] sm:$0xff]
  %v275 = vld [vmem:[%s4 + $0x70] sm:$0xff]
  %v276 = vld [vmem:[%s4 + $0x78] sm:$0xff]
  %v277 = vld [vmem:[%s4 + $0x80] sm:$0xff]
  %v278 = vld [vmem:[%s4 + $0x88] sm:$0xff]
  %v279 = vld [vmem:[%s4 + $0x90] sm:$0xff]
  %v280 = vld [vmem:[%s4 + $0x98] sm:$0xff]
  %v281 = vld [vmem:[%s4 + $0xa0] sm:$0xff]
  %v282 = vld [vmem:[%s4 + $0xa8] sm:$0xff]
  %v283 = vld [vmem:[%s4 + $0xb0] sm:$0xff]
  %v284 = vld [vmem:[%s4 + $0xb8] sm:$0xff]
  %v285 = vld [vmem:[%s4 + $0xc0] sm:$0xff]
  %v286 = vld [vmem:[%s4 + $0xc8] sm:$0xff]
  %v287 = vld [vmem:[%s4 + $0xd0] sm:$0xff]
  %v288 = vld [vmem:[%s4 + $0xd8] sm:$0xff]
  %v289 = vld [vmem:[%s4 + $0xe0] sm:$0xff]
  %v290 = vld [vmem:[%s4 + $0xe8] sm:$0xff]
  %v291 = vld [vmem:[%s4 + $0xf0] sm:$0xff]
  %v292 = vld [vmem:[%s4 + $0xf8] sm:$0xff]
  %v293 = vld [vmem:[%s5] sm:$0xff]
  %v294 = vld [vmem:[%s6] sm:$0x1]
  %v296 = vperm.slane %v294, 0
  %vm298 = vcmask 64512
  %v300 = vsel %vm298, %v261, 0
  %v303 = vsel %vm298, %v262, 0
  %v306 = vsel %vm298, %v263, 0
  %v309 = vsel %vm298, %v264, 0
  %v312 = vsel %vm298, %v265, 0
  %v315 = vsel %vm298, %v266, 0
  %v318 = vsel %vm298, %v267, 0
  %v321 = vsel %vm298, %v268, 0
  %v324 = vsel %vm298, %v269, 0
  %v327 = vsel %vm298, %v270, 0
  %v330 = vsel %vm298, %v271, 0
  %v333 = vsel %vm298, %v272, 0
  %v336 = vsel %vm298, %v273, 0
  %v339 = vsel %vm298, %v274, 0
  %v342 = vsel %vm298, %v275, 0
  %v345 = vsel %vm298, %v276, 0
  %v348 = vsel %vm298, %v277, 0
  %v351 = vsel %vm298, %v278, 0
  %v354 = vsel %vm298, %v279, 0
  %v357 = vsel %vm298, %v280, 0
  %v360 = vsel %vm298, %v281, 0
  %v363 = vsel %vm298, %v282, 0
  %v366 = vsel %vm298, %v283, 0
  %v369 = vsel %vm298, %v284, 0
  %v372 = vsel %vm298, %v285, 0
  %v375 = vsel %vm298, %v286, 0
  %v378 = vsel %vm298, %v287, 0
  %v381 = vsel %vm298, %v288, 0
  %v384 = vsel %vm298, %v289, 0
  %v387 = vsel %vm298, %v290, 0
  %v390 = vsel %vm298, %v291, 0
  %v393 = vsel %vm298, %v292, 0
  %395 = vmatpush.msra.mxu0 0.0
  %396 = vmatpush.msra.mxu0 0.0
  %397 = vmatpush.msra.mxu0 0.0
  %398 = vmatpush.msra.mxu0 0.0
  %399 = vmatpush.msra.mxu0 0.0
  %400 = vmatpush.msra.mxu0 0.0
  %401 = vmatpush.msra.mxu0 0.0
  %402 = vmatpush.msra.mxu0 0.0
  %403 = vmatpush.msra.mxu0 0.0
  %404 = vmatpush.msra.mxu0 0.0
  %405 = vmatpush.msra.mxu0 0.0
  %406 = vmatpush.msra.mxu0 0.0
  %407 = vmatpush.msra.mxu0 0.0
  %408 = vmatpush.msra.mxu0 0.0
  %409 = vmatpush.msra.mxu0 0.0
  %410 = vmatpush.msra.mxu0 %v293
  %411 = vmatmul.f32.gmra.mxu0 %v300
  %v412 = vpop.f32.mrf.mxu0
  %v413 = vadd.f32 %v296, %v412
  %414 = vmatmul.f32.gmra.mxu0 %v303
  %v415 = vpop.f32.mrf.mxu0
  %v416 = vadd.f32 %v296, %v415
  %417 = vmatmul.f32.gmra.mxu0 %v306
  %v418 = vpop.f32.mrf.mxu0
  %v419 = vadd.f32 %v296, %v418
  %420 = vmatmul.f32.gmra.mxu0 %v309
  %v421 = vpop.f32.mrf.mxu0
  %v422 = vadd.f32 %v296, %v421
  %423 = vmatmul.f32.gmra.mxu0 %v312
  %v424 = vpop.f32.mrf.mxu0
  %v425 = vadd.f32 %v296, %v424
  %426 = vmatmul.f32.gmra.mxu0 %v315
  %v427 = vpop.f32.mrf.mxu0
  %v428 = vadd.f32 %v296, %v427
  %429 = vmatmul.f32.gmra.mxu0 %v318
  %v430 = vpop.f32.mrf.mxu0
  %v431 = vadd.f32 %v296, %v430
  %432 = vmatmul.f32.gmra.mxu0 %v321
  %v433 = vpop.f32.mrf.mxu0
  %v434 = vadd.f32 %v296, %v433
  %435 = vmatmul.f32.gmra.mxu0 %v324
  %v436 = vpop.f32.mrf.mxu0
  %v437 = vadd.f32 %v296, %v436
  %438 = vmatmul.f32.gmra.mxu0 %v327
  %v439 = vpop.f32.mrf.mxu0
  %v440 = vadd.f32 %v296, %v439
  %441 = vmatmul.f32.gmra.mxu0 %v330
  %v442 = vpop.f32.mrf.mxu0
  %v443 = vadd.f32 %v296, %v442
  %444 = vmatmul.f32.gmra.mxu0 %v333
  %v445 = vpop.f32.mrf.mxu0
  %v446 = vadd.f32 %v296, %v445
  %447 = vmatmul.f32.gmra.mxu0 %v336
  %v448 = vpop.f32.mrf.mxu0
  %v449 = vadd.f32 %v296, %v448
  %450 = vmatmul.f32.gmra.mxu0 %v339
  %v451 = vpop.f32.mrf.mxu0
  %v452 = vadd.f32 %v296, %v451
  %453 = vmatmul.f32.gmra.mxu0 %v342
  %v454 = vpop.f32.mrf.mxu0
  %v455 = vadd.f32 %v296, %v454
  %456 = vmatmul.f32.gmra.mxu0 %v345
  %v457 = vpop.f32.mrf.mxu0
  %v458 = vadd.f32 %v296, %v457
  %459 = vmatmul.f32.gmra.mxu0 %v348
  %v460 = vpop.f32.mrf.mxu0
  %v461 = vadd.f32 %v296, %v460
  %462 = vmatmul.f32.gmra.mxu0 %v351
  %v463 = vpop.f32.mrf.mxu0
  %v464 = vadd.f32 %v296, %v463
  %465 = vmatmul.f32.gmra.mxu0 %v354
  %v466 = vpop.f32.mrf.mxu0
  %v467 = vadd.f32 %v296, %v466
  %468 = vmatmul.f32.gmra.mxu0 %v357
  %v469 = vpop.f32.mrf.mxu0
  %v470 = vadd.f32 %v296, %v469
  %471 = vmatmul.f32.gmra.mxu0 %v360
  %v472 = vpop.f32.mrf.mxu0
  %v473 = vadd.f32 %v296, %v472
  %474 = vmatmul.f32.gmra.mxu0 %v363
  %v475 = vpop.f32.mrf.mxu0
  %v476 = vadd.f32 %v296, %v475
  %477 = vmatmul.f32.gmra.mxu0 %v366
  %v478 = vpop.f32.mrf.mxu0
  %v479 = vadd.f32 %v296, %v478
  %480 = vmatmul.f32.gmra.mxu0 %v369
  %v481 = vpop.f32.mrf.mxu0
  %v482 = vadd.f32 %v296, %v481
  %483 = vmatmul.f32.gmra.mxu0 %v372
  %v484 = vpop.f32.mrf.mxu0
  %v485 = vadd.f32 %v296, %v484
  %486 = vmatmul.f32.gmra.mxu0 %v375
  %v487 = vpop.f32.mrf.mxu0
  %v488 = vadd.f32 %v296, %v487
  %489 = vmatmul.f32.gmra.mxu0 %v378
  %v490 = vpop.f32.mrf.mxu0
  %v491 = vadd.f32 %v296, %v490
  %492 = vmatmul.f32.gmra.mxu0 %v381
  %v493 = vpop.f32.mrf.mxu0
  %v494 = vadd.f32 %v296, %v493
  %495 = vmatmul.f32.gmra.mxu0 %v384
  %v496 = vpop.f32.mrf.mxu0
  %v497 = vadd.f32 %v296, %v496
  %498 = vmatmul.f32.gmra.mxu0 %v387
  %v499 = vpop.f32.mrf.mxu0
  %v500 = vadd.f32 %v296, %v499
  %501 = vmatmul.f32.gmra.mxu0 %v390
  %v502 = vpop.f32.mrf.mxu0
  %v503 = vadd.f32 %v296, %v502
  %504 = vmatmul.f32.gmra.mxu0 %v393
  %v505 = vpop.f32.mrf.mxu0
  %v506 = vadd.f32 %v296, %v505
  %507 = vdwg.mxu0
  %v508 = vld [vmem:[%s7] sm:$0xff]
  %v509 = vld [vmem:[%s7 + $0x8] sm:$0xff]
  %v510 = vld [vmem:[%s7 + $0x10] sm:$0xff]
  %v511 = vld [vmem:[%s7 + $0x18] sm:$0xff]
  %v512 = vld [vmem:[%s7 + $0x20] sm:$0xff]
  %v513 = vld [vmem:[%s7 + $0x28] sm:$0xff]
  %v514 = vld [vmem:[%s7 + $0x30] sm:$0xff]
  %v515 = vld [vmem:[%s7 + $0x38] sm:$0xff]
  %v516 = vld [vmem:[%s7 + $0x40] sm:$0xff]
  %v517 = vld [vmem:[%s7 + $0x48] sm:$0xff]
  %v518 = vld [vmem:[%s7 + $0x50] sm:$0xff]
  %v519 = vld [vmem:[%s7 + $0x58] sm:$0xff]
  %v520 = vld [vmem:[%s7 + $0x60] sm:$0xff]
  %v521 = vld [vmem:[%s7 + $0x68] sm:$0xff]
  %v522 = vld [vmem:[%s7 + $0x70] sm:$0xff]
  %v523 = vld [vmem:[%s7 + $0x78] sm:$0xff]
  %v524 = vld [vmem:[%s7 + $0x80] sm:$0xff]
  %v525 = vld [vmem:[%s7 + $0x88] sm:$0xff]
  %v526 = vld [vmem:[%s7 + $0x90] sm:$0xff]
  %v527 = vld [vmem:[%s7 + $0x98] sm:$0xff]
  %v528 = vld [vmem:[%s7 + $0xa0] sm:$0xff]
  %v529 = vld [vmem:[%s7 + $0xa8] sm:$0xff]
  %v530 = vld [vmem:[%s7 + $0xb0] sm:$0xff]
  %v531 = vld [vmem:[%s7 + $0xb8] sm:$0xff]
  %v532 = vld [vmem:[%s7 + $0xc0] sm:$0xff]
  %v533 = vld [vmem:[%s7 + $0xc8] sm:$0xff]
  %v534 = vld [vmem:[%s7 + $0xd0] sm:$0xff]
  %v535 = vld [vmem:[%s7 + $0xd8] sm:$0xff]
  %v536 = vld [vmem:[%s7 + $0xe0] sm:$0xff]
  %v537 = vld [vmem:[%s7 + $0xe8] sm:$0xff]
  %v538 = vld [vmem:[%s7 + $0xf0] sm:$0xff]
  %v539 = vld [vmem:[%s7 + $0xf8] sm:$0xff]
  %v540 = vld [vmem:[#allocation2] sm:$0xff]
  %v541 = vld [vmem:[#allocation2 + $0x8] sm:$0xff]
  %v542 = vld [vmem:[#allocation2 + $0x10] sm:$0xff]
  %v543 = vld [vmem:[#allocation2 + $0x18] sm:$0xff]
  %v544 = vld [vmem:[#allocation2 + $0x20] sm:$0xff]
  %v545 = vld [vmem:[#allocation2 + $0x28] sm:$0xff]
  %v546 = vld [vmem:[#allocation2 + $0x30] sm:$0xff]
  %v547 = vld [vmem:[#allocation2 + $0x38] sm:$0xff]
  %v548 = vld [vmem:[#allocation2 + $0x40] sm:$0xff]
  %v549 = vld [vmem:[#allocation2 + $0x48] sm:$0xff]
  %v550 = vld [vmem:[#allocation2 + $0x50] sm:$0xff]
  %v551 = vld [vmem:[#allocation2 + $0x58] sm:$0xff]
  %v552 = vld [vmem:[#allocation2 + $0x60] sm:$0xff]
  %v553 = vld [vmem:[#allocation2 + $0x68] sm:$0xff]
  %v554 = vld [vmem:[#allocation2 + $0x70] sm:$0xff]
  %v555 = vld [vmem:[#allocation2 + $0x78] sm:$0xff]
  %556 = vmatpush.msra.mxu0 %v555
  %557 = vmatpush.msra.mxu0 %v554
  %558 = vmatpush.msra.mxu0 %v553
  %559 = vmatpush.msra.mxu0 %v552
  %560 = vmatpush.msra.mxu0 %v551
  %561 = vmatpush.msra.mxu0 %v550
  %562 = vmatpush.msra.mxu0 %v549
  %563 = vmatpush.msra.mxu0 %v548
  %564 = vmatpush.msra.mxu0 %v547
  %565 = vmatpush.msra.mxu0 %v546
  %566 = vmatpush.msra.mxu0 %v545
  %567 = vmatpush.msra.mxu0 %v544
  %568 = vmatpush.msra.mxu0 %v543
  %569 = vmatpush.msra.mxu0 %v542
  %570 = vmatpush.msra.mxu0 %v541
  %571 = vmatpush.msra.mxu0 %v540
  %572 = vmatmul.f32.gmra.mxu0 %v508
  %v573 = vpop.f32.mrf.mxu0
  %v574 = vadd.f32 %v413, %v573
  %575 = vmatmul.f32.gmra.mxu0 %v509
  %v576 = vpop.f32.mrf.mxu0
  %v577 = vadd.f32 %v416, %v576
  %578 = vmatmul.f32.gmra.mxu0 %v510
  %v579 = vpop.f32.mrf.mxu0
  %v580 = vadd.f32 %v419, %v579
  %581 = vmatmul.f32.gmra.mxu0 %v511
  %v582 = vpop.f32.mrf.mxu0
  %v583 = vadd.f32 %v422, %v582
  %584 = vmatmul.f32.gmra.mxu0 %v512
  %v585 = vpop.f32.mrf.mxu0
  %v586 = vadd.f32 %v425, %v585
  %587 = vmatmul.f32.gmra.mxu0 %v513
  %v588 = vpop.f32.mrf.mxu0
  %v589 = vadd.f32 %v428, %v588
  %590 = vmatmul.f32.gmra.mxu0 %v514
  %v591 = vpop.f32.mrf.mxu0
  %v592 = vadd.f32 %v431, %v591
  %593 = vmatmul.f32.gmra.mxu0 %v515
  %v594 = vpop.f32.mrf.mxu0
  %v595 = vadd.f32 %v434, %v594
  %596 = vmatmul.f32.gmra.mxu0 %v516
  %v597 = vpop.f32.mrf.mxu0
  %v598 = vadd.f32 %v437, %v597
  %599 = vmatmul.f32.gmra.mxu0 %v517
  %v600 = vpop.f32.mrf.mxu0
  %v601 = vadd.f32 %v440, %v600
  %602 = vmatmul.f32.gmra.mxu0 %v518
  %v603 = vpop.f32.mrf.mxu0
  %v604 = vadd.f32 %v443, %v603
  %605 = vmatmul.f32.gmra.mxu0 %v519
  %v606 = vpop.f32.mrf.mxu0
  %v607 = vadd.f32 %v446, %v606
  %608 = vmatmul.f32.gmra.mxu0 %v520
  %v609 = vpop.f32.mrf.mxu0
  %v610 = vadd.f32 %v449, %v609
  %611 = vmatmul.f32.gmra.mxu0 %v521
  %v612 = vpop.f32.mrf.mxu0
  %v613 = vadd.f32 %v452, %v612
  %614 = vmatmul.f32.gmra.mxu0 %v522
  %v615 = vpop.f32.mrf.mxu0
  %v616 = vadd.f32 %v455, %v615
  %617 = vmatmul.f32.gmra.mxu0 %v523
  %v618 = vpop.f32.mrf.mxu0
  %v619 = vadd.f32 %v458, %v618
  %620 = vmatmul.f32.gmra.mxu0 %v524
  %v621 = vpop.f32.mrf.mxu0
  %v622 = vadd.f32 %v461, %v621
  %623 = vmatmul.f32.gmra.mxu0 %v525
  %v624 = vpop.f32.mrf.mxu0
  %v625 = vadd.f32 %v464, %v624
  %626 = vmatmul.f32.gmra.mxu0 %v526
  %v627 = vpop.f32.mrf.mxu0
  %v628 = vadd.f32 %v467, %v627
  %629 = vmatmul.f32.gmra.mxu0 %v527
  %v630 = vpop.f32.mrf.mxu0
  %v631 = vadd.f32 %v470, %v630
  %632 = vmatmul.f32.gmra.mxu0 %v528
  %v633 = vpop.f32.mrf.mxu0
  %v634 = vadd.f32 %v473, %v633
  %635 = vmatmul.f32.gmra.mxu0 %v529
  %v636 = vpop.f32.mrf.mxu0
  %v637 = vadd.f32 %v476, %v636
  %638 = vmatmul.f32.gmra.mxu0 %v530
  %v639 = vpop.f32.mrf.mxu0
  %v640 = vadd.f32 %v479, %v639
  %641 = vmatmul.f32.gmra.mxu0 %v531
  %v642 = vpop.f32.mrf.mxu0
  %v643 = vadd.f32 %v482, %v642
  %644 = vmatmul.f32.gmra.mxu0 %v532
  %v645 = vpop.f32.mrf.mxu0
  %v646 = vadd.f32 %v485, %v645
  %647 = vmatmul.f32.gmra.mxu0 %v533
  %v648 = vpop.f32.mrf.mxu0
  %v649 = vadd.f32 %v488, %v648
  %650 = vmatmul.f32.gmra.mxu0 %v534
  %v651 = vpop.f32.mrf.mxu0
  %v652 = vadd.f32 %v491, %v651
  %653 = vmatmul.f32.gmra.mxu0 %v535
  %v654 = vpop.f32.mrf.mxu0
  %v655 = vadd.f32 %v494, %v654
  %656 = vmatmul.f32.gmra.mxu0 %v536
  %v657 = vpop.f32.mrf.mxu0
  %v658 = vadd.f32 %v497, %v657
  %659 = vmatmul.f32.gmra.mxu0 %v537
  %v660 = vpop.f32.mrf.mxu0
  %v661 = vadd.f32 %v500, %v660
  %662 = vmatmul.f32.gmra.mxu0 %v538
  %v663 = vpop.f32.mrf.mxu0
  %v664 = vadd.f32 %v503, %v663
  %665 = vmatmul.f32.gmra.mxu0 %v539
  %v666 = vpop.f32.mrf.mxu0
  %v667 = vadd.f32 %v506, %v666
  %668 = vdwg.mxu0
  %v669 = vmax.f32 %v574, 0.0
  %v670 = vmax.f32 %v577, 0.0
  %v671 = vmax.f32 %v580, 0.0
  %v672 = vmax.f32 %v583, 0.0
  %v673 = vmax.f32 %v586, 0.0
  %v674 = vmax.f32 %v589, 0.0
  %v675 = vmax.f32 %v592, 0.0
  %v676 = vmax.f32 %v595, 0.0
  %v677 = vmax.f32 %v598, 0.0
  %v678 = vmax.f32 %v601, 0.0
  %v679 = vmax.f32 %v604, 0.0
  %v680 = vmax.f32 %v607, 0.0
  %v681 = vmax.f32 %v610, 0.0
  %v682 = vmax.f32 %v613, 0.0
  %v683 = vmax.f32 %v616, 0.0
  %v684 = vmax.f32 %v619, 0.0
  %v685 = vmax.f32 %v622, 0.0
  %v686 = vmax.f32 %v625, 0.0
  %v687 = vmax.f32 %v628, 0.0
  %v688 = vmax.f32 %v631, 0.0
  %v689 = vmax.f32 %v634, 0.0
  %v690 = vmax.f32 %v637, 0.0
  %v691 = vmax.f32 %v640, 0.0
  %v692 = vmax.f32 %v643, 0.0
  %v693 = vmax.f32 %v646, 0.0
  %v694 = vmax.f32 %v649, 0.0
  %v695 = vmax.f32 %v652, 0.0
  %v696 = vmax.f32 %v655, 0.0
  %v697 = vmax.f32 %v658, 0.0
  %v698 = vmax.f32 %v661, 0.0
  %v699 = vmax.f32 %v664, 0.0
  %v700 = vmax.f32 %v667, 0.0
  %v701 = vld [vmem:[#allocation3] sm:$0xff]
  %v702 = vld [vmem:[#allocation3 + $0x8] sm:$0xff]
  %v703 = vld [vmem:[#allocation3 + $0x10] sm:$0xff]
  %v704 = vld [vmem:[#allocation3 + $0x18] sm:$0xff]
  %v705 = vld [vmem:[#allocation3 + $0x20] sm:$0xff]
  %v706 = vld [vmem:[#allocation3 + $0x28] sm:$0xff]
  %v707 = vld [vmem:[#allocation3 + $0x30] sm:$0xff]
  %v708 = vld [vmem:[#allocation3 + $0x38] sm:$0xff]
  %v709 = vld [vmem:[#allocation3 + $0x40] sm:$0xff]
  %v710 = vld [vmem:[#allocation3 + $0x48] sm:$0xff]
  %v711 = vld [vmem:[#allocation3 + $0x50] sm:$0xff]
  %v712 = vld [vmem:[#allocation3 + $0x58] sm:$0xff]
  %v713 = vld [vmem:[#allocation3 + $0x60] sm:$0xff]
  %v714 = vld [vmem:[#allocation3 + $0x68] sm:$0xff]
  %v715 = vld [vmem:[#allocation3 + $0x70] sm:$0xff]
  %v716 = vld [vmem:[#allocation3 + $0x78] sm:$0xff]
  %v717 = vld [vmem:[%s8] sm:$0xff]
  %v718 = vld [vmem:[%s8 + $0x8] sm:$0xff]
  %v719 = vld [vmem:[%s8 + $0x10] sm:$0xff]
  %v720 = vld [vmem:[%s8 + $0x18] sm:$0xff]
  %v721 = vld [vmem:[%s8 + $0x20] sm:$0xff]
  %v722 = vld [vmem:[%s8 + $0x28] sm:$0xff]
  %v723 = vld [vmem:[%s8 + $0x30] sm:$0xff]
  %v724 = vld [vmem:[%s8 + $0x38] sm:$0xff]
  %v725 = vld [vmem:[%s8 + $0x40] sm:$0xff]
  %v726 = vld [vmem:[%s8 + $0x48] sm:$0xff]
  %v727 = vld [vmem:[%s8 + $0x50] sm:$0xff]
  %v728 = vld [vmem:[%s8 + $0x58] sm:$0xff]
  %v729 = vld [vmem:[%s8 + $0x60] sm:$0xff]
  %v730 = vld [vmem:[%s8 + $0x68] sm:$0xff]
  %v731 = vld [vmem:[%s8 + $0x70] sm:$0xff]
  %v732 = vld [vmem:[%s8 + $0x78] sm:$0xff]
  %v733 = vld [vmem:[%s8 + $0x80] sm:$0xff]
  %v734 = vld [vmem:[%s8 + $0x88] sm:$0xff]
  %v735 = vld [vmem:[%s8 + $0x90] sm:$0xff]
  %v736 = vld [vmem:[%s8 + $0x98] sm:$0xff]
  %v737 = vld [vmem:[%s8 + $0xa0] sm:$0xff]
  %v738 = vld [vmem:[%s8 + $0xa8] sm:$0xff]
  %v739 = vld [vmem:[%s8 + $0xb0] sm:$0xff]
  %v740 = vld [vmem:[%s8 + $0xb8] sm:$0xff]
  %v741 = vld [vmem:[%s8 + $0xc0] sm:$0xff]
  %v742 = vld [vmem:[%s8 + $0xc8] sm:$0xff]
  %v743 = vld [vmem:[%s8 + $0xd0] sm:$0xff]
  %v744 = vld [vmem:[%s8 + $0xd8] sm:$0xff]
  %v745 = vld [vmem:[%s8 + $0xe0] sm:$0xff]
  %v746 = vld [vmem:[%s8 + $0xe8] sm:$0xff]
  %v747 = vld [vmem:[%s8 + $0xf0] sm:$0xff]
  %v748 = vld [vmem:[%s8 + $0xf8] sm:$0xff]
  %749 = vmatpush.msra.mxu0 %v684
  %750 = vmatpush.msra.mxu0 %v683
  %751 = vmatpush.msra.mxu0 %v682
  %752 = vmatpush.msra.mxu0 %v681
  %753 = vmatpush.msra.mxu0 %v680
  %754 = vmatpush.msra.mxu0 %v679
  %755 = vmatpush.msra.mxu0 %v678
  %756 = vmatpush.msra.mxu0 %v677
  %757 = vmatpush.msra.mxu0 %v676
  %758 = vmatpush.msra.mxu0 %v675
  %759 = vmatpush.msra.mxu0 %v674
  %760 = vmatpush.msra.mxu0 %v673
  %761 = vmatpush.msra.mxu0 %v672
  %762 = vmatpush.msra.mxu0 %v671
  %763 = vmatpush.msra.mxu0 %v670
  %764 = vmatpush.msra.mxu0 %v669
  %765 = vmatmul.f32.gmra.mxu0 %v717
  %v766 = vpop.f32.mrf.mxu0
  %v767 = vadd.f32 0.0, %v766
  %768 = vmatmul.f32.gmra.mxu0 %v719
  %v769 = vpop.f32.mrf.mxu0
  %v770 = vadd.f32 0.0, %v769
  %771 = vmatmul.f32.gmra.mxu0 %v721
  %v772 = vpop.f32.mrf.mxu0
  %v773 = vadd.f32 0.0, %v772
  %774 = vmatmul.f32.gmra.mxu0 %v723
  %v775 = vpop.f32.mrf.mxu0
  %v776 = vadd.f32 0.0, %v775
  %777 = vmatmul.f32.gmra.mxu0 %v725
  %v778 = vpop.f32.mrf.mxu0
  %v779 = vadd.f32 0.0, %v778
  %780 = vmatmul.f32.gmra.mxu0 %v727
  %v781 = vpop.f32.mrf.mxu0
  %v782 = vadd.f32 0.0, %v781
  %783 = vmatmul.f32.gmra.mxu0 %v729
  %v784 = vpop.f32.mrf.mxu0
  %v785 = vadd.f32 0.0, %v784
  %786 = vmatmul.f32.gmra.mxu0 %v731
  %v787 = vpop.f32.mrf.mxu0
  %v788 = vadd.f32 0.0, %v787
  %789 = vmatmul.f32.gmra.mxu0 %v733
  %v790 = vpop.f32.mrf.mxu0
  %v791 = vadd.f32 0.0, %v790
  %792 = vmatmul.f32.gmra.mxu0 %v735
  %v793 = vpop.f32.mrf.mxu0
  %v794 = vadd.f32 0.0, %v793
  %795 = vmatmul.f32.gmra.mxu0 %v737
  %v796 = vpop.f32.mrf.mxu0
  %v797 = vadd.f32 0.0, %v796
  %798 = vmatmul.f32.gmra.mxu0 %v739
  %v799 = vpop.f32.mrf.mxu0
  %v800 = vadd.f32 0.0, %v799
  %801 = vmatmul.f32.gmra.mxu0 %v741
  %v802 = vpop.f32.mrf.mxu0
  %v803 = vadd.f32 0.0, %v802
  %804 = vmatmul.f32.gmra.mxu0 %v743
  %v805 = vpop.f32.mrf.mxu0
  %v806 = vadd.f32 0.0, %v805
  %807 = vmatmul.f32.gmra.mxu0 %v745
  %v808 = vpop.f32.mrf.mxu0
  %v809 = vadd.f32 0.0, %v808
  %810 = vmatmul.f32.gmra.mxu0 %v747
  %v811 = vpop.f32.mrf.mxu0
  %v812 = vadd.f32 0.0, %v811
  %813 = vdwg.mxu0
  %814 = vmatpush.msra.mxu0 %v700
  %815 = vmatpush.msra.mxu0 %v699
  %816 = vmatpush.msra.mxu0 %v698
  %817 = vmatpush.msra.mxu0 %v697
  %818 = vmatpush.msra.mxu0 %v696
  %819 = vmatpush.msra.mxu0 %v695
  %820 = vmatpush.msra.mxu0 %v694
  %821 = vmatpush.msra.mxu0 %v693
  %822 = vmatpush.msra.mxu0 %v692
  %823 = vmatpush.msra.mxu0 %v691
  %824 = vmatpush.msra.mxu0 %v690
  %825 = vmatpush.msra.mxu0 %v689
  %826 = vmatpush.msra.mxu0 %v688
  %827 = vmatpush.msra.mxu0 %v687
  %828 = vmatpush.msra.mxu0 %v686
  %829 = vmatpush.msra.mxu0 %v685
  %830 = vmatmul.f32.gmra.mxu0 %v718
  %v831 = vpop.f32.mrf.mxu0
  %v832 = vadd.f32 %v767, %v831
  %833 = vmatmul.f32.gmra.mxu0 %v720
  %v834 = vpop.f32.mrf.mxu0
  %v835 = vadd.f32 %v770, %v834
  %836 = vmatmul.f32.gmra.mxu0 %v722
  %v837 = vpop.f32.mrf.mxu0
  %v838 = vadd.f32 %v773, %v837
  %839 = vmatmul.f32.gmra.mxu0 %v724
  %v840 = vpop.f32.mrf.mxu0
  %v841 = vadd.f32 %v776, %v840
  %842 = vmatmul.f32.gmra.mxu0 %v726
  %v843 = vpop.f32.mrf.mxu0
  %v844 = vadd.f32 %v779, %v843
  %845 = vmatmul.f32.gmra.mxu0 %v728
  %v846 = vpop.f32.mrf.mxu0
  %v847 = vadd.f32 %v782, %v846
  %848 = vmatmul.f32.gmra.mxu0 %v730
  %v849 = vpop.f32.mrf.mxu0
  %v850 = vadd.f32 %v785, %v849
  %851 = vmatmul.f32.gmra.mxu0 %v732
  %v852 = vpop.f32.mrf.mxu0
  %v853 = vadd.f32 %v788, %v852
  %854 = vmatmul.f32.gmra.mxu0 %v734
  %v855 = vpop.f32.mrf.mxu0
  %v856 = vadd.f32 %v791, %v855
  %857 = vmatmul.f32.gmra.mxu0 %v736
  %v858 = vpop.f32.mrf.mxu0
  %v859 = vadd.f32 %v794, %v858
  %860 = vmatmul.f32.gmra.mxu0 %v738
  %v861 = vpop.f32.mrf.mxu0
  %v862 = vadd.f32 %v797, %v861
  %863 = vmatmul.f32.gmra.mxu0 %v740
  %v864 = vpop.f32.mrf.mxu0
  %v865 = vadd.f32 %v800, %v864
  %866 = vmatmul.f32.gmra.mxu0 %v742
  %v867 = vpop.f32.mrf.mxu0
  %v868 = vadd.f32 %v803, %v867
  %869 = vmatmul.f32.gmra.mxu0 %v744
  %v870 = vpop.f32.mrf.mxu0
  %v871 = vadd.f32 %v806, %v870
  %872 = vmatmul.f32.gmra.mxu0 %v746
  %v873 = vpop.f32.mrf.mxu0
  %v874 = vadd.f32 %v809, %v873
  %875 = vmatmul.f32.gmra.mxu0 %v748
  %v876 = vpop.f32.mrf.mxu0
  %v877 = vadd.f32 %v812, %v876
  %878 = vdwg.mxu0
  %v879 = vadd.f32 %v701, %v832
  %v880 = vadd.f32 %v702, %v835
  %v881 = vadd.f32 %v703, %v838
  %v882 = vadd.f32 %v704, %v841
  %v883 = vadd.f32 %v705, %v844
  %v884 = vadd.f32 %v706, %v847
  %v885 = vadd.f32 %v707, %v850
  %v886 = vadd.f32 %v708, %v853
  %v887 = vadd.f32 %v709, %v856
  %v888 = vadd.f32 %v710, %v859
  %v889 = vadd.f32 %v711, %v862
  %v890 = vadd.f32 %v712, %v865
  %v891 = vadd.f32 %v713, %v868
  %v892 = vadd.f32 %v714, %v871
  %v893 = vadd.f32 %v715, %v874
  %v894 = vadd.f32 %v716, %v877
  %895 = vst [vmem:[#allocation3] sm:$0xff] %v879
  %896 = vst [vmem:[#allocation3 + $0x8] sm:$0xff] %v880
  %897 = vst [vmem:[#allocation3 + $0x10] sm:$0xff] %v881
  %898 = vst [vmem:[#allocation3 + $0x18] sm:$0xff] %v882
  %899 = vst [vmem:[#allocation3 + $0x20] sm:$0xff] %v883
  %900 = vst [vmem:[#allocation3 + $0x28] sm:$0xff] %v884
  %901 = vst [vmem:[#allocation3 + $0x30] sm:$0xff] %v885
  %902 = vst [vmem:[#allocation3 + $0x38] sm:$0xff] %v886
  %903 = vst [vmem:[#allocation3 + $0x40] sm:$0xff] %v887
  %904 = vst [vmem:[#allocation3 + $0x48] sm:$0xff] %v888
  %905 = vst [vmem:[#allocation3 + $0x50] sm:$0xff] %v889
  %906 = vst [vmem:[#allocation3 + $0x58] sm:$0xff] %v890
  %907 = vst [vmem:[#allocation3 + $0x60] sm:$0xff] %v891
  %908 = vst [vmem:[#allocation3 + $0x68] sm:$0xff] %v892
  %909 = vst [vmem:[#allocation3 + $0x70] sm:$0xff] %v893
  %910 = vst [vmem:[#allocation3 + $0x78] sm:$0xff] %v894
  // Predicated region
  $region78: #{gnn_node_virtualnode_forward.3} parent=0 // pred_check
    %p911 = pneg %p62
  $region79: #{gnn_node_virtualnode_forward.3} parent=0 // pred_check_branch
    %913 = sbr.rel (%p911) target = $region81
  $region80: #{gnn_node_virtualnode_forward.3} parent=0 // pred_region
    %s914 = sld [smem:[#allocation4]]
    %v915 = vld [vmem:[#allocation2] sm:$0xff]
    %v916 = vld [vmem:[#allocation2 + $0x8] sm:$0xff]
    %v917 = vld [vmem:[#allocation2 + $0x10] sm:$0xff]
    %v918 = vld [vmem:[#allocation2 + $0x18] sm:$0xff]
    %v919 = vld [vmem:[#allocation2 + $0x20] sm:$0xff]
    %v920 = vld [vmem:[#allocation2 + $0x28] sm:$0xff]
    %v921 = vld [vmem:[#allocation2 + $0x30] sm:$0xff]
    %v922 = vld [vmem:[#allocation2 + $0x38] sm:$0xff]
    %v923 = vld [vmem:[#allocation2 + $0x40] sm:$0xff]
    %v924 = vld [vmem:[#allocation2 + $0x48] sm:$0xff]
    %v925 = vld [vmem:[#allocation2 + $0x50] sm:$0xff]
    %v926 = vld [vmem:[#allocation2 + $0x58] sm:$0xff]
    %v927 = vld [vmem:[#allocation2 + $0x60] sm:$0xff]
    %v928 = vld [vmem:[#allocation2 + $0x68] sm:$0xff]
    %v929 = vld [vmem:[#allocation2 + $0x70] sm:$0xff]
    %v930 = vld [vmem:[#allocation2 + $0x78] sm:$0xff]
    %v931 = vstv %s914
    %v932 = vmul.f32 %v931, %v915
    %v933 = vmul.f32 %v931, %v916
    %v934 = vmul.f32 %v931, %v917
    %v935 = vmul.f32 %v931, %v918
    %v936 = vmul.f32 %v931, %v919
    %v937 = vmul.f32 %v931, %v920
    %v938 = vmul.f32 %v931, %v921
    %v939 = vmul.f32 %v931, %v922
    %v940 = vmul.f32 %v931, %v923
    %v941 = vmul.f32 %v931, %v924
    %v942 = vmul.f32 %v931, %v925
    %v943 = vmul.f32 %v931, %v926
    %v944 = vmul.f32 %v931, %v927
    %v945 = vmul.f32 %v931, %v928
    %v946 = vmul.f32 %v931, %v929
    %v947 = vmul.f32 %v931, %v930
    %v948 = vld [vmem:[#allocation3] sm:$0xff]
    %v949 = vld [vmem:[#allocation3 + $0x8] sm:$0xff]
    %v950 = vld [vmem:[#allocation3 + $0x10] sm:$0xff]
    %v951 = vld [vmem:[#allocation3 + $0x18] sm:$0xff]
    %v952 = vld [vmem:[#allocation3 + $0x20] sm:$0xff]
    %v953 = vld [vmem:[#allocation3 + $0x28] sm:$0xff]
    %v954 = vld [vmem:[#allocation3 + $0x30] sm:$0xff]
    %v955 = vld [vmem:[#allocation3 + $0x38] sm:$0xff]
    %v956 = vld [vmem:[#allocation3 + $0x40] sm:$0xff]
    %v957 = vld [vmem:[#allocation3 + $0x48] sm:$0xff]
    %v958 = vld [vmem:[#allocation3 + $0x50] sm:$0xff]
    %v959 = vld [vmem:[#allocation3 + $0x58] sm:$0xff]
    %v960 = vld [vmem:[#allocation3 + $0x60] sm:$0xff]
    %v961 = vld [vmem:[#allocation3 + $0x68] sm:$0xff]
    %v962 = vld [vmem:[#allocation3 + $0x70] sm:$0xff]
    %v963 = vld [vmem:[#allocation3 + $0x78] sm:$0xff]
    %v964 = vadd.f32 %v932, %v948
    %v965 = vadd.f32 %v933, %v949
    %v966 = vadd.f32 %v934, %v950
    %v967 = vadd.f32 %v935, %v951
    %v968 = vadd.f32 %v936, %v952
    %v969 = vadd.f32 %v937, %v953
    %v970 = vadd.f32 %v938, %v954
    %v971 = vadd.f32 %v939, %v955
    %v972 = vadd.f32 %v940, %v956
    %v973 = vadd.f32 %v941, %v957
    %v974 = vadd.f32 %v942, %v958
    %v975 = vadd.f32 %v943, %v959
    %v976 = vadd.f32 %v944, %v960
    %v977 = vadd.f32 %v945, %v961
    %v978 = vadd.f32 %v946, %v962
    %v979 = vadd.f32 %v947, %v963
    %v980 = vld [vmem:[%s9] sm:$0xff]
    %v981 = vld [vmem:[%s9 + $0x8] sm:$0xff]
    %v982 = vld [vmem:[%s9 + $0x10] sm:$0xff]
    %v983 = vld [vmem:[%s9 + $0x18] sm:$0xff]
    %v984 = vld [vmem:[%s9 + $0x20] sm:$0xff]
    %v985 = vld [vmem:[%s9 + $0x28] sm:$0xff]
    %v986 = vld [vmem:[%s9 + $0x30] sm:$0xff]
    %v987 = vld [vmem:[%s9 + $0x38] sm:$0xff]
    %v988 = vld [vmem:[%s9 + $0x40] sm:$0xff]
    %v989 = vld [vmem:[%s9 + $0x48] sm:$0xff]
    %v990 = vld [vmem:[%s9 + $0x50] sm:$0xff]
    %v991 = vld [vmem:[%s9 + $0x58] sm:$0xff]
    %v992 = vld [vmem:[%s9 + $0x60] sm:$0xff]
    %v993 = vld [vmem:[%s9 + $0x68] sm:$0xff]
    %v994 = vld [vmem:[%s9 + $0x70] sm:$0xff]
    %v995 = vld [vmem:[%s9 + $0x78] sm:$0xff]
    %v996 = vld [vmem:[%s9 + $0x80] sm:$0xff]
    %v997 = vld [vmem:[%s9 + $0x88] sm:$0xff]
    %v998 = vld [vmem:[%s9 + $0x90] sm:$0xff]
    %v999 = vld [vmem:[%s9 + $0x98] sm:$0xff]
    %v1000 = vld [vmem:[%s9 + $0xa0] sm:$0xff]
    %v1001 = vld [vmem:[%s9 + $0xa8] sm:$0xff]
    %v1002 = vld [vmem:[%s9 + $0xb0] sm:$0xff]
    %v1003 = vld [vmem:[%s9 + $0xb8] sm:$0xff]
    %v1004 = vld [vmem:[%s9 + $0xc0] sm:$0xff]
    %v1005 = vld [vmem:[%s9 + $0xc8] sm:$0xff]
    %v1006 = vld [vmem:[%s9 + $0xd0] sm:$0xff]
    %v1007 = vld [vmem:[%s9 + $0xd8] sm:$0xff]
    %v1008 = vld [vmem:[%s9 + $0xe0] sm:$0xff]
    %v1009 = vld [vmem:[%s9 + $0xe8] sm:$0xff]
    %v1010 = vld [vmem:[%s9 + $0xf0] sm:$0xff]
    %v1011 = vld [vmem:[%s9 + $0xf8] sm:$0xff]
    %v1012 = vld [vmem:[%s10] sm:$0x3]
    %v1014 = vperm.slane %v1012, 0
    %v1015 = vperm.slane %v1012, 1
    %1018 = vmatpush.msra.mxu0 %v1010
    %1019 = vmatpush.msra.mxu0 %v1008
    %1020 = vmatpush.msra.mxu0 %v1006
    %1021 = vmatpush.msra.mxu0 %v1004
    %1022 = vmatpush.msra.mxu0 %v1002
    %1023 = vmatpush.msra.mxu0 %v1000
    %1024 = vmatpush.msra.mxu0 %v998
    %1025 = vmatpush.msra.mxu0 %v996
    %1026 = vmatpush.msra.mxu0 %v994
    %1027 = vmatpush.msra.mxu0 %v992
    %1028 = vmatpush.msra.mxu0 %v990
    %1029 = vmatpush.msra.mxu0 %v988
    %1030 = vmatpush.msra.mxu0 %v986
    %1031 = vmatpush.msra.mxu0 %v984
    %1032 = vmatpush.msra.mxu0 %v982
    %1033 = vmatpush.msra.mxu0 %v980
    %1034 = vmatmul.f32.gmra.mxu0 %v964
    %v1035 = vpop.f32.mrf.mxu0
    %v1036 = vadd.f32 %v1014, %v1035
    %1037 = vmatmul.f32.gmra.mxu0 %v965
    %v1038 = vpop.f32.mrf.mxu0
    %v1039 = vadd.f32 %v1014, %v1038
    %1040 = vmatmul.f32.gmra.mxu0 %v966
    %v1041 = vpop.f32.mrf.mxu0
    %v1042 = vadd.f32 %v1014, %v1041
    %1043 = vmatmul.f32.gmra.mxu0 %v967
    %v1044 = vpop.f32.mrf.mxu0
    %v1045 = vadd.f32 %v1014, %v1044
    %1046 = vmatmul.f32.gmra.mxu0 %v968
    %v1047 = vpop.f32.mrf.mxu0
    %v1048 = vadd.f32 %v1014, %v1047
    %1049 = vmatmul.f32.gmra.mxu0 %v969
    %v1050 = vpop.f32.mrf.mxu0
    %v1051 = vadd.f32 %v1014, %v1050
    %1052 = vmatmul.f32.gmra.mxu0 %v970
    %v1053 = vpop.f32.mrf.mxu0
    %v1054 = vadd.f32 %v1014, %v1053
    %1055 = vmatmul.f32.gmra.mxu0 %v971
    %v1056 = vpop.f32.mrf.mxu0
    %v1057 = vadd.f32 %v1014, %v1056
    %1058 = vmatmul.f32.gmra.mxu0 %v972
    %v1059 = vpop.f32.mrf.mxu0
    %v1060 = vadd.f32 %v1014, %v1059
    %1061 = vmatmul.f32.gmra.mxu0 %v973
    %v1062 = vpop.f32.mrf.mxu0
    %v1063 = vadd.f32 %v1014, %v1062
    %1064 = vmatmul.f32.gmra.mxu0 %v974
    %v1065 = vpop.f32.mrf.mxu0
    %v1066 = vadd.f32 %v1014, %v1065
    %1067 = vmatmul.f32.gmra.mxu0 %v975
    %v1068 = vpop.f32.mrf.mxu0
    %v1069 = vadd.f32 %v1014, %v1068
    %1070 = vmatmul.f32.gmra.mxu0 %v976
    %v1071 = vpop.f32.mrf.mxu0
    %v1072 = vadd.f32 %v1014, %v1071
    %1073 = vmatmul.f32.gmra.mxu0 %v977
    %v1074 = vpop.f32.mrf.mxu0
    %v1075 = vadd.f32 %v1014, %v1074
    %1076 = vmatmul.f32.gmra.mxu0 %v978
    %v1077 = vpop.f32.mrf.mxu0
    %v1078 = vadd.f32 %v1014, %v1077
    %1079 = vmatmul.f32.gmra.mxu0 %v979
    %v1080 = vpop.f32.mrf.mxu0
    %v1081 = vadd.f32 %v1014, %v1080
    %1082 = vdwg.mxu0
    %1083 = vmatpush.msra.mxu0 %v1011
    %1084 = vmatpush.msra.mxu0 %v1009
    %1085 = vmatpush.msra.mxu0 %v1007
    %1086 = vmatpush.msra.mxu0 %v1005
    %1087 = vmatpush.msra.mxu0 %v1003
    %1088 = vmatpush.msra.mxu0 %v1001
    %1089 = vmatpush.msra.mxu0 %v999
    %1090 = vmatpush.msra.mxu0 %v997
    %1091 = vmatpush.msra.mxu0 %v995
    %1092 = vmatpush.msra.mxu0 %v993
    %1093 = vmatpush.msra.mxu0 %v991
    %1094 = vmatpush.msra.mxu0 %v989
    %1095 = vmatpush.msra.mxu0 %v987
    %1096 = vmatpush.msra.mxu0 %v985
    %1097 = vmatpush.msra.mxu0 %v983
    %1098 = vmatpush.msra.mxu0 %v981
    %1099 = vmatmul.f32.gmra.mxu0 %v964
    %v1100 = vpop.f32.mrf.mxu0
    %v1101 = vadd.f32 %v1015, %v1100
    %1102 = vmatmul.f32.gmra.mxu0 %v965
    %v1103 = vpop.f32.mrf.mxu0
    %v1104 = vadd.f32 %v1015, %v1103
    %1105 = vmatmul.f32.gmra.mxu0 %v966
    %v1106 = vpop.f32.mrf.mxu0
    %v1107 = vadd.f32 %v1015, %v1106
    %1108 = vmatmul.f32.gmra.mxu0 %v967
    %v1109 = vpop.f32.mrf.mxu0
    %v1110 = vadd.f32 %v1015, %v1109
    %1111 = vmatmul.f32.gmra.mxu0 %v968
    %v1112 = vpop.f32.mrf.mxu0
    %v1113 = vadd.f32 %v1015, %v1112
    %1114 = vmatmul.f32.gmra.mxu0 %v969
    %v1115 = vpop.f32.mrf.mxu0
    %v1116 = vadd.f32 %v1015, %v1115
    %1117 = vmatmul.f32.gmra.mxu0 %v970
    %v1118 = vpop.f32.mrf.mxu0
    %v1119 = vadd.f32 %v1015, %v1118
    %1120 = vmatmul.f32.gmra.mxu0 %v971
    %v1121 = vpop.f32.mrf.mxu0
    %v1122 = vadd.f32 %v1015, %v1121
    %1123 = vmatmul.f32.gmra.mxu0 %v972
    %v1124 = vpop.f32.mrf.mxu0
    %v1125 = vadd.f32 %v1015, %v1124
    %1126 = vmatmul.f32.gmra.mxu0 %v973
    %v1127 = vpop.f32.mrf.mxu0
    %v1128 = vadd.f32 %v1015, %v1127
    %1129 = vmatmul.f32.gmra.mxu0 %v974
    %v1130 = vpop.f32.mrf.mxu0
    %v1131 = vadd.f32 %v1015, %v1130
    %1132 = vmatmul.f32.gmra.mxu0 %v975
    %v1133 = vpop.f32.mrf.mxu0
    %v1134 = vadd.f32 %v1015, %v1133
    %1135 = vmatmul.f32.gmra.mxu0 %v976
    %v1136 = vpop.f32.mrf.mxu0
    %v1137 = vadd.f32 %v1015, %v1136
    %1138 = vmatmul.f32.gmra.mxu0 %v977
    %v1139 = vpop.f32.mrf.mxu0
    %v1140 = vadd.f32 %v1015, %v1139
    %1141 = vmatmul.f32.gmra.mxu0 %v978
    %v1142 = vpop.f32.mrf.mxu0
    %v1143 = vadd.f32 %v1015, %v1142
    %1144 = vmatmul.f32.gmra.mxu0 %v979
    %v1145 = vpop.f32.mrf.mxu0
    %v1146 = vadd.f32 %v1015, %v1145
    %1147 = vdwg.mxu0
    %v1148 = vmax.f32 %v1036, 0.0
    %v1149 = vmax.f32 %v1101, 0.0
    %v1150 = vmax.f32 %v1039, 0.0
    %v1151 = vmax.f32 %v1104, 0.0
    %v1152 = vmax.f32 %v1042, 0.0
    %v1153 = vmax.f32 %v1107, 0.0
    %v1154 = vmax.f32 %v1045, 0.0
    %v1155 = vmax.f32 %v1110, 0.0
    %v1156 = vmax.f32 %v1048, 0.0
    %v1157 = vmax.f32 %v1113, 0.0
    %v1158 = vmax.f32 %v1051, 0.0
    %v1159 = vmax.f32 %v1116, 0.0
    %v1160 = vmax.f32 %v1054, 0.0
    %v1161 = vmax.f32 %v1119, 0.0
    %v1162 = vmax.f32 %v1057, 0.0
    %v1163 = vmax.f32 %v1122, 0.0
    %v1164 = vmax.f32 %v1060, 0.0
    %v1165 = vmax.f32 %v1125, 0.0
    %v1166 = vmax.f32 %v1063, 0.0
    %v1167 = vmax.f32 %v1128, 0.0
    %v1168 = vmax.f32 %v1066, 0.0
    %v1169 = vmax.f32 %v1131, 0.0
    %v1170 = vmax.f32 %v1069, 0.0
    %v1171 = vmax.f32 %v1134, 0.0
    %v1172 = vmax.f32 %v1072, 0.0
    %v1173 = vmax.f32 %v1137, 0.0
    %v1174 = vmax.f32 %v1075, 0.0
    %v1175 = vmax.f32 %v1140, 0.0
    %v1176 = vmax.f32 %v1078, 0.0
    %v1177 = vmax.f32 %v1143, 0.0
    %v1178 = vmax.f32 %v1081, 0.0
    %v1179 = vmax.f32 %v1146, 0.0
    %v1180 = vld [vmem:[%s11] sm:$0xff]
    %v1181 = vld [vmem:[%s11 + $0x8] sm:$0xff]
    %v1182 = vld [vmem:[%s11 + $0x10] sm:$0xff]
    %v1183 = vld [vmem:[%s11 + $0x18] sm:$0xff]
    %v1184 = vld [vmem:[%s11 + $0x20] sm:$0xff]
    %v1185 = vld [vmem:[%s11 + $0x28] sm:$0xff]
    %v1186 = vld [vmem:[%s11 + $0x30] sm:$0xff]
    %v1187 = vld [vmem:[%s11 + $0x38] sm:$0xff]
    %v1188 = vld [vmem:[%s11 + $0x40] sm:$0xff]
    %v1189 = vld [vmem:[%s11 + $0x48] sm:$0xff]
    %v1190 = vld [vmem:[%s11 + $0x50] sm:$0xff]
    %v1191 = vld [vmem:[%s11 + $0x58] sm:$0xff]
    %v1192 = vld [vmem:[%s11 + $0x60] sm:$0xff]
    %v1193 = vld [vmem:[%s11 + $0x68] sm:$0xff]
    %v1194 = vld [vmem:[%s11 + $0x70] sm:$0xff]
    %v1195 = vld [vmem:[%s11 + $0x78] sm:$0xff]
    %v1196 = vld [vmem:[%s11 + $0x80] sm:$0xff]
    %v1197 = vld [vmem:[%s11 + $0x88] sm:$0xff]
    %v1198 = vld [vmem:[%s11 + $0x90] sm:$0xff]
    %v1199 = vld [vmem:[%s11 + $0x98] sm:$0xff]
    %v1200 = vld [vmem:[%s11 + $0xa0] sm:$0xff]
    %v1201 = vld [vmem:[%s11 + $0xa8] sm:$0xff]
    %v1202 = vld [vmem:[%s11 + $0xb0] sm:$0xff]
    %v1203 = vld [vmem:[%s11 + $0xb8] sm:$0xff]
    %v1204 = vld [vmem:[%s11 + $0xc0] sm:$0xff]
    %v1205 = vld [vmem:[%s11 + $0xc8] sm:$0xff]
    %v1206 = vld [vmem:[%s11 + $0xd0] sm:$0xff]
    %v1207 = vld [vmem:[%s11 + $0xd8] sm:$0xff]
    %v1208 = vld [vmem:[%s11 + $0xe0] sm:$0xff]
    %v1209 = vld [vmem:[%s11 + $0xe8] sm:$0xff]
    %v1210 = vld [vmem:[%s11 + $0xf0] sm:$0xff]
    %v1211 = vld [vmem:[%s11 + $0xf8] sm:$0xff]
    %v1212 = vld [vmem:[%s12] sm:$0x1]
    %v1214 = vperm.slane %v1212, 0
    %1216 = vmatpush.msra.mxu0 %v1195
    %1217 = vmatpush.msra.mxu0 %v1194
    %1218 = vmatpush.msra.mxu0 %v1193
    %1219 = vmatpush.msra.mxu0 %v1192
    %1220 = vmatpush.msra.mxu0 %v1191
    %1221 = vmatpush.msra.mxu0 %v1190
    %1222 = vmatpush.msra.mxu0 %v1189
    %1223 = vmatpush.msra.mxu0 %v1188
    %1224 = vmatpush.msra.mxu0 %v1187
    %1225 = vmatpush.msra.mxu0 %v1186
    %1226 = vmatpush.msra.mxu0 %v1185
    %1227 = vmatpush.msra.mxu0 %v1184
    %1228 = vmatpush.msra.mxu0 %v1183
    %1229 = vmatpush.msra.mxu0 %v1182
    %1230 = vmatpush.msra.mxu0 %v1181
    %1231 = vmatpush.msra.mxu0 %v1180
    %1232 = vmatmul.f32.gmra.mxu0 %v1148
    %v1233 = vpop.f32.mrf.mxu0
    %v1234 = vadd.f32 %v1214, %v1233
    %1235 = vmatmul.f32.gmra.mxu0 %v1150
    %v1236 = vpop.f32.mrf.mxu0
    %v1237 = vadd.f32 %v1214, %v1236
    %1238 = vmatmul.f32.gmra.mxu0 %v1152
    %v1239 = vpop.f32.mrf.mxu0
    %v1240 = vadd.f32 %v1214, %v1239
    %1241 = vmatmul.f32.gmra.mxu0 %v1154
    %v1242 = vpop.f32.mrf.mxu0
    %v1243 = vadd.f32 %v1214, %v1242
    %1244 = vmatmul.f32.gmra.mxu0 %v1156
    %v1245 = vpop.f32.mrf.mxu0
    %v1246 = vadd.f32 %v1214, %v1245
    %1247 = vmatmul.f32.gmra.mxu0 %v1158
    %v1248 = vpop.f32.mrf.mxu0
    %v1249 = vadd.f32 %v1214, %v1248
    %1250 = vmatmul.f32.gmra.mxu0 %v1160
    %v1251 = vpop.f32.mrf.mxu0
    %v1252 = vadd.f32 %v1214, %v1251
    %1253 = vmatmul.f32.gmra.mxu0 %v1162
    %v1254 = vpop.f32.mrf.mxu0
    %v1255 = vadd.f32 %v1214, %v1254
    %1256 = vmatmul.f32.gmra.mxu0 %v1164
    %v1257 = vpop.f32.mrf.mxu0
    %v1258 = vadd.f32 %v1214, %v1257
    %1259 = vmatmul.f32.gmra.mxu0 %v1166
    %v1260 = vpop.f32.mrf.mxu0
    %v1261 = vadd.f32 %v1214, %v1260
    %1262 = vmatmul.f32.gmra.mxu0 %v1168
    %v1263 = vpop.f32.mrf.mxu0
    %v1264 = vadd.f32 %v1214, %v1263
    %1265 = vmatmul.f32.gmra.mxu0 %v1170
    %v1266 = vpop.f32.mrf.mxu0
    %v1267 = vadd.f32 %v1214, %v1266
    %1268 = vmatmul.f32.gmra.mxu0 %v1172
    %v1269 = vpop.f32.mrf.mxu0
    %v1270 = vadd.f32 %v1214, %v1269
    %1271 = vmatmul.f32.gmra.mxu0 %v1174
    %v1272 = vpop.f32.mrf.mxu0
    %v1273 = vadd.f32 %v1214, %v1272
    %1274 = vmatmul.f32.gmra.mxu0 %v1176
    %v1275 = vpop.f32.mrf.mxu0
    %v1276 = vadd.f32 %v1214, %v1275
    %1277 = vmatmul.f32.gmra.mxu0 %v1178
    %v1278 = vpop.f32.mrf.mxu0
    %v1279 = vadd.f32 %v1214, %v1278
    %1280 = vdwg.mxu0
    %1281 = vmatpush.msra.mxu0 %v1211
    %1282 = vmatpush.msra.mxu0 %v1210
    %1283 = vmatpush.msra.mxu0 %v1209
    %1284 = vmatpush.msra.mxu0 %v1208
    %1285 = vmatpush.msra.mxu0 %v1207
    %1286 = vmatpush.msra.mxu0 %v1206
    %1287 = vmatpush.msra.mxu0 %v1205
    %1288 = vmatpush.msra.mxu0 %v1204
    %1289 = vmatpush.msra.mxu0 %v1203
    %1290 = vmatpush.msra.mxu0 %v1202
    %1291 = vmatpush.msra.mxu0 %v1201
    %1292 = vmatpush.msra.mxu0 %v1200
    %1293 = vmatpush.msra.mxu0 %v1199
    %1294 = vmatpush.msra.mxu0 %v1198
    %1295 = vmatpush.msra.mxu0 %v1197
    %1296 = vmatpush.msra.mxu0 %v1196
    %1297 = vmatmul.f32.gmra.mxu0 %v1149
    %v1298 = vpop.f32.mrf.mxu0
    %v1299 = vadd.f32 %v1234, %v1298
    %1300 = vmatmul.f32.gmra.mxu0 %v1151
    %v1301 = vpop.f32.mrf.mxu0
    %v1302 = vadd.f32 %v1237, %v1301
    %1303 = vmatmul.f32.gmra.mxu0 %v1153
    %v1304 = vpop.f32.mrf.mxu0
    %v1305 = vadd.f32 %v1240, %v1304
    %1306 = vmatmul.f32.gmra.mxu0 %v1155
    %v1307 = vpop.f32.mrf.mxu0
    %v1308 = vadd.f32 %v1243, %v1307
    %1309 = vmatmul.f32.gmra.mxu0 %v1157
    %v1310 = vpop.f32.mrf.mxu0
    %v1311 = vadd.f32 %v1246, %v1310
    %1312 = vmatmul.f32.gmra.mxu0 %v1159
    %v1313 = vpop.f32.mrf.mxu0
    %v1314 = vadd.f32 %v1249, %v1313
    %1315 = vmatmul.f32.gmra.mxu0 %v1161
    %v1316 = vpop.f32.mrf.mxu0
    %v1317 = vadd.f32 %v1252, %v1316
    %1318 = vmatmul.f32.gmra.mxu0 %v1163
    %v1319 = vpop.f32.mrf.mxu0
    %v1320 = vadd.f32 %v1255, %v1319
    %1321 = vmatmul.f32.gmra.mxu0 %v1165
    %v1322 = vpop.f32.mrf.mxu0
    %v1323 = vadd.f32 %v1258, %v1322
    %1324 = vmatmul.f32.gmra.mxu0 %v1167
    %v1325 = vpop.f32.mrf.mxu0
    %v1326 = vadd.f32 %v1261, %v1325
    %1327 = vmatmul.f32.gmra.mxu0 %v1169
    %v1328 = vpop.f32.mrf.mxu0
    %v1329 = vadd.f32 %v1264, %v1328
    %1330 = vmatmul.f32.gmra.mxu0 %v1171
    %v1331 = vpop.f32.mrf.mxu0
    %v1332 = vadd.f32 %v1267, %v1331
    %1333 = vmatmul.f32.gmra.mxu0 %v1173
    %v1334 = vpop.f32.mrf.mxu0
    %v1335 = vadd.f32 %v1270, %v1334
    %1336 = vmatmul.f32.gmra.mxu0 %v1175
    %v1337 = vpop.f32.mrf.mxu0
    %v1338 = vadd.f32 %v1273, %v1337
    %1339 = vmatmul.f32.gmra.mxu0 %v1177
    %v1340 = vpop.f32.mrf.mxu0
    %v1341 = vadd.f32 %v1276, %v1340
    %1342 = vmatmul.f32.gmra.mxu0 %v1179
    %v1343 = vpop.f32.mrf.mxu0
    %v1344 = vadd.f32 %v1279, %v1343
    %1345 = vdwg.mxu0
    %v1346 = vmax.f32 %v1299, 0.0
    %v1347 = vmax.f32 %v1302, 0.0
    %v1348 = vmax.f32 %v1305, 0.0
    %v1349 = vmax.f32 %v1308, 0.0
    %v1350 = vmax.f32 %v1311, 0.0
    %v1351 = vmax.f32 %v1314, 0.0
    %v1352 = vmax.f32 %v1317, 0.0
    %v1353 = vmax.f32 %v1320, 0.0
    %v1354 = vmax.f32 %v1323, 0.0
    %v1355 = vmax.f32 %v1326, 0.0
    %v1356 = vmax.f32 %v1329, 0.0
    %v1357 = vmax.f32 %v1332, 0.0
    %v1358 = vmax.f32 %v1335, 0.0
    %v1359 = vmax.f32 %v1338, 0.0
    %v1360 = vmax.f32 %v1341, 0.0
    %v1361 = vmax.f32 %v1344, 0.0
    %1362 = vst [vmem:[%s18] sm:$0xff] %v1346
    %1363 = vst [vmem:[%s18 + $0x8] sm:$0xff] %v1347
    %1364 = vst [vmem:[%s18 + $0x10] sm:$0xff] %v1348
    %1365 = vst [vmem:[%s18 + $0x18] sm:$0xff] %v1349
    %1366 = vst [vmem:[%s18 + $0x20] sm:$0xff] %v1350
    %1367 = vst [vmem:[%s18 + $0x28] sm:$0xff] %v1351
    %1368 = vst [vmem:[%s18 + $0x30] sm:$0xff] %v1352
    %1369 = vst [vmem:[%s18 + $0x38] sm:$0xff] %v1353
    %1370 = vst [vmem:[%s18 + $0x40] sm:$0xff] %v1354
    %1371 = vst [vmem:[%s18 + $0x48] sm:$0xff] %v1355
    %1372 = vst [vmem:[%s18 + $0x50] sm:$0xff] %v1356
    %1373 = vst [vmem:[%s18 + $0x58] sm:$0xff] %v1357
    %1374 = vst [vmem:[%s18 + $0x60] sm:$0xff] %v1358
    %1375 = vst [vmem:[%s18 + $0x68] sm:$0xff] %v1359
    %1376 = vst [vmem:[%s18 + $0x70] sm:$0xff] %v1360
    %1377 = vst [vmem:[%s18 + $0x78] sm:$0xff] %v1361
    %v1378 = vld [vmem:[%s13] sm:$0xff]
    %v1379 = vld [vmem:[#allocation2] sm:$0xff]
    %v1380 = vld [vmem:[#allocation2 + $0x8] sm:$0xff]
    %v1381 = vld [vmem:[#allocation2 + $0x10] sm:$0xff]
    %v1382 = vld [vmem:[#allocation2 + $0x18] sm:$0xff]
    %v1383 = vld [vmem:[#allocation2 + $0x20] sm:$0xff]
    %v1384 = vld [vmem:[#allocation2 + $0x28] sm:$0xff]
    %v1385 = vld [vmem:[#allocation2 + $0x30] sm:$0xff]
    %v1386 = vld [vmem:[#allocation2 + $0x38] sm:$0xff]
    %v1387 = vld [vmem:[#allocation2 + $0x40] sm:$0xff]
    %v1388 = vld [vmem:[#allocation2 + $0x48] sm:$0xff]
    %v1389 = vld [vmem:[#allocation2 + $0x50] sm:$0xff]
    %v1390 = vld [vmem:[#allocation2 + $0x58] sm:$0xff]
    %v1391 = vld [vmem:[#allocation2 + $0x60] sm:$0xff]
    %v1392 = vld [vmem:[#allocation2 + $0x68] sm:$0xff]
    %v1393 = vld [vmem:[#allocation2 + $0x70] sm:$0xff]
    %v1394 = vld [vmem:[#allocation2 + $0x78] sm:$0xff]
    %1395 = vmatpush.msra.mxu0 %v1394
    %1396 = vmatpush.msra.mxu0 %v1393
    %1397 = vmatpush.msra.mxu0 %v1392
    %1398 = vmatpush.msra.mxu0 %v1391
    %1399 = vmatpush.msra.mxu0 %v1390
    %1400 = vmatpush.msra.mxu0 %v1389
    %1401 = vmatpush.msra.mxu0 %v1388
    %1402 = vmatpush.msra.mxu0 %v1387
    %1403 = vmatpush.msra.mxu0 %v1386
    %1404 = vmatpush.msra.mxu0 %v1385
    %1405 = vmatpush.msra.mxu0 %v1384
    %1406 = vmatpush.msra.mxu0 %v1383
    %1407 = vmatpush.msra.mxu0 %v1382
    %1408 = vmatpush.msra.mxu0 %v1381
    %1409 = vmatpush.msra.mxu0 %v1380
    %1410 = vmatpush.msra.mxu0 %v1379
    %1411 = vmatmul.f32.gmra.mxu0 %v1378
    %v1412 = vpop.f32.mrf.mxu0
    %v1413 = vadd.f32 0.0, %v1412
    %1414 = vdwg.mxu0
    %v1415 = vld [vmem:[%s3] sm:$0xff]
    %v1416 = vadd.f32 %v1415, %v1413
    %v1417 = vld [vmem:[%s14] sm:$0xff]
    %v1418 = vld [vmem:[%s14 + $0x8] sm:$0xff]
    %v1419 = vld [vmem:[%s14 + $0x10] sm:$0xff]
    %v1420 = vld [vmem:[%s14 + $0x18] sm:$0xff]
    %v1421 = vld [vmem:[%s14 + $0x20] sm:$0xff]
    %v1422 = vld [vmem:[%s14 + $0x28] sm:$0xff]
    %v1423 = vld [vmem:[%s14 + $0x30] sm:$0xff]
    %v1424 = vld [vmem:[%s14 + $0x38] sm:$0xff]
    %v1425 = vld [vmem:[%s14 + $0x40] sm:$0xff]
    %v1426 = vld [vmem:[%s14 + $0x48] sm:$0xff]
    %v1427 = vld [vmem:[%s14 + $0x50] sm:$0xff]
    %v1428 = vld [vmem:[%s14 + $0x58] sm:$0xff]
    %v1429 = vld [vmem:[%s14 + $0x60] sm:$0xff]
    %v1430 = vld [vmem:[%s14 + $0x68] sm:$0xff]
    %v1431 = vld [vmem:[%s14 + $0x70] sm:$0xff]
    %v1432 = vld [vmem:[%s14 + $0x78] sm:$0xff]
    %v1433 = vld [vmem:[%s14 + $0x80] sm:$0xff]
    %v1434 = vld [vmem:[%s14 + $0x88] sm:$0xff]
    %v1435 = vld [vmem:[%s14 + $0x90] sm:$0xff]
    %v1436 = vld [vmem:[%s14 + $0x98] sm:$0xff]
    %v1437 = vld [vmem:[%s14 + $0xa0] sm:$0xff]
    %v1438 = vld [vmem:[%s14 + $0xa8] sm:$0xff]
    %v1439 = vld [vmem:[%s14 + $0xb0] sm:$0xff]
    %v1440 = vld [vmem:[%s14 + $0xb8] sm:$0xff]
    %v1441 = vld [vmem:[%s14 + $0xc0] sm:$0xff]
    %v1442 = vld [vmem:[%s14 + $0xc8] sm:$0xff]
    %v1443 = vld [vmem:[%s14 + $0xd0] sm:$0xff]
    %v1444 = vld [vmem:[%s14 + $0xd8] sm:$0xff]
    %v1445 = vld [vmem:[%s14 + $0xe0] sm:$0xff]
    %v1446 = vld [vmem:[%s14 + $0xe8] sm:$0xff]
    %v1447 = vld [vmem:[%s14 + $0xf0] sm:$0xff]
    %v1448 = vld [vmem:[%s14 + $0xf8] sm:$0xff]
    %v1449 = vld [vmem:[%s15] sm:$0x3]
    %v1451 = vperm.slane %v1449, 0
    %v1452 = vperm.slane %v1449, 1
    %1455 = vmatpush.msra.mxu0 %v1447
    %1456 = vmatpush.msra.mxu0 %v1445
    %1457 = vmatpush.msra.mxu0 %v1443
    %1458 = vmatpush.msra.mxu0 %v1441
    %1459 = vmatpush.msra.mxu0 %v1439
    %1460 = vmatpush.msra.mxu0 %v1437
    %1461 = vmatpush.msra.mxu0 %v1435
    %1462 = vmatpush.msra.mxu0 %v1433
    %1463 = vmatpush.msra.mxu0 %v1431
    %1464 = vmatpush.msra.mxu0 %v1429
    %1465 = vmatpush.msra.mxu0 %v1427
    %1466 = vmatpush.msra.mxu0 %v1425
    %1467 = vmatpush.msra.mxu0 %v1423
    %1468 = vmatpush.msra.mxu0 %v1421
    %1469 = vmatpush.msra.mxu0 %v1419
    %1470 = vmatpush.msra.mxu0 %v1417
    %1471 = vmatmul.f32.gmra.mxu0 %v1416
    %v1472 = vpop.f32.mrf.mxu0
    %v1473 = vadd.f32 %v1451, %v1472
    %1474 = vdwg.mxu0
    %1475 = vmatpush.msra.mxu0 %v1448
    %1476 = vmatpush.msra.mxu0 %v1446
    %1477 = vmatpush.msra.mxu0 %v1444
    %1478 = vmatpush.msra.mxu0 %v1442
    %1479 = vmatpush.msra.mxu0 %v1440
    %1480 = vmatpush.msra.mxu0 %v1438
    %1481 = vmatpush.msra.mxu0 %v1436
    %1482 = vmatpush.msra.mxu0 %v1434
    %1483 = vmatpush.msra.mxu0 %v1432
    %1484 = vmatpush.msra.mxu0 %v1430
    %1485 = vmatpush.msra.mxu0 %v1428
    %1486 = vmatpush.msra.mxu0 %v1426
    %1487 = vmatpush.msra.mxu0 %v1424
    %1488 = vmatpush.msra.mxu0 %v1422
    %1489 = vmatpush.msra.mxu0 %v1420
    %1490 = vmatpush.msra.mxu0 %v1418
    %1491 = vmatmul.f32.gmra.mxu0 %v1416
    %v1492 = vpop.f32.mrf.mxu0
    %v1493 = vadd.f32 %v1452, %v1492
    %1494 = vdwg.mxu0
    %v1495 = vmax.f32 %v1473, 0.0
    %v1496 = vmax.f32 %v1493, 0.0
    %v1497 = vld [vmem:[%s16] sm:$0xff]
    %v1498 = vld [vmem:[%s16 + $0x8] sm:$0xff]
    %v1499 = vld [vmem:[%s16 + $0x10] sm:$0xff]
    %v1500 = vld [vmem:[%s16 + $0x18] sm:$0xff]
    %v1501 = vld [vmem:[%s16 + $0x20] sm:$0xff]
    %v1502 = vld [vmem:[%s16 + $0x28] sm:$0xff]
    %v1503 = vld [vmem:[%s16 + $0x30] sm:$0xff]
    %v1504 = vld [vmem:[%s16 + $0x38] sm:$0xff]
    %v1505 = vld [vmem:[%s16 + $0x40] sm:$0xff]
    %v1506 = vld [vmem:[%s16 + $0x48] sm:$0xff]
    %v1507 = vld [vmem:[%s16 + $0x50] sm:$0xff]
    %v1508 = vld [vmem:[%s16 + $0x58] sm:$0xff]
    %v1509 = vld [vmem:[%s16 + $0x60] sm:$0xff]
    %v1510 = vld [vmem:[%s16 + $0x68] sm:$0xff]
    %v1511 = vld [vmem:[%s16 + $0x70] sm:$0xff]
    %v1512 = vld [vmem:[%s16 + $0x78] sm:$0xff]
    %v1513 = vld [vmem:[%s16 + $0x80] sm:$0xff]
    %v1514 = vld [vmem:[%s16 + $0x88] sm:$0xff]
    %v1515 = vld [vmem:[%s16 + $0x90] sm:$0xff]
    %v1516 = vld [vmem:[%s16 + $0x98] sm:$0xff]
    %v1517 = vld [vmem:[%s16 + $0xa0] sm:$0xff]
    %v1518 = vld [vmem:[%s16 + $0xa8] sm:$0xff]
    %v1519 = vld [vmem:[%s16 + $0xb0] sm:$0xff]
    %v1520 = vld [vmem:[%s16 + $0xb8] sm:$0xff]
    %v1521 = vld [vmem:[%s16 + $0xc0] sm:$0xff]
    %v1522 = vld [vmem:[%s16 + $0xc8] sm:$0xff]
    %v1523 = vld [vmem:[%s16 + $0xd0] sm:$0xff]
    %v1524 = vld [vmem:[%s16 + $0xd8] sm:$0xff]
    %v1525 = vld [vmem:[%s16 + $0xe0] sm:$0xff]
    %v1526 = vld [vmem:[%s16 + $0xe8] sm:$0xff]
    %v1527 = vld [vmem:[%s16 + $0xf0] sm:$0xff]
    %v1528 = vld [vmem:[%s16 + $0xf8] sm:$0xff]
    %v1529 = vld [vmem:[%s17] sm:$0x1]
    %v1531 = vperm.slane %v1529, 0
    %1533 = vmatpush.msra.mxu0 %v1512
    %1534 = vmatpush.msra.mxu0 %v1511
    %1535 = vmatpush.msra.mxu0 %v1510
    %1536 = vmatpush.msra.mxu0 %v1509
    %1537 = vmatpush.msra.mxu0 %v1508
    %1538 = vmatpush.msra.mxu0 %v1507
    %1539 = vmatpush.msra.mxu0 %v1506
    %1540 = vmatpush.msra.mxu0 %v1505
    %1541 = vmatpush.msra.mxu0 %v1504
    %1542 = vmatpush.msra.mxu0 %v1503
    %1543 = vmatpush.msra.mxu0 %v1502
    %1544 = vmatpush.msra.mxu0 %v1501
    %1545 = vmatpush.msra.mxu0 %v1500
    %1546 = vmatpush.msra.mxu0 %v1499
    %1547 = vmatpush.msra.mxu0 %v1498
    %1548 = vmatpush.msra.mxu0 %v1497
    %1549 = vmatmul.f32.gmra.mxu0 %v1495
    %v1550 = vpop.f32.mrf.mxu0
    %v1551 = vadd.f32 %v1531, %v1550
    %1552 = vdwg.mxu0
    %1553 = vmatpush.msra.mxu0 %v1528
    %1554 = vmatpush.msra.mxu0 %v1527
    %1555 = vmatpush.msra.mxu0 %v1526
    %1556 = vmatpush.msra.mxu0 %v1525
    %1557 = vmatpush.msra.mxu0 %v1524
    %1558 = vmatpush.msra.mxu0 %v1523
    %1559 = vmatpush.msra.mxu0 %v1522
    %1560 = vmatpush.msra.mxu0 %v1521
    %1561 = vmatpush.msra.mxu0 %v1520
    %1562 = vmatpush.msra.mxu0 %v1519
    %1563 = vmatpush.msra.mxu0 %v1518
    %1564 = vmatpush.msra.mxu0 %v1517
    %1565 = vmatpush.msra.mxu0 %v1516
    %1566 = vmatpush.msra.mxu0 %v1515
    %1567 = vmatpush.msra.mxu0 %v1514
    %1568 = vmatpush.msra.mxu0 %v1513
    %1569 = vmatmul.f32.gmra.mxu0 %v1496
    %v1570 = vpop.f32.mrf.mxu0
    %v1571 = vadd.f32 %v1551, %v1570
    %1572 = vdwg.mxu0
    %v1573 = vmax.f32 %v1571, 0.0
    %1574 = vst [vmem:[%s19] sm:$0xff] %v1573
  $region81: #{gnn_node_virtualnode_forward.3} parent=0 // pred_fallthru
    _
  // Predicated region
  $region82: #{gnn_node_virtualnode_forward.3} parent=0 // pred_check
    _
  $region83: #{gnn_node_virtualnode_forward.3} parent=0 // pred_check_branch
    %1576 = sbr.rel (0) target = $region85
  $region84: #{gnn_node_virtualnode_forward.3} parent=0 // pred_region
    _
  $region85: #{gnn_node_virtualnode_forward.3} parent=0 // pred_fallthru
    _
  // Predicated region
  $region86: #{gnn_node_virtualnode_forward.3} parent=0 // pred_check
    _
  $region87: #{gnn_node_virtualnode_forward.3} parent=0 // pred_check_branch
    %1578 = sbr.rel (0) target = $region89
  $region88: #{gnn_node_virtualnode_forward.3} parent=0 // pred_region
    _
  $region89: #{gnn_node_virtualnode_forward.3} parent=0 // pred_fallthru
    _
  // Predicated region
  $region90: #{gnn_node_virtualnode_forward.3} parent=0 // pred_check
    _
  $region91: #{gnn_node_virtualnode_forward.3} parent=0 // pred_check_branch
    %1580 = sbr.rel (0) target = $region93
  $region92: #{gnn_node_virtualnode_forward.3} parent=0 // pred_region
    _
  $region93: #{gnn_node_virtualnode_forward.3} parent=0 // pred_fallthru
    _
  // Predicated region
  $region94: #{gnn_node_virtualnode_forward.3} parent=0 // pred_check
    _
  $region95: #{gnn_node_virtualnode_forward.3} parent=0 // pred_check_branch
    %1582 = sbr.rel (0) target = $region97
  $region96: #{gnn_node_virtualnode_forward.3} parent=0 // pred_region
    _
  $region97: #{gnn_node_virtualnode_forward.3} parent=0 // pred_fallthru
    _

</llo_original>
